<compile_context>
chip_gen: v7x
topology: tpu7x:2x2x1
jax: 0.10.0
libtpu: 0.0.40
codegen_flags: <defaults>
</compile_context>

<pallas_src>
import numpy as np

import jax
import jax.numpy as jnp
from jax.experimental import pallas as pl
from jax.experimental.pallas import tpu as pltpu

# ----------------------------- configuration -------------------------------
B = 2                    # batch
C_IMG, H_IMG, W_IMG = 4, 16, 16
HW = H_IMG * W_IMG       # 256
IMG_HIDDEN = 16          # args.img_hidden_sz
HIDDEN = 32              # args.hidden_sz
N_HEADS = 4
HEAD_DIM = HIDDEN // N_HEADS
INTER = 64               # BERT intermediate size
N_LAYERS = 2
VOCAB = 100
MAX_POS = 64
N_CLASSES = 3
NUM_IMAGE_EMBEDS = 4     # args.num_image_embeds
S_TXT = 8
S_IMG = NUM_IMAGE_EMBEDS + 2
S_TOTAL = S_IMG + S_TXT          # 14
S_PAD = 16                       # pad to a multiple of 8 sublanes
TOK = B * S_PAD                  # 32 tokens in the fused slab
NCLS_PAD = 128                   # lane-dense classifier output
CLS_ROWS_PAD = 8                 # sublane-aligned CLS-row tile
CLS_ID, SEP_ID = 1, 2
LN_EPS = 1e-12
ATT_SCALE = 1.0 / float(HEAD_DIM) ** 0.5

# ------------------------- packed-slab row offsets --------------------------
# w32 slab: (W32_ROWS, HIDDEN) -- every HIDDEN-wide weight matrix.
OFF_A = 0                                         # per (layer, head) A_h
OFF_M = OFF_A + N_LAYERS * N_HEADS * HIDDEN       # per (layer, head) M_h
OFF_WO2 = OFF_M + N_LAYERS * N_HEADS * HIDDEN     # per layer FFN out weight
OFF_PW = OFF_WO2 + N_LAYERS * INTER               # pooler weight
OFF_IMGP = OFF_PW + HIDDEN                        # folded image projection
W32_ROWS = OFF_IMGP + 8

# s128 slab: (S128_ROWS, 128) -- Wi, classifier, CLS selector, all vectors.
ROW_WI = 0                                        # per layer FFN in weight
ROW_CLFW = ROW_WI + N_LAYERS * HIDDEN             # classifier weight
ROW_SEL = ROW_CLFW + HIDDEN                       # CLS row selector (8, TOK)
ROW_EMB_G = ROW_SEL + CLS_ROWS_PAD
ROW_EMB_B = ROW_EMB_G + 1
ROW_POOL_B = ROW_EMB_B + 1
ROW_CLF_B = ROW_POOL_B + 1
ROW_LAYER0 = ROW_CLF_B + 1
ROWS_PER_LAYER = N_HEADS + 7                      # kb x4, b_attn, ln1 g/b, bi, bo2, ln2 g/b
VB_BATTN = N_HEADS
VB_LN1G = N_HEADS + 1
VB_LN1B = N_HEADS + 2
VB_BI = N_HEADS + 3
VB_BO2 = N_HEADS + 4
VB_LN2G = N_HEADS + 5
VB_LN2B = N_HEADS + 6
_S128_USED = ROW_LAYER0 + N_LAYERS * ROWS_PER_LAYER
S128_ROWS = ((_S128_USED + 7) // 8) * 8


# ----------------------------- static matrices ------------------------------
def _make_scpool():
    # AdaptiveAvgPool2d((2, 2)) over the (H_IMG, W_IMG) grid fused with the
    # scatter that places the NUM_IMAGE_EMBEDS pooled image tokens of batch b
    # into rows b*S_PAD + 1 .. b*S_PAD + NUM_IMAGE_EMBEDS of the token slab.
    gh, gw = 2, 2
    bh, bw = H_IMG // gh, W_IMG // gw
    pool = np.zeros((NUM_IMAGE_EMBEDS, HW), np.float32)
    for qr in range(gh):
        for qc in range(gw):
            q = qr * gw + qc
            for r in range(qr * bh, (qr + 1) * bh):
                for c in range(qc * bw, (qc + 1) * bw):
                    pool[q, r * W_IMG + c] = 1.0 / (bh * bw)
    sp = np.zeros((TOK, B * HW), np.float32)
    for b in range(B):
        for q in range(NUM_IMAGE_EMBEDS):
            sp[b * S_PAD + 1 + q, b * HW:(b + 1) * HW] = pool[q]
    return sp


SCPOOL_NP = _make_scpool()          # (TOK, B*HW)


# ------------------------------- fused kernel -------------------------------
def _gelu(x):
    # TODO(synk): pytorch_pretrained_bert uses erf-based GELU; tanh approx
    # (<1e-3 deviation) is used to avoid relying on an erf Mosaic lowering.
    return 0.5 * x * (1.0 + jnp.tanh(0.7978845608028654 * (x + 0.044715 * x * x * x)))


def _layernorm(x, g, b):
    mu = jnp.mean(x, axis=-1, keepdims=True)
    var = jnp.mean(jnp.square(x - mu), axis=-1, keepdims=True)
    return (x - mu) * jax.lax.rsqrt(var + LN_EPS) * g + b


def mmbt_kernel(
    ximg_ref,        # (C_IMG, B*HW)   image, channels-major
    scpool_ref,      # (TOK, B*HW)     fused scatter @ adaptive-avg-pool
    base_ref,        # (TOK, HIDDEN)   pre-LN embedding sums (+ image bias)
    maskf_ref,       # (TOK, TOK)      additive attention mask (block-diag)
    w32_ref,         # (W32_ROWS, HIDDEN)
    s128_ref,        # (S128_ROWS, 128)
    out_ref,         # (CLS_ROWS_PAD, NCLS_PAD)
):
    f32 = jnp.float32

    def vec(row, width):
        return s128_ref[row:row + 1, :width]          # (1, width), static slice

    # ---- image encoder, folded to 2 GEMMs ----------------------------------
    # TODO(synk): original ImageEncoder is a pretrained ResNet-152 backbone;
    # this is a 1x1-conv projection + AdaptiveAvgPool2d((2,2)) stand-in with
    # the same output shape (B, NUM_IMAGE_EMBEDS, IMG_HIDDEN) -> HIDDEN.
    pooled = jax.lax.dot_general(
        scpool_ref[...], ximg_ref[...], (((1,), (1,)), ((), ())),
        preferred_element_type=f32)                               # (TOK, C_IMG)
    img_proj = jnp.dot(pooled, w32_ref[OFF_IMGP:OFF_IMGP + C_IMG, :],
                       preferred_element_type=f32)                # (TOK, HIDDEN)
    h = base_ref[...] + img_proj

    # ---- embedding LayerNorm ----
    h = _layernorm(h, vec(ROW_EMB_G, HIDDEN), vec(ROW_EMB_B, HIDDEN))

    mask_full = maskf_ref[...]                                    # (TOK, TOK), hoisted

    # ---- BERT encoder layers (static unroll; weights resident in VMEM) -----
    for l in range(N_LAYERS):
        vb = ROW_LAYER0 + l * ROWS_PER_LAYER
        a0 = OFF_A + l * N_HEADS * HIDDEN
        m0 = OFF_M + l * N_HEADS * HIDDEN

        acc = None
        for hh in range(N_HEADS):
            a_mat = w32_ref[a0 + hh * HIDDEN:a0 + (hh + 1) * HIDDEN, :]
            m_mat = w32_ref[m0 + hh * HIDDEN:m0 + (hh + 1) * HIDDEN, :]
            # T = h @ (Wq_h Wk_h^T / sqrt(d)) + key-bias fold
            t = jnp.dot(h, a_mat, preferred_element_type=f32) + vec(vb + hh, HIDDEN)
            # full token x token scores; cross-batch/padded keys masked to -1e4
            s = jax.lax.dot_general(t, h, (((1,), (1,)), ((), ())),
                                    preferred_element_type=f32) + mask_full
            s = s - jnp.max(s, axis=-1, keepdims=True)
            p = jnp.exp(s)
            p = p * pl.reciprocal(jnp.sum(p, axis=-1, keepdims=True), approx=True)
            # context folded with Wo: P @ (h @ (Wv_h Wo_h))
            xm = jnp.dot(h, m_mat, preferred_element_type=f32)
            c = jnp.dot(p, xm, preferred_element_type=f32)
            acc = c if acc is None else acc + c

        attn_out = acc + vec(vb + VB_BATTN, HIDDEN)
        h = _layernorm(attn_out + h, vec(vb + VB_LN1G, HIDDEN), vec(vb + VB_LN1B, HIDDEN))

        wi = s128_ref[ROW_WI + l * HIDDEN:ROW_WI + (l + 1) * HIDDEN, :INTER]
        inter = _gelu(jnp.dot(h, wi, preferred_element_type=f32) + vec(vb + VB_BI, INTER))
        wo2 = w32_ref[OFF_WO2 + l * INTER:OFF_WO2 + (l + 1) * INTER, :]
        ffn = jnp.dot(inter, wo2, preferred_element_type=f32) + vec(vb + VB_BO2, HIDDEN)
        h = _layernorm(ffn + h, vec(vb + VB_LN2G, HIDDEN), vec(vb + VB_LN2B, HIDDEN))

    # ---- pooler (dense + tanh) + classifier on the B [CLS] rows only -------
    sel = s128_ref[ROW_SEL:ROW_SEL + CLS_ROWS_PAD, :TOK]          # (8, TOK)
    cls = jnp.dot(sel, h, preferred_element_type=f32)             # (8, HIDDEN)
    pooled_cls = jnp.tanh(
        jnp.dot(cls, w32_ref[OFF_PW:OFF_PW + HIDDEN, :], preferred_element_type=f32)
        + vec(ROW_POOL_B, HIDDEN))
    logits = jnp.dot(pooled_cls, s128_ref[ROW_CLFW:ROW_CLFW + HIDDEN, :],
                     preferred_element_type=f32) + vec(ROW_CLF_B, NCLS_PAD)
    out_ref[...] = logits.astype(out_ref.dtype)


def _full_spec(shape):
    nd = len(shape)
    return pl.BlockSpec(tuple(shape), lambda i, _n=nd: (0,) * _n)


# ------------------------------ parameters ----------------------------------
def init_params(key):
    def dense(k, din, dout):
        kw, kb = jax.random.split(k)
        w = 0.02 * jax.random.normal(kw, (din, dout), jnp.float32)
        b = 0.02 * jax.random.normal(kb, (dout,), jnp.float32)
        return w, b

    keys = iter(jax.random.split(key, 64))
    p = {}
    p["word_emb"] = 0.02 * jax.random.normal(next(keys), (VOCAB, HIDDEN), jnp.float32)
    p["pos_emb"] = 0.02 * jax.random.normal(next(keys), (MAX_POS, HIDDEN), jnp.float32)
    # 3 token types (after expand_token_type_embeddings)
    p["type_emb"] = 0.02 * jax.random.normal(next(keys), (3, HIDDEN), jnp.float32)
    p["emb_g"] = jnp.ones((HIDDEN,), jnp.float32)
    p["emb_b"] = jnp.zeros((HIDDEN,), jnp.float32)
    p["img_enc_w"], p["img_enc_b"] = dense(next(keys), C_IMG, IMG_HIDDEN)
    p["img_proj_w"], p["img_proj_b"] = dense(next(keys), IMG_HIDDEN, HIDDEN)

    names = ["wq", "bq", "wk", "bk", "wv", "bv", "wo", "bo",
             "ln1_g", "ln1_b", "wi", "bi", "wo2", "bo2", "ln2_g", "ln2_b"]
    acc = {n: [] for n in names}
    for _ in range(N_LAYERS):
        wq, bq = dense(next(keys), HIDDEN, HIDDEN)
        wk, bk = dense(next(keys), HIDDEN, HIDDEN)
        wv, bv = dense(next(keys), HIDDEN, HIDDEN)
        wo, bo = dense(next(keys), HIDDEN, HIDDEN)
        wi, bi = dense(next(keys), HIDDEN, INTER)
        wo2, bo2 = dense(next(keys), INTER, HIDDEN)
        vals = dict(wq=wq, bq=bq, wk=wk, bk=bk, wv=wv, bv=bv, wo=wo, bo=bo,
                    ln1_g=jnp.ones((HIDDEN,), jnp.float32),
                    ln1_b=jnp.zeros((HIDDEN,), jnp.float32),
                    wi=wi, bi=bi, wo2=wo2, bo2=bo2,
                    ln2_g=jnp.ones((HIDDEN,), jnp.float32),
                    ln2_b=jnp.zeros((HIDDEN,), jnp.float32))
        for n in names:
            acc[n].append(vals[n])
    for n in names:
        p[n] = jnp.stack(acc[n])

    p["pool_w"], p["pool_b"] = dense(next(keys), HIDDEN, HIDDEN)
    p["clf_w"], p["clf_b"] = dense(next(keys), HIDDEN, N_CLASSES)
    return p


def pack_params(p):
    """Fold + pack raw parameters into the two kernel slabs (done once, eager)."""
    f32 = jnp.float32

    # image encoder: exact affine composition of 1x1-conv projection + linear
    img_p = jnp.dot(p["img_enc_w"], p["img_proj_w"])                        # (C_IMG, H)
    img_b = jnp.dot(p["img_enc_b"], p["img_proj_w"]) + p["img_proj_b"]      # (H,)

    a_blocks, m_blocks, kb_vecs, battn_vecs = [], [], [], []
    for l in range(N_LAYERS):
        wq, wk, wv, wo = p["wq"][l], p["wk"][l], p["wv"][l], p["wo"][l]
        bq, bv, bo = p["bq"][l], p["bv"][l], p["bo"][l]
        a_l, m_l, kb_l = [], [], []
        battn = bo
        for hh in range(N_HEADS):
            sl = slice(hh * HEAD_DIM, (hh + 1) * HEAD_DIM)
            wq_h, wk_h, wv_h, wo_h = wq[:, sl], wk[:, sl], wv[:, sl], wo[sl, :]
            a_l.append(ATT_SCALE * jnp.dot(wq_h, wk_h.T))      # (H, H)
            kb_l.append(ATT_SCALE * jnp.dot(wk_h, bq[sl]))     # (H,) key-side bias
            m_l.append(jnp.dot(wv_h, wo_h))                    # (H, H)
            battn = battn + jnp.dot(bv[sl], wo_h)
        a_blocks.append(a_l)
        m_blocks.append(m_l)
        kb_vecs.append(kb_l)
        battn_vecs.append(battn)
    # Note: query-side Q/K bias terms are per-row constants of the softmax and
    # drop out exactly (shift invariance); bk therefore has no effect and the
    # folding above is mathematically exact.

    w32 = jnp.concatenate(
        [a_blocks[l][hh] for l in range(N_LAYERS) for hh in range(N_HEADS)]
        + [m_blocks[l][hh] for l in range(N_LAYERS) for hh in range(N_HEADS)]
        + [p["wo2"][l] for l in range(N_LAYERS)]
        + [p["pool_w"], jnp.pad(img_p, ((0, 8 - C_IMG), (0, 0)))],
        axis=0).astype(f32)
    assert w32.shape == (W32_ROWS, HIDDEN)

    def row128(v):
        v = jnp.asarray(v, f32).reshape(1, -1)
        return jnp.pad(v, ((0, 0), (0, 128 - v.shape[1])))

    sel = np.zeros((CLS_ROWS_PAD, TOK), np.float32)
    for b in range(B):
        sel[b, b * S_PAD] = 1.0

    s_rows = [jnp.pad(p["wi"][l], ((0, 0), (0, 128 - INTER))) for l in range(N_LAYERS)]
    s_rows.append(jnp.pad(p["clf_w"], ((0, 0), (0, NCLS_PAD - N_CLASSES))))
    s_rows.append(jnp.pad(jnp.asarray(sel), ((0, 0), (0, 128 - TOK))))
    s_rows += [row128(p["emb_g"]), row128(p["emb_b"]),
               row128(p["pool_b"]),
               row128(jnp.pad(p["clf_b"], (0, NCLS_PAD - N_CLASSES)))]
    for l in range(N_LAYERS):
        s_rows += [row128(kb_vecs[l][hh]) for hh in range(N_HEADS)]
        s_rows += [row128(battn_vecs[l]),
                   row128(p["ln1_g"][l]), row128(p["ln1_b"][l]),
                   row128(p["bi"][l]), row128(p["bo2"][l]),
                   row128(p["ln2_g"][l]), row128(p["ln2_b"][l])]
    s128 = jnp.concatenate(s_rows, axis=0)
    s128 = jnp.pad(s128, ((0, S128_ROWS - s128.shape[0]), (0, 0))).astype(f32)
    assert s128.shape == (S128_ROWS, 128)

    # image-encoder bias, pre-scattered into the image token rows (added to the
    # embedding sums in the wrapper so the kernel needs no extra bias add).
    sel_img = np.zeros((TOK, 1), np.float32)
    for b in range(B):
        sel_img[b * S_PAD + 1: b * S_PAD + 1 + NUM_IMAGE_EMBEDS, 0] = 1.0
    img_bias_rows = jnp.asarray(sel_img) * img_b[None, :]

    return {
        "w32": w32,
        "s128": s128,
        "scpool": jnp.asarray(SCPOOL_NP),
        "img_bias_rows": img_bias_rows,
        "word_emb": p["word_emb"],
        "pos_emb": p["pos_emb"],
        "type_emb": p["type_emb"],
    }


# ------------------------------- forward ------------------------------------
def forward(packed, txt, mask, segment, img):
    bsz = txt.shape[0]
    f32 = jnp.float32

    # ---- glue: image NCHW -> (C, B*HW), matching SCPOOL column order ----
    ximg_t = jnp.transpose(img, (1, 0, 2, 3)).reshape(C_IMG, bsz * HW)

    # ---- glue: pre-LayerNorm embedding sums (image features added in-kernel) ----
    we, pe, te = packed["word_emb"], packed["pos_emb"], packed["type_emb"]
    cls_tok = jnp.broadcast_to(we[CLS_ID], (bsz, 1, HIDDEN))
    sep_tok = jnp.broadcast_to(we[SEP_ID], (bsz, 1, HIDDEN))
    img_base = jnp.concatenate(
        [cls_tok, jnp.zeros((bsz, NUM_IMAGE_EMBEDS, HIDDEN), f32), sep_tok], axis=1)
    # image segment uses token_type 0 (matches the reference's img_tok.fill_(0))
    img_base = img_base + pe[:S_IMG][None] + te[0][None, None]
    txt_base = (jnp.take(we, txt, axis=0)
                + pe[:S_TXT][None]
                + jnp.take(te, segment, axis=0))
    base = jnp.concatenate([img_base, txt_base], axis=1)                 # (B, S_TOTAL, H)
    base = jnp.pad(base, ((0, 0), (0, S_PAD - S_TOTAL), (0, 0)))         # (B, S_PAD, H)
    base = base.reshape(bsz * S_PAD, HIDDEN) + packed["img_bias_rows"]

    # ---- glue: full token x token additive attention mask (block-diagonal
    #      across the two batches; padded/unattended keys get -10000) ----
    key_ok = jnp.concatenate([jnp.ones((bsz, S_IMG), f32), mask.astype(f32)], axis=1)
    key_ok = jnp.pad(key_ok, ((0, 0), (0, S_PAD - S_TOTAL))).reshape(bsz * S_PAD)
    batch_id = jnp.repeat(jnp.arange(bsz), S_PAD)
    allowed = (batch_id[:, None] == batch_id[None, :]) & (key_ok[None, :] > 0.5)
    mask_full = jnp.where(allowed, 0.0, -10000.0).astype(f32)

    args = (ximg_t, packed["scpool"], base, mask_full, packed["w32"], packed["s128"])

    logits_full = pl.pallas_call(
        mmbt_kernel,
        out_shape=jax.ShapeDtypeStruct((CLS_ROWS_PAD, NCLS_PAD), jnp.float32),
        grid=(1,),
        in_specs=[_full_spec(a.shape) for a in args],
        out_specs=_full_spec((CLS_ROWS_PAD, NCLS_PAD)),
        compiler_params=pltpu.CompilerParams(dimension_semantics=("arbitrary",)),
    )(*args)

    # row b = [CLS] logits for batch b; real classes only
    return logits_full[:bsz, :N_CLASSES]


# --------------------------------- main --------------------------------------
if __name__ == "__main__":
    key = jax.random.PRNGKey(0)
    pkey, tkey, ikey = jax.random.split(key, 3)
    params = init_params(pkey)
    packed = pack_params(params)

    txt = jax.random.randint(tkey, (B, S_TXT), 3, VOCAB, dtype=jnp.int32)
    mask = jnp.concatenate(
        [jnp.ones((B, S_TXT - 2), jnp.float32), jnp.zeros((B, 2), jnp.float32)], axis=1)
    segment = jnp.zeros((B, S_TXT), jnp.int32)
    img = jax.random.normal(ikey, (B, C_IMG, H_IMG, W_IMG), jnp.float32)   # NCHW like PyTorch

    logits = jax.jit(forward)(packed, txt, mask, segment, img)
    logits = jax.block_until_ready(logits)
    assert logits.shape == (B, N_CLASSES)
    assert bool(jnp.all(jnp.isfinite(logits)))
    print("KERNEL_OK")
</pallas_src>

<mosaic_0001>
module attributes {stable_mosaic.version = 11 : i64} {
  func.func @mmbt_kernel(%arg0: i32, %arg1: memref<4x512xf32, #tpu.memory_space<vmem>>, %arg2: memref<32x512xf32, #tpu.memory_space<vmem>>, %arg3: memref<32x32xf32, #tpu.memory_space<vmem>>, %arg4: memref<32x32xf32, #tpu.memory_space<vmem>>, %arg5: memref<680x32xf32, #tpu.memory_space<vmem>>, %arg6: memref<136x128xf32, #tpu.memory_space<vmem>>, %arg7: memref<8x128xf32, #tpu.memory_space<vmem>>) attributes {dimension_semantics = [#tpu.dimension_semantics<arbitrary>], iteration_bounds = array<i64: 1>, scalar_prefetch = 0 : i64, scratch_operands = 0 : i64, tpu.core_type = #tpu.core_type<tc>, window_params = [{pipeline_mode = #tpu.pipeline_mode<synchronous>, transform_indices = @transform_0, window_bounds = array<i64: 4, 512>}, {pipeline_mode = #tpu.pipeline_mode<synchronous>, transform_indices = @transform_1, window_bounds = array<i64: 32, 512>}, {pipeline_mode = #tpu.pipeline_mode<synchronous>, transform_indices = @transform_2, window_bounds = array<i64: 32, 32>}, {pipeline_mode = #tpu.pipeline_mode<synchronous>, transform_indices = @transform_3, window_bounds = array<i64: 32, 32>}, {pipeline_mode = #tpu.pipeline_mode<synchronous>, transform_indices = @transform_4, window_bounds = array<i64: 680, 32>}, {pipeline_mode = #tpu.pipeline_mode<synchronous>, transform_indices = @transform_5, window_bounds = array<i64: 136, 128>}, {pipeline_mode = #tpu.pipeline_mode<synchronous>, transform_indices = @transform_6, window_bounds = array<i64: 8, 128>}]} {
    %c0 = arith.constant 0 : index
    %c0_0 = arith.constant 0 : index
    %0 = vector.load %arg2[%c0, %c0_0] : memref<32x512xf32, #tpu.memory_space<vmem>>, vector<32x512xf32>
    %c0_1 = arith.constant 0 : index
    %c0_2 = arith.constant 0 : index
    %1 = vector.load %arg1[%c0_1, %c0_2] : memref<4x512xf32, #tpu.memory_space<vmem>>, vector<4x512xf32>
    %cst = arith.constant dense<0.000000e+00> : vector<32x4xf32>
    %2 = tpu.matmul %0, %1, %cst {dimension_numbers = #tpu.dot_dimension_numbers<[1], [1], [0], [0], [0, 0, 1, 0], [], []>} : vector<32x512xf32>, vector<4x512xf32>, vector<32x4xf32> -> vector<32x4xf32>
    %c672 = arith.constant 672 : index
    %c0_3 = arith.constant 0 : index
    %3 = vector.load %arg5[%c672, %c0_3] : memref<680x32xf32, #tpu.memory_space<vmem>>, vector<4x32xf32>
    %cst_4 = arith.constant dense<0.000000e+00> : vector<32x32xf32>
    %4 = tpu.matmul %2, %3, %cst_4 {dimension_numbers = #tpu.dot_dimension_numbers<[1], [0], [0], [1], [0, 0, 1, 1], [], []>} : vector<32x4xf32>, vector<4x32xf32>, vector<32x32xf32> -> vector<32x32xf32>
    %c0_5 = arith.constant 0 : index
    %c0_6 = arith.constant 0 : index
    %5 = vector.load %arg3[%c0_5, %c0_6] : memref<32x32xf32, #tpu.memory_space<vmem>>, vector<32x32xf32>
    %6 = arith.addf %5, %4 : vector<32x32xf32>
    %c104 = arith.constant 104 : index
    %c0_7 = arith.constant 0 : index
    %7 = vector.load %arg6[%c104, %c0_7] : memref<136x128xf32, #tpu.memory_space<vmem>>, vector<1x32xf32>
    %c105 = arith.constant 105 : index
    %c0_8 = arith.constant 0 : index
    %8 = vector.load %arg6[%c105, %c0_8] : memref<136x128xf32, #tpu.memory_space<vmem>>, vector<1x32xf32>
    %cst_9 = arith.constant dense<0.000000e+00> : vector<32xf32>
    %9 = vector.multi_reduction <add>, %6, %cst_9 [1] : vector<32x32xf32> to vector<32xf32>
    %10 = vector.shape_cast %9 : vector<32xf32> to vector<32x1xf32>
    %cst_10 = arith.constant 3.200000e+01 : f32
    %11 = vector.broadcast %cst_10 : f32 to vector<32x1xf32>
    %12 = arith.divf %10, %11 : vector<32x1xf32>
    %13 = vector.broadcast %12 : vector<32x1xf32> to vector<32x32xf32>
    %14 = arith.subf %6, %13 : vector<32x32xf32>
    %15 = arith.mulf %14, %14 : vector<32x32xf32>
    %cst_11 = arith.constant dense<0.000000e+00> : vector<32xf32>
    %16 = vector.multi_reduction <add>, %15, %cst_11 [1] : vector<32x32xf32> to vector<32xf32>
    %17 = vector.shape_cast %16 : vector<32xf32> to vector<32x1xf32>
    %cst_12 = arith.constant 3.200000e+01 : f32
    %18 = vector.broadcast %cst_12 : f32 to vector<32x1xf32>
    %19 = arith.divf %17, %18 : vector<32x1xf32>
    %20 = vector.broadcast %12 : vector<32x1xf32> to vector<32x32xf32>
    %21 = arith.subf %6, %20 : vector<32x32xf32>
    %cst_13 = arith.constant 9.99999996E-13 : f32
    %22 = vector.broadcast %cst_13 : f32 to vector<32x1xf32>
    %23 = arith.addf %19, %22 : vector<32x1xf32>
    %24 = math.rsqrt %23 : vector<32x1xf32>
    %25 = vector.broadcast %24 : vector<32x1xf32> to vector<32x32xf32>
    %26 = arith.mulf %21, %25 : vector<32x32xf32>
    %27 = vector.broadcast %7 : vector<1x32xf32> to vector<32x32xf32>
    %28 = arith.mulf %26, %27 : vector<32x32xf32>
    %29 = vector.broadcast %8 : vector<1x32xf32> to vector<32x32xf32>
    %30 = arith.addf %28, %29 : vector<32x32xf32>
    %c0_14 = arith.constant 0 : index
    %c0_15 = arith.constant 0 : index
    %31 = vector.load %arg4[%c0_14, %c0_15] : memref<32x32xf32, #tpu.memory_space<vmem>>, vector<32x32xf32>
    %c0_16 = arith.constant 0 : index
    %c0_17 = arith.constant 0 : index
    %32 = vector.load %arg5[%c0_16, %c0_17] : memref<680x32xf32, #tpu.memory_space<vmem>>, vector<32x32xf32>
    %c256 = arith.constant 256 : index
    %c0_18 = arith.constant 0 : index
    %33 = vector.load %arg5[%c256, %c0_18] : memref<680x32xf32, #tpu.memory_space<vmem>>, vector<32x32xf32>
    %cst_19 = arith.constant dense<0.000000e+00> : vector<32x32xf32>
    %34 = tpu.matmul %30, %32, %cst_19 {dimension_numbers = #tpu.dot_dimension_numbers<[1], [0], [0], [1], [0, 0, 1, 1], [], []>} : vector<32x32xf32>, vector<32x32xf32>, vector<32x32xf32> -> vector<32x32xf32>
    %c108 = arith.constant 108 : index
    %c0_20 = arith.constant 0 : index
    %35 = vector.load %arg6[%c108, %c0_20] : memref<136x128xf32, #tpu.memory_space<vmem>>, vector<1x32xf32>
    %36 = vector.broadcast %35 : vector<1x32xf32> to vector<32x32xf32>
    %37 = arith.addf %34, %36 : vector<32x32xf32>
    %cst_21 = arith.constant dense<0.000000e+00> : vector<32x32xf32>
    %38 = tpu.matmul %37, %30, %cst_21 {dimension_numbers = #tpu.dot_dimension_numbers<[1], [1], [0], [0], [0, 0, 1, 0], [], []>} : vector<32x32xf32>, vector<32x32xf32>, vector<32x32xf32> -> vector<32x32xf32>
    %39 = arith.addf %38, %31 : vector<32x32xf32>
    %cst_22 = arith.constant dense<0xFF800000> : vector<32xf32>
    %40 = vector.multi_reduction <maximumf>, %39, %cst_22 [1] : vector<32x32xf32> to vector<32xf32>
    %41 = vector.shape_cast %40 : vector<32xf32> to vector<32x1xf32>
    %42 = vector.broadcast %41 : vector<32x1xf32> to vector<32x32xf32>
    %43 = arith.subf %39, %42 : vector<32x32xf32>
    %44 = math.exp %43 : vector<32x32xf32>
    %cst_23 = arith.constant dense<0.000000e+00> : vector<32xf32>
    %45 = vector.multi_reduction <add>, %44, %cst_23 [1] : vector<32x32xf32> to vector<32xf32>
    %46 = vector.shape_cast %45 : vector<32xf32> to vector<32x1xf32>
    %47 = tpu.reciprocal %46 {approx = true} : vector<32x1xf32> -> vector<32x1xf32>
    %48 = vector.broadcast %47 : vector<32x1xf32> to vector<32x32xf32>
    %49 = arith.mulf %44, %48 : vector<32x32xf32>
    %cst_24 = arith.constant dense<0.000000e+00> : vector<32x32xf32>
    %50 = tpu.matmul %30, %33, %cst_24 {dimension_numbers = #tpu.dot_dimension_numbers<[1], [0], [0], [1], [0, 0, 1, 1], [], []>} : vector<32x32xf32>, vector<32x32xf32>, vector<32x32xf32> -> vector<32x32xf32>
    %cst_25 = arith.constant dense<0.000000e+00> : vector<32x32xf32>
    %51 = tpu.matmul %49, %50, %cst_25 {dimension_numbers = #tpu.dot_dimension_numbers<[1], [0], [0], [1], [0, 0, 1, 1], [], []>} : vector<32x32xf32>, vector<32x32xf32>, vector<32x32xf32> -> vector<32x32xf32>
    %c32 = arith.constant 32 : index
    %c0_26 = arith.constant 0 : index
    %52 = vector.load %arg5[%c32, %c0_26] : memref<680x32xf32, #tpu.memory_space<vmem>>, vector<32x32xf32>
    %c288 = arith.constant 288 : index
    %c0_27 = arith.constant 0 : index
    %53 = vector.load %arg5[%c288, %c0_27] : memref<680x32xf32, #tpu.memory_space<vmem>>, vector<32x32xf32>
    %cst_28 = arith.constant dense<0.000000e+00> : vector<32x32xf32>
    %54 = tpu.matmul %30, %52, %cst_28 {dimension_numbers = #tpu.dot_dimension_numbers<[1], [0], [0], [1], [0, 0, 1, 1], [], []>} : vector<32x32xf32>, vector<32x32xf32>, vector<32x32xf32> -> vector<32x32xf32>
    %c109 = arith.constant 109 : index
    %c0_29 = arith.constant 0 : index
    %55 = vector.load %arg6[%c109, %c0_29] : memref<136x128xf32, #tpu.memory_space<vmem>>, vector<1x32xf32>
    %56 = vector.broadcast %55 : vector<1x32xf32> to vector<32x32xf32>
    %57 = arith.addf %54, %56 : vector<32x32xf32>
    %cst_30 = arith.constant dense<0.000000e+00> : vector<32x32xf32>
    %58 = tpu.matmul %57, %30, %cst_30 {dimension_numbers = #tpu.dot_dimension_numbers<[1], [1], [0], [0], [0, 0, 1, 0], [], []>} : vector<32x32xf32>, vector<32x32xf32>, vector<32x32xf32> -> vector<32x32xf32>
    %59 = arith.addf %58, %31 : vector<32x32xf32>
    %cst_31 = arith.constant dense<0xFF800000> : vector<32xf32>
    %60 = vector.multi_reduction <maximumf>, %59, %cst_31 [1] : vector<32x32xf32> to vector<32xf32>
    %61 = vector.shape_cast %60 : vector<32xf32> to vector<32x1xf32>
    %62 = vector.broadcast %61 : vector<32x1xf32> to vector<32x32xf32>
    %63 = arith.subf %59, %62 : vector<32x32xf32>
    %64 = math.exp %63 : vector<32x32xf32>
    %cst_32 = arith.constant dense<0.000000e+00> : vector<32xf32>
    %65 = vector.multi_reduction <add>, %64, %cst_32 [1] : vector<32x32xf32> to vector<32xf32>
    %66 = vector.shape_cast %65 : vector<32xf32> to vector<32x1xf32>
    %67 = tpu.reciprocal %66 {approx = true} : vector<32x1xf32> -> vector<32x1xf32>
    %68 = vector.broadcast %67 : vector<32x1xf32> to vector<32x32xf32>
    %69 = arith.mulf %64, %68 : vector<32x32xf32>
    %cst_33 = arith.constant dense<0.000000e+00> : vector<32x32xf32>
    %70 = tpu.matmul %30, %53, %cst_33 {dimension_numbers = #tpu.dot_dimension_numbers<[1], [0], [0], [1], [0, 0, 1, 1], [], []>} : vector<32x32xf32>, vector<32x32xf32>, vector<32x32xf32> -> vector<32x32xf32>
    %cst_34 = arith.constant dense<0.000000e+00> : vector<32x32xf32>
    %71 = tpu.matmul %69, %70, %cst_34 {dimension_numbers = #tpu.dot_dimension_numbers<[1], [0], [0], [1], [0, 0, 1, 1], [], []>} : vector<32x32xf32>, vector<32x32xf32>, vector<32x32xf32> -> vector<32x32xf32>
    %72 = arith.addf %51, %71 : vector<32x32xf32>
    %c64 = arith.constant 64 : index
    %c0_35 = arith.constant 0 : index
    %73 = vector.load %arg5[%c64, %c0_35] : memref<680x32xf32, #tpu.memory_space<vmem>>, vector<32x32xf32>
    %c320 = arith.constant 320 : index
    %c0_36 = arith.constant 0 : index
    %74 = vector.load %arg5[%c320, %c0_36] : memref<680x32xf32, #tpu.memory_space<vmem>>, vector<32x32xf32>
    %cst_37 = arith.constant dense<0.000000e+00> : vector<32x32xf32>
    %75 = tpu.matmul %30, %73, %cst_37 {dimension_numbers = #tpu.dot_dimension_numbers<[1], [0], [0], [1], [0, 0, 1, 1], [], []>} : vector<32x32xf32>, vector<32x32xf32>, vector<32x32xf32> -> vector<32x32xf32>
    %c110 = arith.constant 110 : index
    %c0_38 = arith.constant 0 : index
    %76 = vector.load %arg6[%c110, %c0_38] : memref<136x128xf32, #tpu.memory_space<vmem>>, vector<1x32xf32>
    %77 = vector.broadcast %76 : vector<1x32xf32> to vector<32x32xf32>
    %78 = arith.addf %75, %77 : vector<32x32xf32>
    %cst_39 = arith.constant dense<0.000000e+00> : vector<32x32xf32>
    %79 = tpu.matmul %78, %30, %cst_39 {dimension_numbers = #tpu.dot_dimension_numbers<[1], [1], [0], [0], [0, 0, 1, 0], [], []>} : vector<32x32xf32>, vector<32x32xf32>, vector<32x32xf32> -> vector<32x32xf32>
    %80 = arith.addf %79, %31 : vector<32x32xf32>
    %cst_40 = arith.constant dense<0xFF800000> : vector<32xf32>
    %81 = vector.multi_reduction <maximumf>, %80, %cst_40 [1] : vector<32x32xf32> to vector<32xf32>
    %82 = vector.shape_cast %81 : vector<32xf32> to vector<32x1xf32>
    %83 = vector.broadcast %82 : vector<32x1xf32> to vector<32x32xf32>
    %84 = arith.subf %80, %83 : vector<32x32xf32>
    %85 = math.exp %84 : vector<32x32xf32>
    %cst_41 = arith.constant dense<0.000000e+00> : vector<32xf32>
    %86 = vector.multi_reduction <add>, %85, %cst_41 [1] : vector<32x32xf32> to vector<32xf32>
    %87 = vector.shape_cast %86 : vector<32xf32> to vector<32x1xf32>
    %88 = tpu.reciprocal %87 {approx = true} : vector<32x1xf32> -> vector<32x1xf32>
    %89 = vector.broadcast %88 : vector<32x1xf32> to vector<32x32xf32>
    %90 = arith.mulf %85, %89 : vector<32x32xf32>
    %cst_42 = arith.constant dense<0.000000e+00> : vector<32x32xf32>
    %91 = tpu.matmul %30, %74, %cst_42 {dimension_numbers = #tpu.dot_dimension_numbers<[1], [0], [0], [1], [0, 0, 1, 1], [], []>} : vector<32x32xf32>, vector<32x32xf32>, vector<32x32xf32> -> vector<32x32xf32>
    %cst_43 = arith.constant dense<0.000000e+00> : vector<32x32xf32>
    %92 = tpu.matmul %90, %91, %cst_43 {dimension_numbers = #tpu.dot_dimension_numbers<[1], [0], [0], [1], [0, 0, 1, 1], [], []>} : vector<32x32xf32>, vector<32x32xf32>, vector<32x32xf32> -> vector<32x32xf32>
    %93 = arith.addf %72, %92 : vector<32x32xf32>
    %c96 = arith.constant 96 : index
    %c0_44 = arith.constant 0 : index
    %94 = vector.load %arg5[%c96, %c0_44] : memref<680x32xf32, #tpu.memory_space<vmem>>, vector<32x32xf32>
    %c352 = arith.constant 352 : index
    %c0_45 = arith.constant 0 : index
    %95 = vector.load %arg5[%c352, %c0_45] : memref<680x32xf32, #tpu.memory_space<vmem>>, vector<32x32xf32>
    %cst_46 = arith.constant dense<0.000000e+00> : vector<32x32xf32>
    %96 = tpu.matmul %30, %94, %cst_46 {dimension_numbers = #tpu.dot_dimension_numbers<[1], [0], [0], [1], [0, 0, 1, 1], [], []>} : vector<32x32xf32>, vector<32x32xf32>, vector<32x32xf32> -> vector<32x32xf32>
    %c111 = arith.constant 111 : index
    %c0_47 = arith.constant 0 : index
    %97 = vector.load %arg6[%c111, %c0_47] : memref<136x128xf32, #tpu.memory_space<vmem>>, vector<1x32xf32>
    %98 = vector.broadcast %97 : vector<1x32xf32> to vector<32x32xf32>
    %99 = arith.addf %96, %98 : vector<32x32xf32>
    %cst_48 = arith.constant dense<0.000000e+00> : vector<32x32xf32>
    %100 = tpu.matmul %99, %30, %cst_48 {dimension_numbers = #tpu.dot_dimension_numbers<[1], [1], [0], [0], [0, 0, 1, 0], [], []>} : vector<32x32xf32>, vector<32x32xf32>, vector<32x32xf32> -> vector<32x32xf32>
    %101 = arith.addf %100, %31 : vector<32x32xf32>
    %cst_49 = arith.constant dense<0xFF800000> : vector<32xf32>
    %102 = vector.multi_reduction <maximumf>, %101, %cst_49 [1] : vector<32x32xf32> to vector<32xf32>
    %103 = vector.shape_cast %102 : vector<32xf32> to vector<32x1xf32>
    %104 = vector.broadcast %103 : vector<32x1xf32> to vector<32x32xf32>
    %105 = arith.subf %101, %104 : vector<32x32xf32>
    %106 = math.exp %105 : vector<32x32xf32>
    %cst_50 = arith.constant dense<0.000000e+00> : vector<32xf32>
    %107 = vector.multi_reduction <add>, %106, %cst_50 [1] : vector<32x32xf32> to vector<32xf32>
    %108 = vector.shape_cast %107 : vector<32xf32> to vector<32x1xf32>
    %109 = tpu.reciprocal %108 {approx = true} : vector<32x1xf32> -> vector<32x1xf32>
    %110 = vector.broadcast %109 : vector<32x1xf32> to vector<32x32xf32>
    %111 = arith.mulf %106, %110 : vector<32x32xf32>
    %cst_51 = arith.constant dense<0.000000e+00> : vector<32x32xf32>
    %112 = tpu.matmul %30, %95, %cst_51 {dimension_numbers = #tpu.dot_dimension_numbers<[1], [0], [0], [1], [0, 0, 1, 1], [], []>} : vector<32x32xf32>, vector<32x32xf32>, vector<32x32xf32> -> vector<32x32xf32>
    %cst_52 = arith.constant dense<0.000000e+00> : vector<32x32xf32>
    %113 = tpu.matmul %111, %112, %cst_52 {dimension_numbers = #tpu.dot_dimension_numbers<[1], [0], [0], [1], [0, 0, 1, 1], [], []>} : vector<32x32xf32>, vector<32x32xf32>, vector<32x32xf32> -> vector<32x32xf32>
    %114 = arith.addf %93, %113 : vector<32x32xf32>
    %c112 = arith.constant 112 : index
    %c0_53 = arith.constant 0 : index
    %115 = vector.load %arg6[%c112, %c0_53] : memref<136x128xf32, #tpu.memory_space<vmem>>, vector<1x32xf32>
    %116 = vector.broadcast %115 : vector<1x32xf32> to vector<32x32xf32>
    %117 = arith.addf %114, %116 : vector<32x32xf32>
    %118 = arith.addf %117, %30 : vector<32x32xf32>
    %c113 = arith.constant 113 : index
    %c0_54 = arith.constant 0 : index
    %119 = vector.load %arg6[%c113, %c0_54] : memref<136x128xf32, #tpu.memory_space<vmem>>, vector<1x32xf32>
    %c114 = arith.constant 114 : index
    %c0_55 = arith.constant 0 : index
    %120 = vector.load %arg6[%c114, %c0_55] : memref<136x128xf32, #tpu.memory_space<vmem>>, vector<1x32xf32>
    %cst_56 = arith.constant dense<0.000000e+00> : vector<32xf32>
    %121 = vector.multi_reduction <add>, %118, %cst_56 [1] : vector<32x32xf32> to vector<32xf32>
    %122 = vector.shape_cast %121 : vector<32xf32> to vector<32x1xf32>
    %cst_57 = arith.constant 3.200000e+01 : f32
    %123 = vector.broadcast %cst_57 : f32 to vector<32x1xf32>
    %124 = arith.divf %122, %123 : vector<32x1xf32>
    %125 = vector.broadcast %124 : vector<32x1xf32> to vector<32x32xf32>
    %126 = arith.subf %118, %125 : vector<32x32xf32>
    %127 = arith.mulf %126, %126 : vector<32x32xf32>
    %cst_58 = arith.constant dense<0.000000e+00> : vector<32xf32>
    %128 = vector.multi_reduction <add>, %127, %cst_58 [1] : vector<32x32xf32> to vector<32xf32>
    %129 = vector.shape_cast %128 : vector<32xf32> to vector<32x1xf32>
    %cst_59 = arith.constant 3.200000e+01 : f32
    %130 = vector.broadcast %cst_59 : f32 to vector<32x1xf32>
    %131 = arith.divf %129, %130 : vector<32x1xf32>
    %132 = vector.broadcast %124 : vector<32x1xf32> to vector<32x32xf32>
    %133 = arith.subf %118, %132 : vector<32x32xf32>
    %cst_60 = arith.constant 9.99999996E-13 : f32
    %134 = vector.broadcast %cst_60 : f32 to vector<32x1xf32>
    %135 = arith.addf %131, %134 : vector<32x1xf32>
    %136 = math.rsqrt %135 : vector<32x1xf32>
    %137 = vector.broadcast %136 : vector<32x1xf32> to vector<32x32xf32>
    %138 = arith.mulf %133, %137 : vector<32x32xf32>
    %139 = vector.broadcast %119 : vector<1x32xf32> to vector<32x32xf32>
    %140 = arith.mulf %138, %139 : vector<32x32xf32>
    %141 = vector.broadcast %120 : vector<1x32xf32> to vector<32x32xf32>
    %142 = arith.addf %140, %141 : vector<32x32xf32>
    %c0_61 = arith.constant 0 : index
    %c0_62 = arith.constant 0 : index
    %143 = vector.load %arg6[%c0_61, %c0_62] : memref<136x128xf32, #tpu.memory_space<vmem>>, vector<32x64xf32>
    %cst_63 = arith.constant dense<0.000000e+00> : vector<32x64xf32>
    %144 = tpu.matmul %142, %143, %cst_63 {dimension_numbers = #tpu.dot_dimension_numbers<[1], [0], [0], [1], [0, 0, 1, 1], [], []>} : vector<32x32xf32>, vector<32x64xf32>, vector<32x64xf32> -> vector<32x64xf32>
    %c115 = arith.constant 115 : index
    %c0_64 = arith.constant 0 : index
    %145 = vector.load %arg6[%c115, %c0_64] : memref<136x128xf32, #tpu.memory_space<vmem>>, vector<1x64xf32>
    %146 = vector.broadcast %145 : vector<1x64xf32> to vector<32x64xf32>
    %147 = arith.addf %144, %146 : vector<32x64xf32>
    %cst_65 = arith.constant 5.000000e-01 : f32
    %148 = vector.broadcast %cst_65 : f32 to vector<32x64xf32>
    %149 = arith.mulf %148, %147 : vector<32x64xf32>
    %cst_66 = arith.constant 4.471500e-02 : f32
    %150 = vector.broadcast %cst_66 : f32 to vector<32x64xf32>
    %151 = arith.mulf %150, %147 : vector<32x64xf32>
    %152 = arith.mulf %151, %147 : vector<32x64xf32>
    %153 = arith.mulf %152, %147 : vector<32x64xf32>
    %154 = arith.addf %147, %153 : vector<32x64xf32>
    %cst_67 = arith.constant 0.797884583 : f32
    %155 = vector.broadcast %cst_67 : f32 to vector<32x64xf32>
    %156 = arith.mulf %155, %154 : vector<32x64xf32>
    %157 = math.tanh %156 : vector<32x64xf32>
    %cst_68 = arith.constant 1.000000e+00 : f32
    %158 = vector.broadcast %cst_68 : f32 to vector<32x64xf32>
    %159 = arith.addf %158, %157 : vector<32x64xf32>
    %160 = arith.mulf %149, %159 : vector<32x64xf32>
    %c512 = arith.constant 512 : index
    %c0_69 = arith.constant 0 : index
    %161 = vector.load %arg5[%c512, %c0_69] : memref<680x32xf32, #tpu.memory_space<vmem>>, vector<64x32xf32>
    %cst_70 = arith.constant dense<0.000000e+00> : vector<32x32xf32>
    %162 = tpu.matmul %160, %161, %cst_70 {dimension_numbers = #tpu.dot_dimension_numbers<[1], [0], [0], [1], [0, 0, 1, 1], [], []>} : vector<32x64xf32>, vector<64x32xf32>, vector<32x32xf32> -> vector<32x32xf32>
    %c116 = arith.constant 116 : index
    %c0_71 = arith.constant 0 : index
    %163 = vector.load %arg6[%c116, %c0_71] : memref<136x128xf32, #tpu.memory_space<vmem>>, vector<1x32xf32>
    %164 = vector.broadcast %163 : vector<1x32xf32> to vector<32x32xf32>
    %165 = arith.addf %162, %164 : vector<32x32xf32>
    %166 = arith.addf %165, %142 : vector<32x32xf32>
    %c117 = arith.constant 117 : index
    %c0_72 = arith.constant 0 : index
    %167 = vector.load %arg6[%c117, %c0_72] : memref<136x128xf32, #tpu.memory_space<vmem>>, vector<1x32xf32>
    %c118 = arith.constant 118 : index
    %c0_73 = arith.constant 0 : index
    %168 = vector.load %arg6[%c118, %c0_73] : memref<136x128xf32, #tpu.memory_space<vmem>>, vector<1x32xf32>
    %cst_74 = arith.constant dense<0.000000e+00> : vector<32xf32>
    %169 = vector.multi_reduction <add>, %166, %cst_74 [1] : vector<32x32xf32> to vector<32xf32>
    %170 = vector.shape_cast %169 : vector<32xf32> to vector<32x1xf32>
    %cst_75 = arith.constant 3.200000e+01 : f32
    %171 = vector.broadcast %cst_75 : f32 to vector<32x1xf32>
    %172 = arith.divf %170, %171 : vector<32x1xf32>
    %173 = vector.broadcast %172 : vector<32x1xf32> to vector<32x32xf32>
    %174 = arith.subf %166, %173 : vector<32x32xf32>
    %175 = arith.mulf %174, %174 : vector<32x32xf32>
    %cst_76 = arith.constant dense<0.000000e+00> : vector<32xf32>
    %176 = vector.multi_reduction <add>, %175, %cst_76 [1] : vector<32x32xf32> to vector<32xf32>
    %177 = vector.shape_cast %176 : vector<32xf32> to vector<32x1xf32>
    %cst_77 = arith.constant 3.200000e+01 : f32
    %178 = vector.broadcast %cst_77 : f32 to vector<32x1xf32>
    %179 = arith.divf %177, %178 : vector<32x1xf32>
    %180 = vector.broadcast %172 : vector<32x1xf32> to vector<32x32xf32>
    %181 = arith.subf %166, %180 : vector<32x32xf32>
    %cst_78 = arith.constant 9.99999996E-13 : f32
    %182 = vector.broadcast %cst_78 : f32 to vector<32x1xf32>
    %183 = arith.addf %179, %182 : vector<32x1xf32>
    %184 = math.rsqrt %183 : vector<32x1xf32>
    %185 = vector.broadcast %184 : vector<32x1xf32> to vector<32x32xf32>
    %186 = arith.mulf %181, %185 : vector<32x32xf32>
    %187 = vector.broadcast %167 : vector<1x32xf32> to vector<32x32xf32>
    %188 = arith.mulf %186, %187 : vector<32x32xf32>
    %189 = vector.broadcast %168 : vector<1x32xf32> to vector<32x32xf32>
    %190 = arith.addf %188, %189 : vector<32x32xf32>
    %c128 = arith.constant 128 : index
    %c0_79 = arith.constant 0 : index
    %191 = vector.load %arg5[%c128, %c0_79] : memref<680x32xf32, #tpu.memory_space<vmem>>, vector<32x32xf32>
    %c384 = arith.constant 384 : index
    %c0_80 = arith.constant 0 : index
    %192 = vector.load %arg5[%c384, %c0_80] : memref<680x32xf32, #tpu.memory_space<vmem>>, vector<32x32xf32>
    %cst_81 = arith.constant dense<0.000000e+00> : vector<32x32xf32>
    %193 = tpu.matmul %190, %191, %cst_81 {dimension_numbers = #tpu.dot_dimension_numbers<[1], [0], [0], [1], [0, 0, 1, 1], [], []>} : vector<32x32xf32>, vector<32x32xf32>, vector<32x32xf32> -> vector<32x32xf32>
    %c119 = arith.constant 119 : index
    %c0_82 = arith.constant 0 : index
    %194 = vector.load %arg6[%c119, %c0_82] : memref<136x128xf32, #tpu.memory_space<vmem>>, vector<1x32xf32>
    %195 = vector.broadcast %194 : vector<1x32xf32> to vector<32x32xf32>
    %196 = arith.addf %193, %195 : vector<32x32xf32>
    %cst_83 = arith.constant dense<0.000000e+00> : vector<32x32xf32>
    %197 = tpu.matmul %196, %190, %cst_83 {dimension_numbers = #tpu.dot_dimension_numbers<[1], [1], [0], [0], [0, 0, 1, 0], [], []>} : vector<32x32xf32>, vector<32x32xf32>, vector<32x32xf32> -> vector<32x32xf32>
    %198 = arith.addf %197, %31 : vector<32x32xf32>
    %cst_84 = arith.constant dense<0xFF800000> : vector<32xf32>
    %199 = vector.multi_reduction <maximumf>, %198, %cst_84 [1] : vector<32x32xf32> to vector<32xf32>
    %200 = vector.shape_cast %199 : vector<32xf32> to vector<32x1xf32>
    %201 = vector.broadcast %200 : vector<32x1xf32> to vector<32x32xf32>
    %202 = arith.subf %198, %201 : vector<32x32xf32>
    %203 = math.exp %202 : vector<32x32xf32>
    %cst_85 = arith.constant dense<0.000000e+00> : vector<32xf32>
    %204 = vector.multi_reduction <add>, %203, %cst_85 [1] : vector<32x32xf32> to vector<32xf32>
    %205 = vector.shape_cast %204 : vector<32xf32> to vector<32x1xf32>
    %206 = tpu.reciprocal %205 {approx = true} : vector<32x1xf32> -> vector<32x1xf32>
    %207 = vector.broadcast %206 : vector<32x1xf32> to vector<32x32xf32>
    %208 = arith.mulf %203, %207 : vector<32x32xf32>
    %cst_86 = arith.constant dense<0.000000e+00> : vector<32x32xf32>
    %209 = tpu.matmul %190, %192, %cst_86 {dimension_numbers = #tpu.dot_dimension_numbers<[1], [0], [0], [1], [0, 0, 1, 1], [], []>} : vector<32x32xf32>, vector<32x32xf32>, vector<32x32xf32> -> vector<32x32xf32>
    %cst_87 = arith.constant dense<0.000000e+00> : vector<32x32xf32>
    %210 = tpu.matmul %208, %209, %cst_87 {dimension_numbers = #tpu.dot_dimension_numbers<[1], [0], [0], [1], [0, 0, 1, 1], [], []>} : vector<32x32xf32>, vector<32x32xf32>, vector<32x32xf32> -> vector<32x32xf32>
    %c160 = arith.constant 160 : index
    %c0_88 = arith.constant 0 : index
    %211 = vector.load %arg5[%c160, %c0_88] : memref<680x32xf32, #tpu.memory_space<vmem>>, vector<32x32xf32>
    %c416 = arith.constant 416 : index
    %c0_89 = arith.constant 0 : index
    %212 = vector.load %arg5[%c416, %c0_89] : memref<680x32xf32, #tpu.memory_space<vmem>>, vector<32x32xf32>
    %cst_90 = arith.constant dense<0.000000e+00> : vector<32x32xf32>
    %213 = tpu.matmul %190, %211, %cst_90 {dimension_numbers = #tpu.dot_dimension_numbers<[1], [0], [0], [1], [0, 0, 1, 1], [], []>} : vector<32x32xf32>, vector<32x32xf32>, vector<32x32xf32> -> vector<32x32xf32>
    %c120 = arith.constant 120 : index
    %c0_91 = arith.constant 0 : index
    %214 = vector.load %arg6[%c120, %c0_91] : memref<136x128xf32, #tpu.memory_space<vmem>>, vector<1x32xf32>
    %215 = vector.broadcast %214 : vector<1x32xf32> to vector<32x32xf32>
    %216 = arith.addf %213, %215 : vector<32x32xf32>
    %cst_92 = arith.constant dense<0.000000e+00> : vector<32x32xf32>
    %217 = tpu.matmul %216, %190, %cst_92 {dimension_numbers = #tpu.dot_dimension_numbers<[1], [1], [0], [0], [0, 0, 1, 0], [], []>} : vector<32x32xf32>, vector<32x32xf32>, vector<32x32xf32> -> vector<32x32xf32>
    %218 = arith.addf %217, %31 : vector<32x32xf32>
    %cst_93 = arith.constant dense<0xFF800000> : vector<32xf32>
    %219 = vector.multi_reduction <maximumf>, %218, %cst_93 [1] : vector<32x32xf32> to vector<32xf32>
    %220 = vector.shape_cast %219 : vector<32xf32> to vector<32x1xf32>
    %221 = vector.broadcast %220 : vector<32x1xf32> to vector<32x32xf32>
    %222 = arith.subf %218, %221 : vector<32x32xf32>
    %223 = math.exp %222 : vector<32x32xf32>
    %cst_94 = arith.constant dense<0.000000e+00> : vector<32xf32>
    %224 = vector.multi_reduction <add>, %223, %cst_94 [1] : vector<32x32xf32> to vector<32xf32>
    %225 = vector.shape_cast %224 : vector<32xf32> to vector<32x1xf32>
    %226 = tpu.reciprocal %225 {approx = true} : vector<32x1xf32> -> vector<32x1xf32>
    %227 = vector.broadcast %226 : vector<32x1xf32> to vector<32x32xf32>
    %228 = arith.mulf %223, %227 : vector<32x32xf32>
    %cst_95 = arith.constant dense<0.000000e+00> : vector<32x32xf32>
    %229 = tpu.matmul %190, %212, %cst_95 {dimension_numbers = #tpu.dot_dimension_numbers<[1], [0], [0], [1], [0, 0, 1, 1], [], []>} : vector<32x32xf32>, vector<32x32xf32>, vector<32x32xf32> -> vector<32x32xf32>
    %cst_96 = arith.constant dense<0.000000e+00> : vector<32x32xf32>
    %230 = tpu.matmul %228, %229, %cst_96 {dimension_numbers = #tpu.dot_dimension_numbers<[1], [0], [0], [1], [0, 0, 1, 1], [], []>} : vector<32x32xf32>, vector<32x32xf32>, vector<32x32xf32> -> vector<32x32xf32>
    %231 = arith.addf %210, %230 : vector<32x32xf32>
    %c192 = arith.constant 192 : index
    %c0_97 = arith.constant 0 : index
    %232 = vector.load %arg5[%c192, %c0_97] : memref<680x32xf32, #tpu.memory_space<vmem>>, vector<32x32xf32>
    %c448 = arith.constant 448 : index
    %c0_98 = arith.constant 0 : index
    %233 = vector.load %arg5[%c448, %c0_98] : memref<680x32xf32, #tpu.memory_space<vmem>>, vector<32x32xf32>
    %cst_99 = arith.constant dense<0.000000e+00> : vector<32x32xf32>
    %234 = tpu.matmul %190, %232, %cst_99 {dimension_numbers = #tpu.dot_dimension_numbers<[1], [0], [0], [1], [0, 0, 1, 1], [], []>} : vector<32x32xf32>, vector<32x32xf32>, vector<32x32xf32> -> vector<32x32xf32>
    %c121 = arith.constant 121 : index
    %c0_100 = arith.constant 0 : index
    %235 = vector.load %arg6[%c121, %c0_100] : memref<136x128xf32, #tpu.memory_space<vmem>>, vector<1x32xf32>
    %236 = vector.broadcast %235 : vector<1x32xf32> to vector<32x32xf32>
    %237 = arith.addf %234, %236 : vector<32x32xf32>
    %cst_101 = arith.constant dense<0.000000e+00> : vector<32x32xf32>
    %238 = tpu.matmul %237, %190, %cst_101 {dimension_numbers = #tpu.dot_dimension_numbers<[1], [1], [0], [0], [0, 0, 1, 0], [], []>} : vector<32x32xf32>, vector<32x32xf32>, vector<32x32xf32> -> vector<32x32xf32>
    %239 = arith.addf %238, %31 : vector<32x32xf32>
    %cst_102 = arith.constant dense<0xFF800000> : vector<32xf32>
    %240 = vector.multi_reduction <maximumf>, %239, %cst_102 [1] : vector<32x32xf32> to vector<32xf32>
    %241 = vector.shape_cast %240 : vector<32xf32> to vector<32x1xf32>
    %242 = vector.broadcast %241 : vector<32x1xf32> to vector<32x32xf32>
    %243 = arith.subf %239, %242 : vector<32x32xf32>
    %244 = math.exp %243 : vector<32x32xf32>
    %cst_103 = arith.constant dense<0.000000e+00> : vector<32xf32>
    %245 = vector.multi_reduction <add>, %244, %cst_103 [1] : vector<32x32xf32> to vector<32xf32>
    %246 = vector.shape_cast %245 : vector<32xf32> to vector<32x1xf32>
    %247 = tpu.reciprocal %246 {approx = true} : vector<32x1xf32> -> vector<32x1xf32>
    %248 = vector.broadcast %247 : vector<32x1xf32> to vector<32x32xf32>
    %249 = arith.mulf %244, %248 : vector<32x32xf32>
    %cst_104 = arith.constant dense<0.000000e+00> : vector<32x32xf32>
    %250 = tpu.matmul %190, %233, %cst_104 {dimension_numbers = #tpu.dot_dimension_numbers<[1], [0], [0], [1], [0, 0, 1, 1], [], []>} : vector<32x32xf32>, vector<32x32xf32>, vector<32x32xf32> -> vector<32x32xf32>
    %cst_105 = arith.constant dense<0.000000e+00> : vector<32x32xf32>
    %251 = tpu.matmul %249, %250, %cst_105 {dimension_numbers = #tpu.dot_dimension_numbers<[1], [0], [0], [1], [0, 0, 1, 1], [], []>} : vector<32x32xf32>, vector<32x32xf32>, vector<32x32xf32> -> vector<32x32xf32>
    %252 = arith.addf %231, %251 : vector<32x32xf32>
    %c224 = arith.constant 224 : index
    %c0_106 = arith.constant 0 : index
    %253 = vector.load %arg5[%c224, %c0_106] : memref<680x32xf32, #tpu.memory_space<vmem>>, vector<32x32xf32>
    %c480 = arith.constant 480 : index
    %c0_107 = arith.constant 0 : index
    %254 = vector.load %arg5[%c480, %c0_107] : memref<680x32xf32, #tpu.memory_space<vmem>>, vector<32x32xf32>
    %cst_108 = arith.constant dense<0.000000e+00> : vector<32x32xf32>
    %255 = tpu.matmul %190, %253, %cst_108 {dimension_numbers = #tpu.dot_dimension_numbers<[1], [0], [0], [1], [0, 0, 1, 1], [], []>} : vector<32x32xf32>, vector<32x32xf32>, vector<32x32xf32> -> vector<32x32xf32>
    %c122 = arith.constant 122 : index
    %c0_109 = arith.constant 0 : index
    %256 = vector.load %arg6[%c122, %c0_109] : memref<136x128xf32, #tpu.memory_space<vmem>>, vector<1x32xf32>
    %257 = vector.broadcast %256 : vector<1x32xf32> to vector<32x32xf32>
    %258 = arith.addf %255, %257 : vector<32x32xf32>
    %cst_110 = arith.constant dense<0.000000e+00> : vector<32x32xf32>
    %259 = tpu.matmul %258, %190, %cst_110 {dimension_numbers = #tpu.dot_dimension_numbers<[1], [1], [0], [0], [0, 0, 1, 0], [], []>} : vector<32x32xf32>, vector<32x32xf32>, vector<32x32xf32> -> vector<32x32xf32>
    %260 = arith.addf %259, %31 : vector<32x32xf32>
    %cst_111 = arith.constant dense<0xFF800000> : vector<32xf32>
    %261 = vector.multi_reduction <maximumf>, %260, %cst_111 [1] : vector<32x32xf32> to vector<32xf32>
    %262 = vector.shape_cast %261 : vector<32xf32> to vector<32x1xf32>
    %263 = vector.broadcast %262 : vector<32x1xf32> to vector<32x32xf32>
    %264 = arith.subf %260, %263 : vector<32x32xf32>
    %265 = math.exp %264 : vector<32x32xf32>
    %cst_112 = arith.constant dense<0.000000e+00> : vector<32xf32>
    %266 = vector.multi_reduction <add>, %265, %cst_112 [1] : vector<32x32xf32> to vector<32xf32>
    %267 = vector.shape_cast %266 : vector<32xf32> to vector<32x1xf32>
    %268 = tpu.reciprocal %267 {approx = true} : vector<32x1xf32> -> vector<32x1xf32>
    %269 = vector.broadcast %268 : vector<32x1xf32> to vector<32x32xf32>
    %270 = arith.mulf %265, %269 : vector<32x32xf32>
    %cst_113 = arith.constant dense<0.000000e+00> : vector<32x32xf32>
    %271 = tpu.matmul %190, %254, %cst_113 {dimension_numbers = #tpu.dot_dimension_numbers<[1], [0], [0], [1], [0, 0, 1, 1], [], []>} : vector<32x32xf32>, vector<32x32xf32>, vector<32x32xf32> -> vector<32x32xf32>
    %cst_114 = arith.constant dense<0.000000e+00> : vector<32x32xf32>
    %272 = tpu.matmul %270, %271, %cst_114 {dimension_numbers = #tpu.dot_dimension_numbers<[1], [0], [0], [1], [0, 0, 1, 1], [], []>} : vector<32x32xf32>, vector<32x32xf32>, vector<32x32xf32> -> vector<32x32xf32>
    %273 = arith.addf %252, %272 : vector<32x32xf32>
    %c123 = arith.constant 123 : index
    %c0_115 = arith.constant 0 : index
    %274 = vector.load %arg6[%c123, %c0_115] : memref<136x128xf32, #tpu.memory_space<vmem>>, vector<1x32xf32>
    %275 = vector.broadcast %274 : vector<1x32xf32> to vector<32x32xf32>
    %276 = arith.addf %273, %275 : vector<32x32xf32>
    %277 = arith.addf %276, %190 : vector<32x32xf32>
    %c124 = arith.constant 124 : index
    %c0_116 = arith.constant 0 : index
    %278 = vector.load %arg6[%c124, %c0_116] : memref<136x128xf32, #tpu.memory_space<vmem>>, vector<1x32xf32>
    %c125 = arith.constant 125 : index
    %c0_117 = arith.constant 0 : index
    %279 = vector.load %arg6[%c125, %c0_117] : memref<136x128xf32, #tpu.memory_space<vmem>>, vector<1x32xf32>
    %cst_118 = arith.constant dense<0.000000e+00> : vector<32xf32>
    %280 = vector.multi_reduction <add>, %277, %cst_118 [1] : vector<32x32xf32> to vector<32xf32>
    %281 = vector.shape_cast %280 : vector<32xf32> to vector<32x1xf32>
    %cst_119 = arith.constant 3.200000e+01 : f32
    %282 = vector.broadcast %cst_119 : f32 to vector<32x1xf32>
    %283 = arith.divf %281, %282 : vector<32x1xf32>
    %284 = vector.broadcast %283 : vector<32x1xf32> to vector<32x32xf32>
    %285 = arith.subf %277, %284 : vector<32x32xf32>
    %286 = arith.mulf %285, %285 : vector<32x32xf32>
    %cst_120 = arith.constant dense<0.000000e+00> : vector<32xf32>
    %287 = vector.multi_reduction <add>, %286, %cst_120 [1] : vector<32x32xf32> to vector<32xf32>
    %288 = vector.shape_cast %287 : vector<32xf32> to vector<32x1xf32>
    %cst_121 = arith.constant 3.200000e+01 : f32
    %289 = vector.broadcast %cst_121 : f32 to vector<32x1xf32>
    %290 = arith.divf %288, %289 : vector<32x1xf32>
    %291 = vector.broadcast %283 : vector<32x1xf32> to vector<32x32xf32>
    %292 = arith.subf %277, %291 : vector<32x32xf32>
    %cst_122 = arith.constant 9.99999996E-13 : f32
    %293 = vector.broadcast %cst_122 : f32 to vector<32x1xf32>
    %294 = arith.addf %290, %293 : vector<32x1xf32>
    %295 = math.rsqrt %294 : vector<32x1xf32>
    %296 = vector.broadcast %295 : vector<32x1xf32> to vector<32x32xf32>
    %297 = arith.mulf %292, %296 : vector<32x32xf32>
    %298 = vector.broadcast %278 : vector<1x32xf32> to vector<32x32xf32>
    %299 = arith.mulf %297, %298 : vector<32x32xf32>
    %300 = vector.broadcast %279 : vector<1x32xf32> to vector<32x32xf32>
    %301 = arith.addf %299, %300 : vector<32x32xf32>
    %c32_123 = arith.constant 32 : index
    %c0_124 = arith.constant 0 : index
    %302 = vector.load %arg6[%c32_123, %c0_124] : memref<136x128xf32, #tpu.memory_space<vmem>>, vector<32x64xf32>
    %cst_125 = arith.constant dense<0.000000e+00> : vector<32x64xf32>
    %303 = tpu.matmul %301, %302, %cst_125 {dimension_numbers = #tpu.dot_dimension_numbers<[1], [0], [0], [1], [0, 0, 1, 1], [], []>} : vector<32x32xf32>, vector<32x64xf32>, vector<32x64xf32> -> vector<32x64xf32>
    %c126 = arith.constant 126 : index
    %c0_126 = arith.constant 0 : index
    %304 = vector.load %arg6[%c126, %c0_126] : memref<136x128xf32, #tpu.memory_space<vmem>>, vector<1x64xf32>
    %305 = vector.broadcast %304 : vector<1x64xf32> to vector<32x64xf32>
    %306 = arith.addf %303, %305 : vector<32x64xf32>
    %cst_127 = arith.constant 5.000000e-01 : f32
    %307 = vector.broadcast %cst_127 : f32 to vector<32x64xf32>
    %308 = arith.mulf %307, %306 : vector<32x64xf32>
    %cst_128 = arith.constant 4.471500e-02 : f32
    %309 = vector.broadcast %cst_128 : f32 to vector<32x64xf32>
    %310 = arith.mulf %309, %306 : vector<32x64xf32>
    %311 = arith.mulf %310, %306 : vector<32x64xf32>
    %312 = arith.mulf %311, %306 : vector<32x64xf32>
    %313 = arith.addf %306, %312 : vector<32x64xf32>
    %cst_129 = arith.constant 0.797884583 : f32
    %314 = vector.broadcast %cst_129 : f32 to vector<32x64xf32>
    %315 = arith.mulf %314, %313 : vector<32x64xf32>
    %316 = math.tanh %315 : vector<32x64xf32>
    %cst_130 = arith.constant 1.000000e+00 : f32
    %317 = vector.broadcast %cst_130 : f32 to vector<32x64xf32>
    %318 = arith.addf %317, %316 : vector<32x64xf32>
    %319 = arith.mulf %308, %318 : vector<32x64xf32>
    %c576 = arith.constant 576 : index
    %c0_131 = arith.constant 0 : index
    %320 = vector.load %arg5[%c576, %c0_131] : memref<680x32xf32, #tpu.memory_space<vmem>>, vector<64x32xf32>
    %cst_132 = arith.constant dense<0.000000e+00> : vector<32x32xf32>
    %321 = tpu.matmul %319, %320, %cst_132 {dimension_numbers = #tpu.dot_dimension_numbers<[1], [0], [0], [1], [0, 0, 1, 1], [], []>} : vector<32x64xf32>, vector<64x32xf32>, vector<32x32xf32> -> vector<32x32xf32>
    %c127 = arith.constant 127 : index
    %c0_133 = arith.constant 0 : index
    %322 = vector.load %arg6[%c127, %c0_133] : memref<136x128xf32, #tpu.memory_space<vmem>>, vector<1x32xf32>
    %323 = vector.broadcast %322 : vector<1x32xf32> to vector<32x32xf32>
    %324 = arith.addf %321, %323 : vector<32x32xf32>
    %325 = arith.addf %324, %301 : vector<32x32xf32>
    %c128_134 = arith.constant 128 : index
    %c0_135 = arith.constant 0 : index
    %326 = vector.load %arg6[%c128_134, %c0_135] : memref<136x128xf32, #tpu.memory_space<vmem>>, vector<1x32xf32>
    %c129 = arith.constant 129 : index
    %c0_136 = arith.constant 0 : index
    %327 = vector.load %arg6[%c129, %c0_136] : memref<136x128xf32, #tpu.memory_space<vmem>>, vector<1x32xf32>
    %cst_137 = arith.constant dense<0.000000e+00> : vector<32xf32>
    %328 = vector.multi_reduction <add>, %325, %cst_137 [1] : vector<32x32xf32> to vector<32xf32>
    %329 = vector.shape_cast %328 : vector<32xf32> to vector<32x1xf32>
    %cst_138 = arith.constant 3.200000e+01 : f32
    %330 = vector.broadcast %cst_138 : f32 to vector<32x1xf32>
    %331 = arith.divf %329, %330 : vector<32x1xf32>
    %332 = vector.broadcast %331 : vector<32x1xf32> to vector<32x32xf32>
    %333 = arith.subf %325, %332 : vector<32x32xf32>
    %334 = arith.mulf %333, %333 : vector<32x32xf32>
    %cst_139 = arith.constant dense<0.000000e+00> : vector<32xf32>
    %335 = vector.multi_reduction <add>, %334, %cst_139 [1] : vector<32x32xf32> to vector<32xf32>
    %336 = vector.shape_cast %335 : vector<32xf32> to vector<32x1xf32>
    %cst_140 = arith.constant 3.200000e+01 : f32
    %337 = vector.broadcast %cst_140 : f32 to vector<32x1xf32>
    %338 = arith.divf %336, %337 : vector<32x1xf32>
    %339 = vector.broadcast %331 : vector<32x1xf32> to vector<32x32xf32>
    %340 = arith.subf %325, %339 : vector<32x32xf32>
    %cst_141 = arith.constant 9.99999996E-13 : f32
    %341 = vector.broadcast %cst_141 : f32 to vector<32x1xf32>
    %342 = arith.addf %338, %341 : vector<32x1xf32>
    %343 = math.rsqrt %342 : vector<32x1xf32>
    %344 = vector.broadcast %343 : vector<32x1xf32> to vector<32x32xf32>
    %345 = arith.mulf %340, %344 : vector<32x32xf32>
    %346 = vector.broadcast %326 : vector<1x32xf32> to vector<32x32xf32>
    %347 = arith.mulf %345, %346 : vector<32x32xf32>
    %348 = vector.broadcast %327 : vector<1x32xf32> to vector<32x32xf32>
    %349 = arith.addf %347, %348 : vector<32x32xf32>
    %c96_142 = arith.constant 96 : index
    %c0_143 = arith.constant 0 : index
    %350 = vector.load %arg6[%c96_142, %c0_143] : memref<136x128xf32, #tpu.memory_space<vmem>>, vector<8x32xf32>
    %cst_144 = arith.constant dense<0.000000e+00> : vector<8x32xf32>
    %351 = tpu.matmul %350, %349, %cst_144 {dimension_numbers = #tpu.dot_dimension_numbers<[1], [0], [0], [1], [0, 0, 1, 1], [], []>} : vector<8x32xf32>, vector<32x32xf32>, vector<8x32xf32> -> vector<8x32xf32>
    %c640 = arith.constant 640 : index
    %c0_145 = arith.constant 0 : index
    %352 = vector.load %arg5[%c640, %c0_145] : memref<680x32xf32, #tpu.memory_space<vmem>>, vector<32x32xf32>
    %cst_146 = arith.constant dense<0.000000e+00> : vector<8x32xf32>
    %353 = tpu.matmul %351, %352, %cst_146 {dimension_numbers = #tpu.dot_dimension_numbers<[1], [0], [0], [1], [0, 0, 1, 1], [], []>} : vector<8x32xf32>, vector<32x32xf32>, vector<8x32xf32> -> vector<8x32xf32>
    %c106 = arith.constant 106 : index
    %c0_147 = arith.constant 0 : index
    %354 = vector.load %arg6[%c106, %c0_147] : memref<136x128xf32, #tpu.memory_space<vmem>>, vector<1x32xf32>
    %355 = vector.broadcast %354 : vector<1x32xf32> to vector<8x32xf32>
    %356 = arith.addf %353, %355 : vector<8x32xf32>
    %357 = math.tanh %356 : vector<8x32xf32>
    %c64_148 = arith.constant 64 : index
    %c0_149 = arith.constant 0 : index
    %358 = vector.load %arg6[%c64_148, %c0_149] : memref<136x128xf32, #tpu.memory_space<vmem>>, vector<32x128xf32>
    %cst_150 = arith.constant dense<0.000000e+00> : vector<8x128xf32>
    %359 = tpu.matmul %357, %358, %cst_150 {dimension_numbers = #tpu.dot_dimension_numbers<[1], [0], [0], [1], [0, 0, 1, 1], [], []>} : vector<8x32xf32>, vector<32x128xf32>, vector<8x128xf32> -> vector<8x128xf32>
    %c107 = arith.constant 107 : index
    %c0_151 = arith.constant 0 : index
    %360 = vector.load %arg6[%c107, %c0_151] : memref<136x128xf32, #tpu.memory_space<vmem>>, vector<1x128xf32>
    %361 = vector.broadcast %360 : vector<1x128xf32> to vector<8x128xf32>
    %362 = arith.addf %359, %361 : vector<8x128xf32>
    %c0_152 = arith.constant 0 : index
    %c0_153 = arith.constant 0 : index
    %363 = vector.load %arg7[%c0_152, %c0_153] : memref<8x128xf32, #tpu.memory_space<vmem>>, vector<8x128xf32>
    tpu.vector_store %arg7[%c0_152, %c0_153], %362 {strides = array<i32>} : memref<8x128xf32, #tpu.memory_space<vmem>>, vector<8x128xf32>,
    return
  }
  func.func @transform_0(%arg0: i32) -> (i32, i32) {
    %c0_i32 = arith.constant 0 : i32
    %c0_i32_0 = arith.constant 0 : i32
    %c0_i32_1 = arith.constant 0 : i32
    return %c0_i32, %c0_i32_0 : i32, i32
  }
  func.func @transform_1(%arg0: i32) -> (i32, i32) {
    %c0_i32 = arith.constant 0 : i32
    %c0_i32_0 = arith.constant 0 : i32
    %c0_i32_1 = arith.constant 0 : i32
    return %c0_i32, %c0_i32_0 : i32, i32
  }
  func.func @transform_2(%arg0: i32) -> (i32, i32) {
    %c0_i32 = arith.constant 0 : i32
    %c0_i32_0 = arith.constant 0 : i32
    %c0_i32_1 = arith.constant 0 : i32
    return %c0_i32, %c0_i32_0 : i32, i32
  }
  func.func @transform_3(%arg0: i32) -> (i32, i32) {
    %c0_i32 = arith.constant 0 : i32
    %c0_i32_0 = arith.constant 0 : i32
    %c0_i32_1 = arith.constant 0 : i32
    return %c0_i32, %c0_i32_0 : i32, i32
  }
  func.func @transform_4(%arg0: i32) -> (i32, i32) {
    %c0_i32 = arith.constant 0 : i32
    %c0_i32_0 = arith.constant 0 : i32
    %c0_i32_1 = arith.constant 0 : i32
    return %c0_i32, %c0_i32_0 : i32, i32
  }
  func.func @transform_5(%arg0: i32) -> (i32, i32) {
    %c0_i32 = arith.constant 0 : i32
    %c0_i32_0 = arith.constant 0 : i32
    %c0_i32_1 = arith.constant 0 : i32
    return %c0_i32, %c0_i32_0 : i32, i32
  }
  func.func @transform_6(%arg0: i32) -> (i32, i32) {
    %c0_i32 = arith.constant 0 : i32
    %c0_i32_0 = arith.constant 0 : i32
    %c0_i32_1 = arith.constant 0 : i32
    return %c0_i32, %c0_i32_0 : i32, i32
  }
}

</mosaic_0001>

<llo_original>
// kernel: eq.8
$region0: #{eq.8}
  %s0 = inlined_call_operand.vmem [shape: s32[2,16], index: 0, kind: input, shape index: {}]
  %s1 = inlined_call_operand.vmem [shape: s32[32], index: 1, kind: output, shape index: {}]
  $region1: #{eq.8} parent=0
    #allocation0 [shape = 'u8[4096]{0}', space=vmem, size = 0x1000, scoped, tag = 'scoped mem for output reshape']
    #allocation1 [shape = 'u8[4096]{0}', space=vmem, size = 0x1000, scoped, tag = 'scoped mem for input reshape']
    %s3 = sshllo.u32 0, 2
    %v4 = vld [vmem:[%s0] sm:%s3]
    %5 = vst [vmem:[#allocation1] sm:%s3] %v4
    %v6 = vld [vmem:[#allocation1] sm:$0x1]
    %vm7 = vcmask 130048
    %8 = vst.msk [vmem:[#allocation0] sm:$0x1] %vm7, %v6
    %s9 = scalar_lea.vmem [#allocation1], 1
    %v10 = vld [vmem:[%s9] sm:$0x1]
    %11 = vrot.lane.b32.xlu0 %v10, 16
    %v12 = vpop.permute.xlu0 %11
    %vm13 = vcmask 261248
    %14 = vst.msk [vmem:[#allocation0] sm:$0x1] %vm13, %v12
    %s16 = sshllo.u32 0, 1
    %v18 = vld [vmem:[#allocation0] sm:%s16]
    %s19 = sshllo.u32 0, 1
    %20 = vst [vmem:[%s1] sm:%s19] %v18

// kernel: forward.1
$region0: #{forward.1}
  #allocation0 [shape = 'u32[]', space=smem, size = 0x4, offset = 0x4, fixed_abs, tag = 'smem constant byte address 0x4 - core index']
  #allocation1 [shape = 'u32[144,128]{1,0:T(1,128)}', space=vmem, size = 0x12000, scoped, tag = 'internal scratch']
  %s0 = inlined_call_operand.vmem [shape: f32[4,512], index: 0, kind: input, shape index: {}]
  %s1 = inlined_call_operand.vmem [shape: f32[32,512], index: 1, kind: input, shape index: {}]
  %s2 = inlined_call_operand.vmem [shape: f32[32,32], index: 2, kind: input, shape index: {}]
  %s3 = inlined_call_operand.vmem [shape: f32[32,32], index: 3, kind: input, shape index: {}]
  %s4 = inlined_call_operand.vmem [shape: f32[680,32], index: 4, kind: input, shape index: {}]
  %s5 = inlined_call_operand.vmem [shape: f32[136,128], index: 5, kind: input, shape index: {}]
  %s6 = inlined_call_operand.vmem [shape: f32[8,128], index: 6, kind: output, shape index: {}]
  %s7 = sld [smem:[#allocation0]]
  $region34: #{forward.1} parent=0
    _
  %s9 = ssub.s32 1, %s7
  %s10 = scalar_select 0, %s9, %s7
  // Predicated region
  $region2: #{forward.1} parent=0 // pred_check
    _
  $region3: #{forward.1} parent=0 // pred_check_branch
    %12 = sbr.rel (0) target = $region5
  $region4: #{forward.1} parent=0 // pred_region
    _
  $region5: #{forward.1} parent=0 // pred_fallthru
    _
  // Predicated region
  $region6: #{forward.1} parent=0 // pred_check
    _
  $region7: #{forward.1} parent=0 // pred_check_branch
    %14 = sbr.rel (0) target = $region9
  $region8: #{forward.1} parent=0 // pred_region
    _
  $region9: #{forward.1} parent=0 // pred_fallthru
    _
  // Predicated region
  $region10: #{forward.1} parent=0 // pred_check
    _
  $region11: #{forward.1} parent=0 // pred_check_branch
    %16 = sbr.rel (0) target = $region13
  $region12: #{forward.1} parent=0 // pred_region
    _
  $region13: #{forward.1} parent=0 // pred_fallthru
    _
  // Predicated region
  $region14: #{forward.1} parent=0 // pred_check
    _
  $region15: #{forward.1} parent=0 // pred_check_branch
    %18 = sbr.rel (0) target = $region17
  $region16: #{forward.1} parent=0 // pred_region
    _
  $region17: #{forward.1} parent=0 // pred_fallthru
    _
  // Predicated region
  $region18: #{forward.1} parent=0 // pred_check
    _
  $region19: #{forward.1} parent=0 // pred_check_branch
    %20 = sbr.rel (0) target = $region21
  $region20: #{forward.1} parent=0 // pred_region
    _
  $region21: #{forward.1} parent=0 // pred_fallthru
    _
  // Predicated region
  $region22: #{forward.1} parent=0 // pred_check
    _
  $region23: #{forward.1} parent=0 // pred_check_branch
    %22 = sbr.rel (0) target = $region25
  $region24: #{forward.1} parent=0 // pred_region
    _
  $region25: #{forward.1} parent=0 // pred_fallthru
    _
  %v23 = vld [vmem:[%s1] sm:$0xff]
  %v24 = vld [vmem:[%s1 + $0x8] sm:$0xff]
  %v25 = vld [vmem:[%s1 + $0x10] sm:$0xff]
  %v26 = vld [vmem:[%s1 + $0x18] sm:$0xff]
  %v27 = vld [vmem:[%s1 + $0x20] sm:$0xff]
  %v28 = vld [vmem:[%s1 + $0x28] sm:$0xff]
  %v29 = vld [vmem:[%s1 + $0x30] sm:$0xff]
  %v30 = vld [vmem:[%s1 + $0x38] sm:$0xff]
  %v31 = vld [vmem:[%s1 + $0x40] sm:$0xff]
  %v32 = vld [vmem:[%s1 + $0x48] sm:$0xff]
  %v33 = vld [vmem:[%s1 + $0x50] sm:$0xff]
  %v34 = vld [vmem:[%s1 + $0x58] sm:$0xff]
  %v35 = vld [vmem:[%s1 + $0x60] sm:$0xff]
  %v36 = vld [vmem:[%s1 + $0x68] sm:$0xff]
  %v37 = vld [vmem:[%s1 + $0x70] sm:$0xff]
  %v38 = vld [vmem:[%s1 + $0x78] sm:$0xff]
  %v39 = vld [vmem:[%s0] sm:$0xff]
  %v40 = vld [vmem:[%s0 + $0x8] sm:$0xff]
  %v43 = vcombine.high %v39, %v39
  %v44 = vcombine.high %v40, %v40
  %47 = vmatprep.subr.mxu0 %v43
  %48 = vmatpush1.xpose.msra.mxu0 %v39
  %49 = vmatprep.subr.mxu0 0.0
  %50 = vmatpush1.xpose.msra.mxu0 0.0
  %51 = vmatprep.subr.mxu0 0.0
  %52 = vmatpush1.xpose.msra.mxu0 0.0
  %53 = vmatprep.subr.mxu0 0.0
  %54 = vmatpush1.xpose.msra.mxu0 0.0
  %55 = vmatprep.subr.mxu0 0.0
  %56 = vmatpush1.xpose.msra.mxu0 0.0
  %57 = vmatprep.subr.mxu0 0.0
  %58 = vmatpush1.xpose.msra.mxu0 0.0
  %59 = vmatprep.subr.mxu0 0.0
  %60 = vmatpush1.xpose.msra.mxu0 0.0
  %61 = vmatprep.subr.mxu0 0.0
  %62 = vmatpush1.xpose.msra.mxu0 0.0
  %63 = vmatprep.subr.mxu0 0.0
  %64 = vmatpush1.xpose.msra.mxu0 0.0
  %65 = vmatprep.subr.mxu0 0.0
  %66 = vmatpush1.xpose.msra.mxu0 0.0
  %67 = vmatprep.subr.mxu0 0.0
  %68 = vmatpush1.xpose.msra.mxu0 0.0
  %69 = vmatprep.subr.mxu0 0.0
  %70 = vmatpush1.xpose.msra.mxu0 0.0
  %71 = vmatprep.subr.mxu0 0.0
  %72 = vmatpush1.xpose.msra.mxu0 0.0
  %73 = vmatprep.subr.mxu0 0.0
  %74 = vmatpush1.xpose.msra.mxu0 0.0
  %75 = vmatprep.subr.mxu0 0.0
  %76 = vmatpush1.xpose.msra.mxu0 0.0
  %77 = vmatprep.subr.mxu0 0.0
  %78 = vmatpush1.xpose.msra.mxu0 0.0
  %79 = vmatprep.subr.mxu0 0.0
  %80 = vmatpush1.xpose.msra.mxu0 0.0
  %81 = vmatprep.subr.mxu0 0.0
  %82 = vmatpush1.xpose.msra.mxu0 0.0
  %83 = vmatprep.subr.mxu0 0.0
  %84 = vmatpush1.xpose.msra.mxu0 0.0
  %85 = vmatprep.subr.mxu0 0.0
  %86 = vmatpush1.xpose.msra.mxu0 0.0
  %87 = vmatprep.subr.mxu0 0.0
  %88 = vmatpush1.xpose.msra.mxu0 0.0
  %89 = vmatprep.subr.mxu0 0.0
  %90 = vmatpush1.xpose.msra.mxu0 0.0
  %91 = vmatprep.subr.mxu0 0.0
  %92 = vmatpush1.xpose.msra.mxu0 0.0
  %93 = vmatprep.subr.mxu0 0.0
  %94 = vmatpush1.xpose.msra.mxu0 0.0
  %95 = vmatprep.subr.mxu0 0.0
  %96 = vmatpush1.xpose.msra.mxu0 0.0
  %97 = vmatprep.subr.mxu0 0.0
  %98 = vmatpush1.xpose.msra.mxu0 0.0
  %99 = vmatprep.subr.mxu0 0.0
  %100 = vmatpush1.xpose.msra.mxu0 0.0
  %101 = vmatprep.subr.mxu0 0.0
  %102 = vmatpush1.xpose.msra.mxu0 0.0
  %103 = vmatprep.subr.mxu0 0.0
  %104 = vmatpush1.xpose.msra.mxu0 0.0
  %105 = vmatprep.subr.mxu0 0.0
  %106 = vmatpush1.xpose.msra.mxu0 0.0
  %107 = vmatprep.subr.mxu0 0.0
  %108 = vmatpush1.xpose.msra.mxu0 0.0
  %109 = vmatprep.subr.mxu0 0.0
  %110 = vmatpush1.xpose.msra.mxu0 0.0
  %111 = vmatprep.mubr.f32.mxu0 %v24
  %112 = vmatmul.mubr.f32.gmra.mrb[0].mxu0 %v23
  %v113 = vpop.f32.mrb[0].mxu0
  %v114 = vadd.f32 0.0, %v113
  %v115 = vpop.f32.mrb[0].mxu0
  %116 = vmatprep.mubr.f32.mxu0 %v28
  %117 = vmatmul.mubr.f32.gmra.mrb[0].mxu0 %v27
  %v118 = vpop.f32.mrb[0].mxu0
  %v119 = vadd.f32 0.0, %v118
  %v120 = vpop.f32.mrb[0].mxu0
  %121 = vmatprep.mubr.f32.mxu0 %v32
  %122 = vmatmul.mubr.f32.gmra.mrb[0].mxu0 %v31
  %v123 = vpop.f32.mrb[0].mxu0
  %v124 = vadd.f32 0.0, %v123
  %v125 = vpop.f32.mrb[0].mxu0
  %126 = vmatprep.mubr.f32.mxu0 %v36
  %127 = vmatmul.mubr.f32.gmra.mrb[0].mxu0 %v35
  %v128 = vpop.f32.mrb[0].mxu0
  %v129 = vadd.f32 0.0, %v128
  %v130 = vpop.f32.mrb[0].mxu0
  %131 = vdwg.mxu0
  %132 = vmatprep.subr.mxu0 %v44
  %133 = vmatpush1.xpose.msra.mxu0 %v40
  %134 = vmatprep.subr.mxu0 0.0
  %135 = vmatpush1.xpose.msra.mxu0 0.0
  %136 = vmatprep.subr.mxu0 0.0
  %137 = vmatpush1.xpose.msra.mxu0 0.0
  %138 = vmatprep.subr.mxu0 0.0
  %139 = vmatpush1.xpose.msra.mxu0 0.0
  %140 = vmatprep.subr.mxu0 0.0
  %141 = vmatpush1.xpose.msra.mxu0 0.0
  %142 = vmatprep.subr.mxu0 0.0
  %143 = vmatpush1.xpose.msra.mxu0 0.0
  %144 = vmatprep.subr.mxu0 0.0
  %145 = vmatpush1.xpose.msra.mxu0 0.0
  %146 = vmatprep.subr.mxu0 0.0
  %147 = vmatpush1.xpose.msra.mxu0 0.0
  %148 = vmatprep.subr.mxu0 0.0
  %149 = vmatpush1.xpose.msra.mxu0 0.0
  %150 = vmatprep.subr.mxu0 0.0
  %151 = vmatpush1.xpose.msra.mxu0 0.0
  %152 = vmatprep.subr.mxu0 0.0
  %153 = vmatpush1.xpose.msra.mxu0 0.0
  %154 = vmatprep.subr.mxu0 0.0
  %155 = vmatpush1.xpose.msra.mxu0 0.0
  %156 = vmatprep.subr.mxu0 0.0
  %157 = vmatpush1.xpose.msra.mxu0 0.0
  %158 = vmatprep.subr.mxu0 0.0
  %159 = vmatpush1.xpose.msra.mxu0 0.0
  %160 = vmatprep.subr.mxu0 0.0
  %161 = vmatpush1.xpose.msra.mxu0 0.0
  %162 = vmatprep.subr.mxu0 0.0
  %163 = vmatpush1.xpose.msra.mxu0 0.0
  %164 = vmatprep.subr.mxu0 0.0
  %165 = vmatpush1.xpose.msra.mxu0 0.0
  %166 = vmatprep.subr.mxu0 0.0
  %167 = vmatpush1.xpose.msra.mxu0 0.0
  %168 = vmatprep.subr.mxu0 0.0
  %169 = vmatpush1.xpose.msra.mxu0 0.0
  %170 = vmatprep.subr.mxu0 0.0
  %171 = vmatpush1.xpose.msra.mxu0 0.0
  %172 = vmatprep.subr.mxu0 0.0
  %173 = vmatpush1.xpose.msra.mxu0 0.0
  %174 = vmatprep.subr.mxu0 0.0
  %175 = vmatpush1.xpose.msra.mxu0 0.0
  %176 = vmatprep.subr.mxu0 0.0
  %177 = vmatpush1.xpose.msra.mxu0 0.0
  %178 = vmatprep.subr.mxu0 0.0
  %179 = vmatpush1.xpose.msra.mxu0 0.0
  %180 = vmatprep.subr.mxu0 0.0
  %181 = vmatpush1.xpose.msra.mxu0 0.0
  %182 = vmatprep.subr.mxu0 0.0
  %183 = vmatpush1.xpose.msra.mxu0 0.0
  %184 = vmatprep.subr.mxu0 0.0
  %185 = vmatpush1.xpose.msra.mxu0 0.0
  %186 = vmatprep.subr.mxu0 0.0
  %187 = vmatpush1.xpose.msra.mxu0 0.0
  %188 = vmatprep.subr.mxu0 0.0
  %189 = vmatpush1.xpose.msra.mxu0 0.0
  %190 = vmatprep.subr.mxu0 0.0
  %191 = vmatpush1.xpose.msra.mxu0 0.0
  %192 = vmatprep.subr.mxu0 0.0
  %193 = vmatpush1.xpose.msra.mxu0 0.0
  %194 = vmatprep.subr.mxu0 0.0
  %195 = vmatpush1.xpose.msra.mxu0 0.0
  %196 = vmatprep.mubr.f32.mxu0 %v26
  %197 = vmatmul.mubr.f32.gmra.mrb[0].mxu0 %v25
  %v198 = vpop.f32.mrb[0].mxu0
  %v199 = vadd.f32 %v114, %v198
  %v200 = vpop.f32.mrb[0].mxu0
  %201 = vmatprep.mubr.f32.mxu0 %v30
  %202 = vmatmul.mubr.f32.gmra.mrb[0].mxu0 %v29
  %v203 = vpop.f32.mrb[0].mxu0
  %v204 = vadd.f32 %v119, %v203
  %v205 = vpop.f32.mrb[0].mxu0
  %206 = vmatprep.mubr.f32.mxu0 %v34
  %207 = vmatmul.mubr.f32.gmra.mrb[0].mxu0 %v33
  %v208 = vpop.f32.mrb[0].mxu0
  %v209 = vadd.f32 %v124, %v208
  %v210 = vpop.f32.mrb[0].mxu0
  %211 = vmatprep.mubr.f32.mxu0 %v38
  %212 = vmatmul.mubr.f32.gmra.mrb[0].mxu0 %v37
  %v213 = vpop.f32.mrb[0].mxu0
  %v214 = vadd.f32 %v129, %v213
  %v215 = vpop.f32.mrb[0].mxu0
  %216 = vdwg.mxu0
  %v217 = vld [vmem:[%s4 + $0x2a0] sm:$0xf]
  %vm218 = vcmask 31744
  %v220 = vsel %vm218, %v199, 0
  %v223 = vsel %vm218, %v204, 0
  %v226 = vsel %vm218, %v209, 0
  %v229 = vsel %vm218, %v214, 0
  %vm231 = vcmask 1043456
  %v233 = vsel %vm231, %v217, 0
  %235 = vmatprep.subr.mxu0 0.0
  %236 = vmatpush1.msra.mxu0 %v233
  %237 = vmatprep.subr.mxu0 0.0
  %238 = vmatpush1.msra.mxu0 0.0
  %239 = vmatprep.subr.mxu0 0.0
  %240 = vmatpush1.msra.mxu0 0.0
  %241 = vmatprep.subr.mxu0 0.0
  %242 = vmatpush1.msra.mxu0 0.0
  %243 = vmatprep.subr.mxu0 0.0
  %244 = vmatpush1.msra.mxu0 0.0
  %245 = vmatprep.subr.mxu0 0.0
  %246 = vmatpush1.msra.mxu0 0.0
  %247 = vmatprep.subr.mxu0 0.0
  %248 = vmatpush1.msra.mxu0 0.0
  %249 = vmatprep.subr.mxu0 0.0
  %250 = vmatpush1.msra.mxu0 0.0
  %251 = vmatprep.subr.mxu0 0.0
  %252 = vmatpush1.msra.mxu0 0.0
  %253 = vmatprep.subr.mxu0 0.0
  %254 = vmatpush1.msra.mxu0 0.0
  %255 = vmatprep.subr.mxu0 0.0
  %256 = vmatpush1.msra.mxu0 0.0
  %257 = vmatprep.subr.mxu0 0.0
  %258 = vmatpush1.msra.mxu0 0.0
  %259 = vmatprep.subr.mxu0 0.0
  %260 = vmatpush1.msra.mxu0 0.0
  %261 = vmatprep.subr.mxu0 0.0
  %262 = vmatpush1.msra.mxu0 0.0
  %263 = vmatprep.subr.mxu0 0.0
  %264 = vmatpush1.msra.mxu0 0.0
  %265 = vmatprep.subr.mxu0 0.0
  %266 = vmatpush1.msra.mxu0 0.0
  %267 = vmatprep.subr.mxu0 0.0
  %268 = vmatpush1.msra.mxu0 0.0
  %269 = vmatprep.subr.mxu0 0.0
  %270 = vmatpush1.msra.mxu0 0.0
  %271 = vmatprep.subr.mxu0 0.0
  %272 = vmatpush1.msra.mxu0 0.0
  %273 = vmatprep.subr.mxu0 0.0
  %274 = vmatpush1.msra.mxu0 0.0
  %275 = vmatprep.subr.mxu0 0.0
  %276 = vmatpush1.msra.mxu0 0.0
  %277 = vmatprep.subr.mxu0 0.0
  %278 = vmatpush1.msra.mxu0 0.0
  %279 = vmatprep.subr.mxu0 0.0
  %280 = vmatpush1.msra.mxu0 0.0
  %281 = vmatprep.subr.mxu0 0.0
  %282 = vmatpush1.msra.mxu0 0.0
  %283 = vmatprep.subr.mxu0 0.0
  %284 = vmatpush1.msra.mxu0 0.0
  %285 = vmatprep.subr.mxu0 0.0
  %286 = vmatpush1.msra.mxu0 0.0
  %287 = vmatprep.subr.mxu0 0.0
  %288 = vmatpush1.msra.mxu0 0.0
  %289 = vmatprep.subr.mxu0 0.0
  %290 = vmatpush1.msra.mxu0 0.0
  %291 = vmatprep.subr.mxu0 0.0
  %292 = vmatpush1.msra.mxu0 0.0
  %293 = vmatprep.subr.mxu0 0.0
  %294 = vmatpush1.msra.mxu0 0.0
  %295 = vmatprep.subr.mxu0 0.0
  %296 = vmatpush1.msra.mxu0 0.0
  %297 = vmatprep.subr.mxu0 0.0
  %298 = vmatpush1.msra.mxu0 0.0
  %299 = vmatprep.mubr.f32.mxu0 0.0
  %300 = vmatmul.mubr.f32.gmra.mrb[0].mxu0 %v220
  %v301 = vpop.f32.mrb[0].mxu0
  %v302 = vadd.f32 0.0, %v301
  %v303 = vpop.f32.mrb[0].mxu0
  %304 = vmatprep.mubr.f32.mxu0 0.0
  %305 = vmatmul.mubr.f32.gmra.mrb[0].mxu0 %v223
  %v306 = vpop.f32.mrb[0].mxu0
  %v307 = vadd.f32 0.0, %v306
  %v308 = vpop.f32.mrb[0].mxu0
  %309 = vmatprep.mubr.f32.mxu0 0.0
  %310 = vmatmul.mubr.f32.gmra.mrb[0].mxu0 %v226
  %v311 = vpop.f32.mrb[0].mxu0
  %v312 = vadd.f32 0.0, %v311
  %v313 = vpop.f32.mrb[0].mxu0
  %314 = vmatprep.mubr.f32.mxu0 0.0
  %315 = vmatmul.mubr.f32.gmra.mrb[0].mxu0 %v229
  %v316 = vpop.f32.mrb[0].mxu0
  %v317 = vadd.f32 0.0, %v316
  %v318 = vpop.f32.mrb[0].mxu0
  %319 = vdwg.mxu0
  %v320 = vld [vmem:[%s2] sm:$0xff]
  %v321 = vld [vmem:[%s2 + $0x8] sm:$0xff]
  %v322 = vld [vmem:[%s2 + $0x10] sm:$0xff]
  %v323 = vld [vmem:[%s2 + $0x18] sm:$0xff]
  %v324 = vadd.f32 %v320, %v302
  %v325 = vadd.f32 %v321, %v307
  %v326 = vadd.f32 %v322, %v312
  %v327 = vadd.f32 %v323, %v317
  %v328 = vld [vmem:[%s5 + $0x68] sm:$0x1]
  %v329 = vld [vmem:[%s5 + $0x69] sm:$0x1]
  %vm330 = vcmask 261120
  %v331 = vsel %vm330, %v324, 0.0
  %332 = vadd.xlane.f32.xlu0 %v331
  %v333 = vpop.xlane.xlu0 %332
  %v334 = vsel %vm330, %v325, 0.0
  %335 = vadd.xlane.f32.xlu0 %v334
  %v336 = vpop.xlane.xlu0 %335
  %v337 = vsel %vm330, %v326, 0.0
  %338 = vadd.xlane.f32.xlu0 %v337
  %v339 = vpop.xlane.xlu0 %338
  %v340 = vsel %vm330, %v327, 0.0
  %341 = vadd.xlane.f32.xlu0 %v340
  %v342 = vpop.xlane.xlu0 %341
  %v343 = vrcp.pop 32.0
  %v344 = vmul.f32 %v333, %v343
  %v345 = vmul.f32 %v336, %v343
  %v346 = vmul.f32 %v339, %v343
  %v347 = vmul.f32 %v342, %v343
  %v348 = vsub.f32 %v324, %v344
  %v349 = vsub.f32 %v325, %v345
  %v350 = vsub.f32 %v326, %v346
  %v351 = vsub.f32 %v327, %v347
  %v352 = vmul.f32 %v348, %v348
  %v353 = vmul.f32 %v349, %v349
  %v354 = vmul.f32 %v350, %v350
  %v355 = vmul.f32 %v351, %v351
  %v356 = vsel %vm330, %v352, 0.0
  %357 = vadd.xlane.f32.xlu0 %v356
  %v358 = vpop.xlane.xlu0 %357
  %v359 = vsel %vm330, %v353, 0.0
  %360 = vadd.xlane.f32.xlu0 %v359
  %v361 = vpop.xlane.xlu0 %360
  %v362 = vsel %vm330, %v354, 0.0
  %363 = vadd.xlane.f32.xlu0 %v362
  %v364 = vpop.xlane.xlu0 %363
  %v365 = vsel %vm330, %v355, 0.0
  %366 = vadd.xlane.f32.xlu0 %v365
  %v367 = vpop.xlane.xlu0 %366
  %v368 = vmul.f32 %v358, %v343
  %v369 = vmul.f32 %v361, %v343
  %v370 = vmul.f32 %v364, %v343
  %v371 = vmul.f32 %v367, %v343
  %v372 = vadd.f32 %v368, 1e-12
  %v373 = vadd.f32 %v369, 1e-12
  %v374 = vadd.f32 %v370, 1e-12
  %v375 = vadd.f32 %v371, 1e-12
  %v376 = vrsqrt.pop %v372
  %v377 = vrsqrt.pop %v373
  %v378 = vrsqrt.pop %v374
  %v379 = vrsqrt.pop %v375
  %v380 = vmul.f32 %v348, %v376
  %v381 = vmul.f32 %v349, %v377
  %v382 = vmul.f32 %v350, %v378
  %v383 = vmul.f32 %v351, %v379
  %v384 = vlaneseq
  %v385 = vshrl.u32 %v384, 7
  %v386 = vsub.s32 0, %v385
  %v387 = vrot.slane %v328, %v386
  %v388 = vmul.f32 %v380, %v387
  %v389 = vmul.f32 %v381, %v387
  %v390 = vmul.f32 %v382, %v387
  %v391 = vmul.f32 %v383, %v387
  %v392 = vlaneseq
  %v393 = vshrl.u32 %v392, 7
  %v394 = vsub.s32 0, %v393
  %v395 = vrot.slane %v329, %v394
  %v396 = vadd.f32 %v388, %v395
  %v397 = vadd.f32 %v389, %v395
  %v398 = vadd.f32 %v390, %v395
  %v399 = vadd.f32 %v391, %v395
  %v400 = vld [vmem:[%s3] sm:$0xff]
  %v401 = vld [vmem:[%s3 + $0x8] sm:$0xff]
  %v402 = vld [vmem:[%s3 + $0x10] sm:$0xff]
  %v403 = vld [vmem:[%s3 + $0x18] sm:$0xff]
  %v404 = vld [vmem:[%s4] sm:$0xff]
  %v405 = vld [vmem:[%s4 + $0x8] sm:$0xff]
  %v406 = vld [vmem:[%s4 + $0x10] sm:$0xff]
  %v407 = vld [vmem:[%s4 + $0x18] sm:$0xff]
  %v408 = vld [vmem:[%s4 + $0x100] sm:$0xff]
  %v409 = vld [vmem:[%s4 + $0x108] sm:$0xff]
  %v410 = vld [vmem:[%s4 + $0x110] sm:$0xff]
  %v411 = vld [vmem:[%s4 + $0x118] sm:$0xff]
  %v412 = vld [vmem:[%s5 + $0x6c] sm:$0x1]
  %v413 = vlaneseq
  %v414 = vshrl.u32 %v413, 7
  %v415 = vsub.s32 0, %v414
  %v416 = vrot.slane %v412, %v415
  %v418 = vsel %vm330, %v396, 0
  %v421 = vsel %vm330, %v397, 0
  %v424 = vsel %vm330, %v398, 0
  %v427 = vsel %vm330, %v399, 0
  %429 = vmatprep.subr.mxu0 0.0
  %430 = vmatpush1.msra.mxu0 %v404
  %431 = vmatprep.subr.mxu0 0.0
  %432 = vmatpush1.msra.mxu0 %v405
  %433 = vmatprep.subr.mxu0 0.0
  %434 = vmatpush1.msra.mxu0 %v406
  %435 = vmatprep.subr.mxu0 0.0
  %436 = vmatpush1.msra.mxu0 %v407
  %437 = vmatprep.subr.mxu0 0.0
  %438 = vmatpush1.msra.mxu0 0.0
  %439 = vmatprep.subr.mxu0 0.0
  %440 = vmatpush1.msra.mxu0 0.0
  %441 = vmatprep.subr.mxu0 0.0
  %442 = vmatpush1.msra.mxu0 0.0
  %443 = vmatprep.subr.mxu0 0.0
  %444 = vmatpush1.msra.mxu0 0.0
  %445 = vmatprep.subr.mxu0 0.0
  %446 = vmatpush1.msra.mxu0 0.0
  %447 = vmatprep.subr.mxu0 0.0
  %448 = vmatpush1.msra.mxu0 0.0
  %449 = vmatprep.subr.mxu0 0.0
  %450 = vmatpush1.msra.mxu0 0.0
  %451 = vmatprep.subr.mxu0 0.0
  %452 = vmatpush1.msra.mxu0 0.0
  %453 = vmatprep.subr.mxu0 0.0
  %454 = vmatpush1.msra.mxu0 0.0
  %455 = vmatprep.subr.mxu0 0.0
  %456 = vmatpush1.msra.mxu0 0.0
  %457 = vmatprep.subr.mxu0 0.0
  %458 = vmatpush1.msra.mxu0 0.0
  %459 = vmatprep.subr.mxu0 0.0
  %460 = vmatpush1.msra.mxu0 0.0
  %461 = vmatprep.subr.mxu0 0.0
  %462 = vmatpush1.msra.mxu0 0.0
  %463 = vmatprep.subr.mxu0 0.0
  %464 = vmatpush1.msra.mxu0 0.0
  %465 = vmatprep.subr.mxu0 0.0
  %466 = vmatpush1.msra.mxu0 0.0
  %467 = vmatprep.subr.mxu0 0.0
  %468 = vmatpush1.msra.mxu0 0.0
  %469 = vmatprep.subr.mxu0 0.0
  %470 = vmatpush1.msra.mxu0 0.0
  %471 = vmatprep.subr.mxu0 0.0
  %472 = vmatpush1.msra.mxu0 0.0
  %473 = vmatprep.subr.mxu0 0.0
  %474 = vmatpush1.msra.mxu0 0.0
  %475 = vmatprep.subr.mxu0 0.0
  %476 = vmatpush1.msra.mxu0 0.0
  %477 = vmatprep.subr.mxu0 0.0
  %478 = vmatpush1.msra.mxu0 0.0
  %479 = vmatprep.subr.mxu0 0.0
  %480 = vmatpush1.msra.mxu0 0.0
  %481 = vmatprep.subr.mxu0 0.0
  %482 = vmatpush1.msra.mxu0 0.0
  %483 = vmatprep.subr.mxu0 0.0
  %484 = vmatpush1.msra.mxu0 0.0
  %485 = vmatprep.subr.mxu0 0.0
  %486 = vmatpush1.msra.mxu0 0.0
  %487 = vmatprep.subr.mxu0 0.0
  %488 = vmatpush1.msra.mxu0 0.0
  %489 = vmatprep.subr.mxu0 0.0
  %490 = vmatpush1.msra.mxu0 0.0
  %491 = vmatprep.subr.mxu0 0.0
  %492 = vmatpush1.msra.mxu0 0.0
  %493 = vmatprep.mubr.f32.mxu0 0.0
  %494 = vmatmul.mubr.f32.gmra.mrb[0].mxu0 %v418
  %v495 = vpop.f32.mrb[0].mxu0
  %v496 = vadd.f32 %v416, %v495
  %v497 = vpop.f32.mrb[0].mxu0
  %498 = vmatprep.mubr.f32.mxu0 0.0
  %499 = vmatmul.mubr.f32.gmra.mrb[0].mxu0 %v421
  %v500 = vpop.f32.mrb[0].mxu0
  %v501 = vadd.f32 %v416, %v500
  %v502 = vpop.f32.mrb[0].mxu0
  %503 = vmatprep.mubr.f32.mxu0 0.0
  %504 = vmatmul.mubr.f32.gmra.mrb[0].mxu0 %v424
  %v505 = vpop.f32.mrb[0].mxu0
  %v506 = vadd.f32 %v416, %v505
  %v507 = vpop.f32.mrb[0].mxu0
  %508 = vmatprep.mubr.f32.mxu0 0.0
  %509 = vmatmul.mubr.f32.gmra.mrb[0].mxu0 %v427
  %v510 = vpop.f32.mrb[0].mxu0
  %v511 = vadd.f32 %v416, %v510
  %v512 = vpop.f32.mrb[0].mxu0
  %513 = vdwg.mxu0
  %v515 = vsel %vm330, %v496, 0
  %v518 = vsel %vm330, %v501, 0
  %v521 = vsel %vm330, %v506, 0
  %v524 = vsel %vm330, %v511, 0
  %526 = vmatprep.subr.mxu0 0.0
  %527 = vmatpush1.xpose.msra.mxu0 %v418
  %528 = vmatprep.subr.mxu0 0.0
  %529 = vmatpush1.xpose.msra.mxu0 %v421
  %530 = vmatprep.subr.mxu0 0.0
  %531 = vmatpush1.xpose.msra.mxu0 %v424
  %532 = vmatprep.subr.mxu0 0.0
  %533 = vmatpush1.xpose.msra.mxu0 %v427
  %534 = vmatprep.subr.mxu0 0.0
  %535 = vmatpush1.xpose.msra.mxu0 0.0
  %536 = vmatprep.subr.mxu0 0.0
  %537 = vmatpush1.xpose.msra.mxu0 0.0
  %538 = vmatprep.subr.mxu0 0.0
  %539 = vmatpush1.xpose.msra.mxu0 0.0
  %540 = vmatprep.subr.mxu0 0.0
  %541 = vmatpush1.xpose.msra.mxu0 0.0
  %542 = vmatprep.subr.mxu0 0.0
  %543 = vmatpush1.xpose.msra.mxu0 0.0
  %544 = vmatprep.subr.mxu0 0.0
  %545 = vmatpush1.xpose.msra.mxu0 0.0
  %546 = vmatprep.subr.mxu0 0.0
  %547 = vmatpush1.xpose.msra.mxu0 0.0
  %548 = vmatprep.subr.mxu0 0.0
  %549 = vmatpush1.xpose.msra.mxu0 0.0
  %550 = vmatprep.subr.mxu0 0.0
  %551 = vmatpush1.xpose.msra.mxu0 0.0
  %552 = vmatprep.subr.mxu0 0.0
  %553 = vmatpush1.xpose.msra.mxu0 0.0
  %554 = vmatprep.subr.mxu0 0.0
  %555 = vmatpush1.xpose.msra.mxu0 0.0
  %556 = vmatprep.subr.mxu0 0.0
  %557 = vmatpush1.xpose.msra.mxu0 0.0
  %558 = vmatprep.subr.mxu0 0.0
  %559 = vmatpush1.xpose.msra.mxu0 0.0
  %560 = vmatprep.subr.mxu0 0.0
  %561 = vmatpush1.xpose.msra.mxu0 0.0
  %562 = vmatprep.subr.mxu0 0.0
  %563 = vmatpush1.xpose.msra.mxu0 0.0
  %564 = vmatprep.subr.mxu0 0.0
  %565 = vmatpush1.xpose.msra.mxu0 0.0
  %566 = vmatprep.subr.mxu0 0.0
  %567 = vmatpush1.xpose.msra.mxu0 0.0
  %568 = vmatprep.subr.mxu0 0.0
  %569 = vmatpush1.xpose.msra.mxu0 0.0
  %570 = vmatprep.subr.mxu0 0.0
  %571 = vmatpush1.xpose.msra.mxu0 0.0
  %572 = vmatprep.subr.mxu0 0.0
  %573 = vmatpush1.xpose.msra.mxu0 0.0
  %574 = vmatprep.subr.mxu0 0.0
  %575 = vmatpush1.xpose.msra.mxu0 0.0
  %576 = vmatprep.subr.mxu0 0.0
  %577 = vmatpush1.xpose.msra.mxu0 0.0
  %578 = vmatprep.subr.mxu0 0.0
  %579 = vmatpush1.xpose.msra.mxu0 0.0
  %580 = vmatprep.subr.mxu0 0.0
  %581 = vmatpush1.xpose.msra.mxu0 0.0
  %582 = vmatprep.subr.mxu0 0.0
  %583 = vmatpush1.xpose.msra.mxu0 0.0
  %584 = vmatprep.subr.mxu0 0.0
  %585 = vmatpush1.xpose.msra.mxu0 0.0
  %586 = vmatprep.subr.mxu0 0.0
  %587 = vmatpush1.xpose.msra.mxu0 0.0
  %588 = vmatprep.subr.mxu0 0.0
  %589 = vmatpush1.xpose.msra.mxu0 0.0
  %590 = vmatprep.mubr.f32.mxu0 0.0
  %591 = vmatmul.mubr.f32.gmra.mrb[0].mxu0 %v515
  %v592 = vpop.f32.mrb[0].mxu0
  %v593 = vadd.f32 %v400, %v592
  %v594 = vpop.f32.mrb[0].mxu0
  %595 = vmatprep.mubr.f32.mxu0 0.0
  %596 = vmatmul.mubr.f32.gmra.mrb[0].mxu0 %v518
  %v597 = vpop.f32.mrb[0].mxu0
  %v598 = vadd.f32 %v401, %v597
  %v599 = vpop.f32.mrb[0].mxu0
  %600 = vmatprep.mubr.f32.mxu0 0.0
  %601 = vmatmul.mubr.f32.gmra.mrb[0].mxu0 %v521
  %v602 = vpop.f32.mrb[0].mxu0
  %v603 = vadd.f32 %v402, %v602
  %v604 = vpop.f32.mrb[0].mxu0
  %605 = vmatprep.mubr.f32.mxu0 0.0
  %606 = vmatmul.mubr.f32.gmra.mrb[0].mxu0 %v524
  %v607 = vpop.f32.mrb[0].mxu0
  %v608 = vadd.f32 %v403, %v607
  %v609 = vpop.f32.mrb[0].mxu0
  %610 = vdwg.mxu0
  %v611 = vsel %vm330, %v593, -inf
  %612 = vmax.xlane.f32.xlu0 %v611
  %v613 = vpop.xlane.xlu0 %612
  %v614 = vsel %vm330, %v598, -inf
  %615 = vmax.xlane.f32.xlu0 %v614
  %v616 = vpop.xlane.xlu0 %615
  %v617 = vsel %vm330, %v603, -inf
  %618 = vmax.xlane.f32.xlu0 %v617
  %v619 = vpop.xlane.xlu0 %618
  %v620 = vsel %vm330, %v608, -inf
  %621 = vmax.xlane.f32.xlu0 %v620
  %v622 = vpop.xlane.xlu0 %621
  %v623 = vsub.f32 %v593, %v613
  %v624 = vsub.f32 %v598, %v616
  %v625 = vsub.f32 %v603, %v619
  %v626 = vsub.f32 %v608, %v622
  %v627 = vmul.f32 %v623, 1.442695
  %v628 = vpow.pop %v627
  %v629 = vmul.f32 %v624, 1.442695
  %v630 = vpow.pop %v629
  %v631 = vmul.f32 %v625, 1.442695
  %v632 = vpow.pop %v631
  %v633 = vmul.f32 %v626, 1.442695
  %v634 = vpow.pop %v633
  %v635 = vsel %vm330, %v628, 0.0
  %636 = vadd.xlane.f32.xlu0 %v635
  %v637 = vpop.xlane.xlu0 %636
  %v638 = vsel %vm330, %v630, 0.0
  %639 = vadd.xlane.f32.xlu0 %v638
  %v640 = vpop.xlane.xlu0 %639
  %v641 = vsel %vm330, %v632, 0.0
  %642 = vadd.xlane.f32.xlu0 %v641
  %v643 = vpop.xlane.xlu0 %642
  %v644 = vsel %vm330, %v634, 0.0
  %645 = vadd.xlane.f32.xlu0 %v644
  %v646 = vpop.xlane.xlu0 %645
  %v647 = vrcp.pop %v637
  %v648 = vrcp.pop %v640
  %v649 = vrcp.pop %v643
  %v650 = vrcp.pop %v646
  %v651 = vmul.f32 %v628, %v647
  %v652 = vmul.f32 %v630, %v648
  %v653 = vmul.f32 %v632, %v649
  %v654 = vmul.f32 %v634, %v650
  %655 = vmatprep.subr.mxu0 0.0
  %656 = vmatpush1.msra.mxu0 %v408
  %657 = vmatprep.subr.mxu0 0.0
  %658 = vmatpush1.msra.mxu0 %v409
  %659 = vmatprep.subr.mxu0 0.0
  %660 = vmatpush1.msra.mxu0 %v410
  %661 = vmatprep.subr.mxu0 0.0
  %662 = vmatpush1.msra.mxu0 %v411
  %663 = vmatprep.subr.mxu0 0.0
  %664 = vmatpush1.msra.mxu0 0.0
  %665 = vmatprep.subr.mxu0 0.0
  %666 = vmatpush1.msra.mxu0 0.0
  %667 = vmatprep.subr.mxu0 0.0
  %668 = vmatpush1.msra.mxu0 0.0
  %669 = vmatprep.subr.mxu0 0.0
  %670 = vmatpush1.msra.mxu0 0.0
  %671 = vmatprep.subr.mxu0 0.0
  %672 = vmatpush1.msra.mxu0 0.0
  %673 = vmatprep.subr.mxu0 0.0
  %674 = vmatpush1.msra.mxu0 0.0
  %675 = vmatprep.subr.mxu0 0.0
  %676 = vmatpush1.msra.mxu0 0.0
  %677 = vmatprep.subr.mxu0 0.0
  %678 = vmatpush1.msra.mxu0 0.0
  %679 = vmatprep.subr.mxu0 0.0
  %680 = vmatpush1.msra.mxu0 0.0
  %681 = vmatprep.subr.mxu0 0.0
  %682 = vmatpush1.msra.mxu0 0.0
  %683 = vmatprep.subr.mxu0 0.0
  %684 = vmatpush1.msra.mxu0 0.0
  %685 = vmatprep.subr.mxu0 0.0
  %686 = vmatpush1.msra.mxu0 0.0
  %687 = vmatprep.subr.mxu0 0.0
  %688 = vmatpush1.msra.mxu0 0.0
  %689 = vmatprep.subr.mxu0 0.0
  %690 = vmatpush1.msra.mxu0 0.0
  %691 = vmatprep.subr.mxu0 0.0
  %692 = vmatpush1.msra.mxu0 0.0
  %693 = vmatprep.subr.mxu0 0.0
  %694 = vmatpush1.msra.mxu0 0.0
  %695 = vmatprep.subr.mxu0 0.0
  %696 = vmatpush1.msra.mxu0 0.0
  %697 = vmatprep.subr.mxu0 0.0
  %698 = vmatpush1.msra.mxu0 0.0
  %699 = vmatprep.subr.mxu0 0.0
  %700 = vmatpush1.msra.mxu0 0.0
  %701 = vmatprep.subr.mxu0 0.0
  %702 = vmatpush1.msra.mxu0 0.0
  %703 = vmatprep.subr.mxu0 0.0
  %704 = vmatpush1.msra.mxu0 0.0
  %705 = vmatprep.subr.mxu0 0.0
  %706 = vmatpush1.msra.mxu0 0.0
  %707 = vmatprep.subr.mxu0 0.0
  %708 = vmatpush1.msra.mxu0 0.0
  %709 = vmatprep.subr.mxu0 0.0
  %710 = vmatpush1.msra.mxu0 0.0
  %711 = vmatprep.subr.mxu0 0.0
  %712 = vmatpush1.msra.mxu0 0.0
  %713 = vmatprep.subr.mxu0 0.0
  %714 = vmatpush1.msra.mxu0 0.0
  %715 = vmatprep.subr.mxu0 0.0
  %716 = vmatpush1.msra.mxu0 0.0
  %717 = vmatprep.subr.mxu0 0.0
  %718 = vmatpush1.msra.mxu0 0.0
  %719 = vmatprep.mubr.f32.mxu0 0.0
  %720 = vmatmul.mubr.f32.gmra.mrb[0].mxu0 %v418
  %v721 = vpop.f32.mrb[0].mxu0
  %v722 = vadd.f32 0.0, %v721
  %v723 = vpop.f32.mrb[0].mxu0
  %724 = vmatprep.mubr.f32.mxu0 0.0
  %725 = vmatmul.mubr.f32.gmra.mrb[0].mxu0 %v421
  %v726 = vpop.f32.mrb[0].mxu0
  %v727 = vadd.f32 0.0, %v726
  %v728 = vpop.f32.mrb[0].mxu0
  %729 = vmatprep.mubr.f32.mxu0 0.0
  %730 = vmatmul.mubr.f32.gmra.mrb[0].mxu0 %v424
  %v731 = vpop.f32.mrb[0].mxu0
  %v732 = vadd.f32 0.0, %v731
  %v733 = vpop.f32.mrb[0].mxu0
  %734 = vmatprep.mubr.f32.mxu0 0.0
  %735 = vmatmul.mubr.f32.gmra.mrb[0].mxu0 %v427
  %v736 = vpop.f32.mrb[0].mxu0
  %v737 = vadd.f32 0.0, %v736
  %v738 = vpop.f32.mrb[0].mxu0
  %739 = vdwg.mxu0
  %v740 = vld [vmem:[%s4 + $0x20] sm:$0xff]
  %v741 = vld [vmem:[%s4 + $0x28] sm:$0xff]
  %v742 = vld [vmem:[%s4 + $0x30] sm:$0xff]
  %v743 = vld [vmem:[%s4 + $0x38] sm:$0xff]
  %v744 = vld [vmem:[%s4 + $0x120] sm:$0xff]
  %v745 = vld [vmem:[%s4 + $0x128] sm:$0xff]
  %v746 = vld [vmem:[%s4 + $0x130] sm:$0xff]
  %v747 = vld [vmem:[%s4 + $0x138] sm:$0xff]
  %v748 = vld [vmem:[%s5 + $0x6d] sm:$0x1]
  %v749 = vlaneseq
  %v750 = vshrl.u32 %v749, 7
  %v751 = vsub.s32 0, %v750
  %v752 = vrot.slane %v748, %v751
  %753 = vmatprep.subr.mxu0 0.0
  %754 = vmatpush1.msra.mxu0 %v740
  %755 = vmatprep.subr.mxu0 0.0
  %756 = vmatpush1.msra.mxu0 %v741
  %757 = vmatprep.subr.mxu0 0.0
  %758 = vmatpush1.msra.mxu0 %v742
  %759 = vmatprep.subr.mxu0 0.0
  %760 = vmatpush1.msra.mxu0 %v743
  %761 = vmatprep.subr.mxu0 0.0
  %762 = vmatpush1.msra.mxu0 0.0
  %763 = vmatprep.subr.mxu0 0.0
  %764 = vmatpush1.msra.mxu0 0.0
  %765 = vmatprep.subr.mxu0 0.0
  %766 = vmatpush1.msra.mxu0 0.0
  %767 = vmatprep.subr.mxu0 0.0
  %768 = vmatpush1.msra.mxu0 0.0
  %769 = vmatprep.subr.mxu0 0.0
  %770 = vmatpush1.msra.mxu0 0.0
  %771 = vmatprep.subr.mxu0 0.0
  %772 = vmatpush1.msra.mxu0 0.0
  %773 = vmatprep.subr.mxu0 0.0
  %774 = vmatpush1.msra.mxu0 0.0
  %775 = vmatprep.subr.mxu0 0.0
  %776 = vmatpush1.msra.mxu0 0.0
  %777 = vmatprep.subr.mxu0 0.0
  %778 = vmatpush1.msra.mxu0 0.0
  %779 = vmatprep.subr.mxu0 0.0
  %780 = vmatpush1.msra.mxu0 0.0
  %781 = vmatprep.subr.mxu0 0.0
  %782 = vmatpush1.msra.mxu0 0.0
  %783 = vmatprep.subr.mxu0 0.0
  %784 = vmatpush1.msra.mxu0 0.0
  %785 = vmatprep.subr.mxu0 0.0
  %786 = vmatpush1.msra.mxu0 0.0
  %787 = vmatprep.subr.mxu0 0.0
  %788 = vmatpush1.msra.mxu0 0.0
  %789 = vmatprep.subr.mxu0 0.0
  %790 = vmatpush1.msra.mxu0 0.0
  %791 = vmatprep.subr.mxu0 0.0
  %792 = vmatpush1.msra.mxu0 0.0
  %793 = vmatprep.subr.mxu0 0.0
  %794 = vmatpush1.msra.mxu0 0.0
  %795 = vmatprep.subr.mxu0 0.0
  %796 = vmatpush1.msra.mxu0 0.0
  %797 = vmatprep.subr.mxu0 0.0
  %798 = vmatpush1.msra.mxu0 0.0
  %799 = vmatprep.subr.mxu0 0.0
  %800 = vmatpush1.msra.mxu0 0.0
  %801 = vmatprep.subr.mxu0 0.0
  %802 = vmatpush1.msra.mxu0 0.0
  %803 = vmatprep.subr.mxu0 0.0
  %804 = vmatpush1.msra.mxu0 0.0
  %805 = vmatprep.subr.mxu0 0.0
  %806 = vmatpush1.msra.mxu0 0.0
  %807 = vmatprep.subr.mxu0 0.0
  %808 = vmatpush1.msra.mxu0 0.0
  %809 = vmatprep.subr.mxu0 0.0
  %810 = vmatpush1.msra.mxu0 0.0
  %811 = vmatprep.subr.mxu0 0.0
  %812 = vmatpush1.msra.mxu0 0.0
  %813 = vmatprep.subr.mxu0 0.0
  %814 = vmatpush1.msra.mxu0 0.0
  %815 = vmatprep.subr.mxu0 0.0
  %816 = vmatpush1.msra.mxu0 0.0
  %817 = vmatprep.mubr.f32.mxu0 0.0
  %818 = vmatmul.mubr.f32.gmra.mrb[0].mxu0 %v418
  %v819 = vpop.f32.mrb[0].mxu0
  %v820 = vadd.f32 %v752, %v819
  %v821 = vpop.f32.mrb[0].mxu0
  %822 = vmatprep.mubr.f32.mxu0 0.0
  %823 = vmatmul.mubr.f32.gmra.mrb[0].mxu0 %v421
  %v824 = vpop.f32.mrb[0].mxu0
  %v825 = vadd.f32 %v752, %v824
  %v826 = vpop.f32.mrb[0].mxu0
  %827 = vmatprep.mubr.f32.mxu0 0.0
  %828 = vmatmul.mubr.f32.gmra.mrb[0].mxu0 %v424
  %v829 = vpop.f32.mrb[0].mxu0
  %v830 = vadd.f32 %v752, %v829
  %v831 = vpop.f32.mrb[0].mxu0
  %832 = vmatprep.mubr.f32.mxu0 0.0
  %833 = vmatmul.mubr.f32.gmra.mrb[0].mxu0 %v427
  %v834 = vpop.f32.mrb[0].mxu0
  %v835 = vadd.f32 %v752, %v834
  %v836 = vpop.f32.mrb[0].mxu0
  %837 = vdwg.mxu0
  %v839 = vsel %vm330, %v820, 0
  %v842 = vsel %vm330, %v825, 0
  %v845 = vsel %vm330, %v830, 0
  %v848 = vsel %vm330, %v835, 0
  %850 = vmatprep.subr.mxu0 0.0
  %851 = vmatpush1.xpose.msra.mxu0 %v418
  %852 = vmatprep.subr.mxu0 0.0
  %853 = vmatpush1.xpose.msra.mxu0 %v421
  %854 = vmatprep.subr.mxu0 0.0
  %855 = vmatpush1.xpose.msra.mxu0 %v424
  %856 = vmatprep.subr.mxu0 0.0
  %857 = vmatpush1.xpose.msra.mxu0 %v427
  %858 = vmatprep.subr.mxu0 0.0
  %859 = vmatpush1.xpose.msra.mxu0 0.0
  %860 = vmatprep.subr.mxu0 0.0
  %861 = vmatpush1.xpose.msra.mxu0 0.0
  %862 = vmatprep.subr.mxu0 0.0
  %863 = vmatpush1.xpose.msra.mxu0 0.0
  %864 = vmatprep.subr.mxu0 0.0
  %865 = vmatpush1.xpose.msra.mxu0 0.0
  %866 = vmatprep.subr.mxu0 0.0
  %867 = vmatpush1.xpose.msra.mxu0 0.0
  %868 = vmatprep.subr.mxu0 0.0
  %869 = vmatpush1.xpose.msra.mxu0 0.0
  %870 = vmatprep.subr.mxu0 0.0
  %871 = vmatpush1.xpose.msra.mxu0 0.0
  %872 = vmatprep.subr.mxu0 0.0
  %873 = vmatpush1.xpose.msra.mxu0 0.0
  %874 = vmatprep.subr.mxu0 0.0
  %875 = vmatpush1.xpose.msra.mxu0 0.0
  %876 = vmatprep.subr.mxu0 0.0
  %877 = vmatpush1.xpose.msra.mxu0 0.0
  %878 = vmatprep.subr.mxu0 0.0
  %879 = vmatpush1.xpose.msra.mxu0 0.0
  %880 = vmatprep.subr.mxu0 0.0
  %881 = vmatpush1.xpose.msra.mxu0 0.0
  %882 = vmatprep.subr.mxu0 0.0
  %883 = vmatpush1.xpose.msra.mxu0 0.0
  %884 = vmatprep.subr.mxu0 0.0
  %885 = vmatpush1.xpose.msra.mxu0 0.0
  %886 = vmatprep.subr.mxu0 0.0
  %887 = vmatpush1.xpose.msra.mxu0 0.0
  %888 = vmatprep.subr.mxu0 0.0
  %889 = vmatpush1.xpose.msra.mxu0 0.0
  %890 = vmatprep.subr.mxu0 0.0
  %891 = vmatpush1.xpose.msra.mxu0 0.0
  %892 = vmatprep.subr.mxu0 0.0
  %893 = vmatpush1.xpose.msra.mxu0 0.0
  %894 = vmatprep.subr.mxu0 0.0
  %895 = vmatpush1.xpose.msra.mxu0 0.0
  %896 = vmatprep.subr.mxu0 0.0
  %897 = vmatpush1.xpose.msra.mxu0 0.0
  %898 = vmatprep.subr.mxu0 0.0
  %899 = vmatpush1.xpose.msra.mxu0 0.0
  %900 = vmatprep.subr.mxu0 0.0
  %901 = vmatpush1.xpose.msra.mxu0 0.0
  %902 = vmatprep.subr.mxu0 0.0
  %903 = vmatpush1.xpose.msra.mxu0 0.0
  %904 = vmatprep.subr.mxu0 0.0
  %905 = vmatpush1.xpose.msra.mxu0 0.0
  %906 = vmatprep.subr.mxu0 0.0
  %907 = vmatpush1.xpose.msra.mxu0 0.0
  %908 = vmatprep.subr.mxu0 0.0
  %909 = vmatpush1.xpose.msra.mxu0 0.0
  %910 = vmatprep.subr.mxu0 0.0
  %911 = vmatpush1.xpose.msra.mxu0 0.0
  %912 = vmatprep.subr.mxu0 0.0
  %913 = vmatpush1.xpose.msra.mxu0 0.0
  %914 = vmatprep.mubr.f32.mxu0 0.0
  %915 = vmatmul.mubr.f32.gmra.mrb[0].mxu0 %v839
  %v916 = vpop.f32.mrb[0].mxu0
  %v917 = vadd.f32 %v400, %v916
  %v918 = vpop.f32.mrb[0].mxu0
  %919 = vmatprep.mubr.f32.mxu0 0.0
  %920 = vmatmul.mubr.f32.gmra.mrb[0].mxu0 %v842
  %v921 = vpop.f32.mrb[0].mxu0
  %v922 = vadd.f32 %v401, %v921
  %v923 = vpop.f32.mrb[0].mxu0
  %924 = vmatprep.mubr.f32.mxu0 0.0
  %925 = vmatmul.mubr.f32.gmra.mrb[0].mxu0 %v845
  %v926 = vpop.f32.mrb[0].mxu0
  %v927 = vadd.f32 %v402, %v926
  %v928 = vpop.f32.mrb[0].mxu0
  %929 = vmatprep.mubr.f32.mxu0 0.0
  %930 = vmatmul.mubr.f32.gmra.mrb[0].mxu0 %v848
  %v931 = vpop.f32.mrb[0].mxu0
  %v932 = vadd.f32 %v403, %v931
  %v933 = vpop.f32.mrb[0].mxu0
  %934 = vdwg.mxu0
  %v935 = vsel %vm330, %v917, -inf
  %936 = vmax.xlane.f32.xlu0 %v935
  %v937 = vpop.xlane.xlu0 %936
  %v938 = vsel %vm330, %v922, -inf
  %939 = vmax.xlane.f32.xlu0 %v938
  %v940 = vpop.xlane.xlu0 %939
  %v941 = vsel %vm330, %v927, -inf
  %942 = vmax.xlane.f32.xlu0 %v941
  %v943 = vpop.xlane.xlu0 %942
  %v944 = vsel %vm330, %v932, -inf
  %945 = vmax.xlane.f32.xlu0 %v944
  %v946 = vpop.xlane.xlu0 %945
  %v947 = vsub.f32 %v917, %v937
  %v948 = vsub.f32 %v922, %v940
  %v949 = vsub.f32 %v927, %v943
  %v950 = vsub.f32 %v932, %v946
  %v951 = vmul.f32 %v947, 1.442695
  %v952 = vpow.pop %v951
  %v953 = vmul.f32 %v948, 1.442695
  %v954 = vpow.pop %v953
  %v955 = vmul.f32 %v949, 1.442695
  %v956 = vpow.pop %v955
  %v957 = vmul.f32 %v950, 1.442695
  %v958 = vpow.pop %v957
  %v959 = vsel %vm330, %v952, 0.0
  %960 = vadd.xlane.f32.xlu0 %v959
  %v961 = vpop.xlane.xlu0 %960
  %v962 = vsel %vm330, %v954, 0.0
  %963 = vadd.xlane.f32.xlu0 %v962
  %v964 = vpop.xlane.xlu0 %963
  %v965 = vsel %vm330, %v956, 0.0
  %966 = vadd.xlane.f32.xlu0 %v965
  %v967 = vpop.xlane.xlu0 %966
  %v968 = vsel %vm330, %v958, 0.0
  %969 = vadd.xlane.f32.xlu0 %v968
  %v970 = vpop.xlane.xlu0 %969
  %v971 = vrcp.pop %v961
  %v972 = vrcp.pop %v964
  %v973 = vrcp.pop %v967
  %v974 = vrcp.pop %v970
  %v975 = vmul.f32 %v952, %v971
  %v976 = vmul.f32 %v954, %v972
  %v977 = vmul.f32 %v956, %v973
  %v978 = vmul.f32 %v958, %v974
  %979 = vmatprep.subr.mxu0 0.0
  %980 = vmatpush1.msra.mxu0 %v744
  %981 = vmatprep.subr.mxu0 0.0
  %982 = vmatpush1.msra.mxu0 %v745
  %983 = vmatprep.subr.mxu0 0.0
  %984 = vmatpush1.msra.mxu0 %v746
  %985 = vmatprep.subr.mxu0 0.0
  %986 = vmatpush1.msra.mxu0 %v747
  %987 = vmatprep.subr.mxu0 0.0
  %988 = vmatpush1.msra.mxu0 0.0
  %989 = vmatprep.subr.mxu0 0.0
  %990 = vmatpush1.msra.mxu0 0.0
  %991 = vmatprep.subr.mxu0 0.0
  %992 = vmatpush1.msra.mxu0 0.0
  %993 = vmatprep.subr.mxu0 0.0
  %994 = vmatpush1.msra.mxu0 0.0
  %995 = vmatprep.subr.mxu0 0.0
  %996 = vmatpush1.msra.mxu0 0.0
  %997 = vmatprep.subr.mxu0 0.0
  %998 = vmatpush1.msra.mxu0 0.0
  %999 = vmatprep.subr.mxu0 0.0
  %1000 = vmatpush1.msra.mxu0 0.0
  %1001 = vmatprep.subr.mxu0 0.0
  %1002 = vmatpush1.msra.mxu0 0.0
  %1003 = vmatprep.subr.mxu0 0.0
  %1004 = vmatpush1.msra.mxu0 0.0
  %1005 = vmatprep.subr.mxu0 0.0
  %1006 = vmatpush1.msra.mxu0 0.0
  %1007 = vmatprep.subr.mxu0 0.0
  %1008 = vmatpush1.msra.mxu0 0.0
  %1009 = vmatprep.subr.mxu0 0.0
  %1010 = vmatpush1.msra.mxu0 0.0
  %1011 = vmatprep.subr.mxu0 0.0
  %1012 = vmatpush1.msra.mxu0 0.0
  %1013 = vmatprep.subr.mxu0 0.0
  %1014 = vmatpush1.msra.mxu0 0.0
  %1015 = vmatprep.subr.mxu0 0.0
  %1016 = vmatpush1.msra.mxu0 0.0
  %1017 = vmatprep.subr.mxu0 0.0
  %1018 = vmatpush1.msra.mxu0 0.0
  %1019 = vmatprep.subr.mxu0 0.0
  %1020 = vmatpush1.msra.mxu0 0.0
  %1021 = vmatprep.subr.mxu0 0.0
  %1022 = vmatpush1.msra.mxu0 0.0
  %1023 = vmatprep.subr.mxu0 0.0
  %1024 = vmatpush1.msra.mxu0 0.0
  %1025 = vmatprep.subr.mxu0 0.0
  %1026 = vmatpush1.msra.mxu0 0.0
  %1027 = vmatprep.subr.mxu0 0.0
  %1028 = vmatpush1.msra.mxu0 0.0
  %1029 = vmatprep.subr.mxu0 0.0
  %1030 = vmatpush1.msra.mxu0 0.0
  %1031 = vmatprep.subr.mxu0 0.0
  %1032 = vmatpush1.msra.mxu0 0.0
  %1033 = vmatprep.subr.mxu0 0.0
  %1034 = vmatpush1.msra.mxu0 0.0
  %1035 = vmatprep.subr.mxu0 0.0
  %1036 = vmatpush1.msra.mxu0 0.0
  %1037 = vmatprep.subr.mxu0 0.0
  %1038 = vmatpush1.msra.mxu0 0.0
  %1039 = vmatprep.subr.mxu0 0.0
  %1040 = vmatpush1.msra.mxu0 0.0
  %1041 = vmatprep.subr.mxu0 0.0
  %1042 = vmatpush1.msra.mxu0 0.0
  %1043 = vmatprep.mubr.f32.mxu0 0.0
  %1044 = vmatmul.mubr.f32.gmra.mrb[0].mxu0 %v418
  %v1045 = vpop.f32.mrb[0].mxu0
  %v1046 = vadd.f32 0.0, %v1045
  %v1047 = vpop.f32.mrb[0].mxu0
  %1048 = vmatprep.mubr.f32.mxu0 0.0
  %1049 = vmatmul.mubr.f32.gmra.mrb[0].mxu0 %v421
  %v1050 = vpop.f32.mrb[0].mxu0
  %v1051 = vadd.f32 0.0, %v1050
  %v1052 = vpop.f32.mrb[0].mxu0
  %1053 = vmatprep.mubr.f32.mxu0 0.0
  %1054 = vmatmul.mubr.f32.gmra.mrb[0].mxu0 %v424
  %v1055 = vpop.f32.mrb[0].mxu0
  %v1056 = vadd.f32 0.0, %v1055
  %v1057 = vpop.f32.mrb[0].mxu0
  %1058 = vmatprep.mubr.f32.mxu0 0.0
  %1059 = vmatmul.mubr.f32.gmra.mrb[0].mxu0 %v427
  %v1060 = vpop.f32.mrb[0].mxu0
  %v1061 = vadd.f32 0.0, %v1060
  %v1062 = vpop.f32.mrb[0].mxu0
  %1063 = vdwg.mxu0
  %v1065 = vsel %vm330, %v975, 0
  %v1068 = vsel %vm330, %v976, 0
  %v1071 = vsel %vm330, %v977, 0
  %v1074 = vsel %vm330, %v978, 0
  %1076 = vmatprep.subr.mxu0 0.0
  %1077 = vmatpush1.msra.mxu0 %v1046
  %1078 = vmatprep.subr.mxu0 0.0
  %1079 = vmatpush1.msra.mxu0 %v1051
  %1080 = vmatprep.subr.mxu0 0.0
  %1081 = vmatpush1.msra.mxu0 %v1056
  %1082 = vmatprep.subr.mxu0 0.0
  %1083 = vmatpush1.msra.mxu0 %v1061
  %1084 = vmatprep.subr.mxu0 0.0
  %1085 = vmatpush1.msra.mxu0 0.0
  %1086 = vmatprep.subr.mxu0 0.0
  %1087 = vmatpush1.msra.mxu0 0.0
  %1088 = vmatprep.subr.mxu0 0.0
  %1089 = vmatpush1.msra.mxu0 0.0
  %1090 = vmatprep.subr.mxu0 0.0
  %1091 = vmatpush1.msra.mxu0 0.0
  %1092 = vmatprep.subr.mxu0 0.0
  %1093 = vmatpush1.msra.mxu0 0.0
  %1094 = vmatprep.subr.mxu0 0.0
  %1095 = vmatpush1.msra.mxu0 0.0
  %1096 = vmatprep.subr.mxu0 0.0
  %1097 = vmatpush1.msra.mxu0 0.0
  %1098 = vmatprep.subr.mxu0 0.0
  %1099 = vmatpush1.msra.mxu0 0.0
  %1100 = vmatprep.subr.mxu0 0.0
  %1101 = vmatpush1.msra.mxu0 0.0
  %1102 = vmatprep.subr.mxu0 0.0
  %1103 = vmatpush1.msra.mxu0 0.0
  %1104 = vmatprep.subr.mxu0 0.0
  %1105 = vmatpush1.msra.mxu0 0.0
  %1106 = vmatprep.subr.mxu0 0.0
  %1107 = vmatpush1.msra.mxu0 0.0
  %1108 = vmatprep.subr.mxu0 0.0
  %1109 = vmatpush1.msra.mxu0 0.0
  %1110 = vmatprep.subr.mxu0 0.0
  %1111 = vmatpush1.msra.mxu0 0.0
  %1112 = vmatprep.subr.mxu0 0.0
  %1113 = vmatpush1.msra.mxu0 0.0
  %1114 = vmatprep.subr.mxu0 0.0
  %1115 = vmatpush1.msra.mxu0 0.0
  %1116 = vmatprep.subr.mxu0 0.0
  %1117 = vmatpush1.msra.mxu0 0.0
  %1118 = vmatprep.subr.mxu0 0.0
  %1119 = vmatpush1.msra.mxu0 0.0
  %1120 = vmatprep.subr.mxu0 0.0
  %1121 = vmatpush1.msra.mxu0 0.0
  %1122 = vmatprep.subr.mxu0 0.0
  %1123 = vmatpush1.msra.mxu0 0.0
  %1124 = vmatprep.subr.mxu0 0.0
  %1125 = vmatpush1.msra.mxu0 0.0
  %1126 = vmatprep.subr.mxu0 0.0
  %1127 = vmatpush1.msra.mxu0 0.0
  %1128 = vmatprep.subr.mxu0 0.0
  %1129 = vmatpush1.msra.mxu0 0.0
  %1130 = vmatprep.subr.mxu0 0.0
  %1131 = vmatpush1.msra.mxu0 0.0
  %1132 = vmatprep.subr.mxu0 0.0
  %1133 = vmatpush1.msra.mxu0 0.0
  %1134 = vmatprep.subr.mxu0 0.0
  %1135 = vmatpush1.msra.mxu0 0.0
  %1136 = vmatprep.subr.mxu0 0.0
  %1137 = vmatpush1.msra.mxu0 0.0
  %1138 = vmatprep.subr.mxu0 0.0
  %1139 = vmatpush1.msra.mxu0 0.0
  %1140 = vmatprep.mubr.f32.mxu0 0.0
  %1141 = vmatmul.mubr.f32.gmra.mrb[0].mxu0 %v1065
  %v1142 = vpop.f32.mrb[0].mxu0
  %v1143 = vadd.f32 0.0, %v1142
  %v1144 = vpop.f32.mrb[0].mxu0
  %1145 = vmatprep.mubr.f32.mxu0 0.0
  %1146 = vmatmul.mubr.f32.gmra.mrb[0].mxu0 %v1068
  %v1147 = vpop.f32.mrb[0].mxu0
  %v1148 = vadd.f32 0.0, %v1147
  %v1149 = vpop.f32.mrb[0].mxu0
  %1150 = vmatprep.mubr.f32.mxu0 0.0
  %1151 = vmatmul.mubr.f32.gmra.mrb[0].mxu0 %v1071
  %v1152 = vpop.f32.mrb[0].mxu0
  %v1153 = vadd.f32 0.0, %v1152
  %v1154 = vpop.f32.mrb[0].mxu0
  %1155 = vmatprep.mubr.f32.mxu0 0.0
  %1156 = vmatmul.mubr.f32.gmra.mrb[0].mxu0 %v1074
  %v1157 = vpop.f32.mrb[0].mxu0
  %v1158 = vadd.f32 0.0, %v1157
  %v1159 = vpop.f32.mrb[0].mxu0
  %1160 = vdwg.mxu0
  %v1162 = vsel %vm330, %v651, 0
  %v1165 = vsel %vm330, %v652, 0
  %v1168 = vsel %vm330, %v653, 0
  %v1171 = vsel %vm330, %v654, 0
  %1173 = vmatprep.subr.mxu0 0.0
  %1174 = vmatpush1.msra.mxu0 %v722
  %1175 = vmatprep.subr.mxu0 0.0
  %1176 = vmatpush1.msra.mxu0 %v727
  %1177 = vmatprep.subr.mxu0 0.0
  %1178 = vmatpush1.msra.mxu0 %v732
  %1179 = vmatprep.subr.mxu0 0.0
  %1180 = vmatpush1.msra.mxu0 %v737
  %1181 = vmatprep.subr.mxu0 0.0
  %1182 = vmatpush1.msra.mxu0 0.0
  %1183 = vmatprep.subr.mxu0 0.0
  %1184 = vmatpush1.msra.mxu0 0.0
  %1185 = vmatprep.subr.mxu0 0.0
  %1186 = vmatpush1.msra.mxu0 0.0
  %1187 = vmatprep.subr.mxu0 0.0
  %1188 = vmatpush1.msra.mxu0 0.0
  %1189 = vmatprep.subr.mxu0 0.0
  %1190 = vmatpush1.msra.mxu0 0.0
  %1191 = vmatprep.subr.mxu0 0.0
  %1192 = vmatpush1.msra.mxu0 0.0
  %1193 = vmatprep.subr.mxu0 0.0
  %1194 = vmatpush1.msra.mxu0 0.0
  %1195 = vmatprep.subr.mxu0 0.0
  %1196 = vmatpush1.msra.mxu0 0.0
  %1197 = vmatprep.subr.mxu0 0.0
  %1198 = vmatpush1.msra.mxu0 0.0
  %1199 = vmatprep.subr.mxu0 0.0
  %1200 = vmatpush1.msra.mxu0 0.0
  %1201 = vmatprep.subr.mxu0 0.0
  %1202 = vmatpush1.msra.mxu0 0.0
  %1203 = vmatprep.subr.mxu0 0.0
  %1204 = vmatpush1.msra.mxu0 0.0
  %1205 = vmatprep.subr.mxu0 0.0
  %1206 = vmatpush1.msra.mxu0 0.0
  %1207 = vmatprep.subr.mxu0 0.0
  %1208 = vmatpush1.msra.mxu0 0.0
  %1209 = vmatprep.subr.mxu0 0.0
  %1210 = vmatpush1.msra.mxu0 0.0
  %1211 = vmatprep.subr.mxu0 0.0
  %1212 = vmatpush1.msra.mxu0 0.0
  %1213 = vmatprep.subr.mxu0 0.0
  %1214 = vmatpush1.msra.mxu0 0.0
  %1215 = vmatprep.subr.mxu0 0.0
  %1216 = vmatpush1.msra.mxu0 0.0
  %1217 = vmatprep.subr.mxu0 0.0
  %1218 = vmatpush1.msra.mxu0 0.0
  %1219 = vmatprep.subr.mxu0 0.0
  %1220 = vmatpush1.msra.mxu0 0.0
  %1221 = vmatprep.subr.mxu0 0.0
  %1222 = vmatpush1.msra.mxu0 0.0
  %1223 = vmatprep.subr.mxu0 0.0
  %1224 = vmatpush1.msra.mxu0 0.0
  %1225 = vmatprep.subr.mxu0 0.0
  %1226 = vmatpush1.msra.mxu0 0.0
  %1227 = vmatprep.subr.mxu0 0.0
  %1228 = vmatpush1.msra.mxu0 0.0
  %1229 = vmatprep.subr.mxu0 0.0
  %1230 = vmatpush1.msra.mxu0 0.0
  %1231 = vmatprep.subr.mxu0 0.0
  %1232 = vmatpush1.msra.mxu0 0.0
  %1233 = vmatprep.subr.mxu0 0.0
  %1234 = vmatpush1.msra.mxu0 0.0
  %1235 = vmatprep.subr.mxu0 0.0
  %1236 = vmatpush1.msra.mxu0 0.0
  %1237 = vmatprep.mubr.f32.mxu0 0.0
  %1238 = vmatmul.mubr.f32.gmra.mrb[0].mxu0 %v1162
  %v1239 = vpop.f32.mrb[0].mxu0
  %v1240 = vadd.f32 %v1143, %v1239
  %v1241 = vpop.f32.mrb[0].mxu0
  %1242 = vmatprep.mubr.f32.mxu0 0.0
  %1243 = vmatmul.mubr.f32.gmra.mrb[0].mxu0 %v1165
  %v1244 = vpop.f32.mrb[0].mxu0
  %v1245 = vadd.f32 %v1148, %v1244
  %v1246 = vpop.f32.mrb[0].mxu0
  %1247 = vmatprep.mubr.f32.mxu0 0.0
  %1248 = vmatmul.mubr.f32.gmra.mrb[0].mxu0 %v1168
  %v1249 = vpop.f32.mrb[0].mxu0
  %v1250 = vadd.f32 %v1153, %v1249
  %v1251 = vpop.f32.mrb[0].mxu0
  %1252 = vmatprep.mubr.f32.mxu0 0.0
  %1253 = vmatmul.mubr.f32.gmra.mrb[0].mxu0 %v1171
  %v1254 = vpop.f32.mrb[0].mxu0
  %v1255 = vadd.f32 %v1158, %v1254
  %v1256 = vpop.f32.mrb[0].mxu0
  %1257 = vdwg.mxu0
  %v1258 = vld [vmem:[%s4 + $0x40] sm:$0xff]
  %v1259 = vld [vmem:[%s4 + $0x48] sm:$0xff]
  %v1260 = vld [vmem:[%s4 + $0x50] sm:$0xff]
  %v1261 = vld [vmem:[%s4 + $0x58] sm:$0xff]
  %v1262 = vld [vmem:[%s4 + $0x140] sm:$0xff]
  %v1263 = vld [vmem:[%s4 + $0x148] sm:$0xff]
  %v1264 = vld [vmem:[%s4 + $0x150] sm:$0xff]
  %v1265 = vld [vmem:[%s4 + $0x158] sm:$0xff]
  %v1266 = vld [vmem:[%s5 + $0x6e] sm:$0x1]
  %v1267 = vlaneseq
  %v1268 = vshrl.u32 %v1267, 7
  %v1269 = vsub.s32 0, %v1268
  %v1270 = vrot.slane %v1266, %v1269
  %1271 = vmatprep.subr.mxu0 0.0
  %1272 = vmatpush1.msra.mxu0 %v1258
  %1273 = vmatprep.subr.mxu0 0.0
  %1274 = vmatpush1.msra.mxu0 %v1259
  %1275 = vmatprep.subr.mxu0 0.0
  %1276 = vmatpush1.msra.mxu0 %v1260
  %1277 = vmatprep.subr.mxu0 0.0
  %1278 = vmatpush1.msra.mxu0 %v1261
  %1279 = vmatprep.subr.mxu0 0.0
  %1280 = vmatpush1.msra.mxu0 0.0
  %1281 = vmatprep.subr.mxu0 0.0
  %1282 = vmatpush1.msra.mxu0 0.0
  %1283 = vmatprep.subr.mxu0 0.0
  %1284 = vmatpush1.msra.mxu0 0.0
  %1285 = vmatprep.subr.mxu0 0.0
  %1286 = vmatpush1.msra.mxu0 0.0
  %1287 = vmatprep.subr.mxu0 0.0
  %1288 = vmatpush1.msra.mxu0 0.0
  %1289 = vmatprep.subr.mxu0 0.0
  %1290 = vmatpush1.msra.mxu0 0.0
  %1291 = vmatprep.subr.mxu0 0.0
  %1292 = vmatpush1.msra.mxu0 0.0
  %1293 = vmatprep.subr.mxu0 0.0
  %1294 = vmatpush1.msra.mxu0 0.0
  %1295 = vmatprep.subr.mxu0 0.0
  %1296 = vmatpush1.msra.mxu0 0.0
  %1297 = vmatprep.subr.mxu0 0.0
  %1298 = vmatpush1.msra.mxu0 0.0
  %1299 = vmatprep.subr.mxu0 0.0
  %1300 = vmatpush1.msra.mxu0 0.0
  %1301 = vmatprep.subr.mxu0 0.0
  %1302 = vmatpush1.msra.mxu0 0.0
  %1303 = vmatprep.subr.mxu0 0.0
  %1304 = vmatpush1.msra.mxu0 0.0
  %1305 = vmatprep.subr.mxu0 0.0
  %1306 = vmatpush1.msra.mxu0 0.0
  %1307 = vmatprep.subr.mxu0 0.0
  %1308 = vmatpush1.msra.mxu0 0.0
  %1309 = vmatprep.subr.mxu0 0.0
  %1310 = vmatpush1.msra.mxu0 0.0
  %1311 = vmatprep.subr.mxu0 0.0
  %1312 = vmatpush1.msra.mxu0 0.0
  %1313 = vmatprep.subr.mxu0 0.0
  %1314 = vmatpush1.msra.mxu0 0.0
  %1315 = vmatprep.subr.mxu0 0.0
  %1316 = vmatpush1.msra.mxu0 0.0
  %1317 = vmatprep.subr.mxu0 0.0
  %1318 = vmatpush1.msra.mxu0 0.0
  %1319 = vmatprep.subr.mxu0 0.0
  %1320 = vmatpush1.msra.mxu0 0.0
  %1321 = vmatprep.subr.mxu0 0.0
  %1322 = vmatpush1.msra.mxu0 0.0
  %1323 = vmatprep.subr.mxu0 0.0
  %1324 = vmatpush1.msra.mxu0 0.0
  %1325 = vmatprep.subr.mxu0 0.0
  %1326 = vmatpush1.msra.mxu0 0.0
  %1327 = vmatprep.subr.mxu0 0.0
  %1328 = vmatpush1.msra.mxu0 0.0
  %1329 = vmatprep.subr.mxu0 0.0
  %1330 = vmatpush1.msra.mxu0 0.0
  %1331 = vmatprep.subr.mxu0 0.0
  %1332 = vmatpush1.msra.mxu0 0.0
  %1333 = vmatprep.subr.mxu0 0.0
  %1334 = vmatpush1.msra.mxu0 0.0
  %1335 = vmatprep.mubr.f32.mxu0 0.0
  %1336 = vmatmul.mubr.f32.gmra.mrb[0].mxu0 %v418
  %v1337 = vpop.f32.mrb[0].mxu0
  %v1338 = vadd.f32 %v1270, %v1337
  %v1339 = vpop.f32.mrb[0].mxu0
  %1340 = vmatprep.mubr.f32.mxu0 0.0
  %1341 = vmatmul.mubr.f32.gmra.mrb[0].mxu0 %v421
  %v1342 = vpop.f32.mrb[0].mxu0
  %v1343 = vadd.f32 %v1270, %v1342
  %v1344 = vpop.f32.mrb[0].mxu0
  %1345 = vmatprep.mubr.f32.mxu0 0.0
  %1346 = vmatmul.mubr.f32.gmra.mrb[0].mxu0 %v424
  %v1347 = vpop.f32.mrb[0].mxu0
  %v1348 = vadd.f32 %v1270, %v1347
  %v1349 = vpop.f32.mrb[0].mxu0
  %1350 = vmatprep.mubr.f32.mxu0 0.0
  %1351 = vmatmul.mubr.f32.gmra.mrb[0].mxu0 %v427
  %v1352 = vpop.f32.mrb[0].mxu0
  %v1353 = vadd.f32 %v1270, %v1352
  %v1354 = vpop.f32.mrb[0].mxu0
  %1355 = vdwg.mxu0
  %v1357 = vsel %vm330, %v1338, 0
  %v1360 = vsel %vm330, %v1343, 0
  %v1363 = vsel %vm330, %v1348, 0
  %v1366 = vsel %vm330, %v1353, 0
  %1368 = vmatprep.subr.mxu0 0.0
  %1369 = vmatpush1.xpose.msra.mxu0 %v418
  %1370 = vmatprep.subr.mxu0 0.0
  %1371 = vmatpush1.xpose.msra.mxu0 %v421
  %1372 = vmatprep.subr.mxu0 0.0
  %1373 = vmatpush1.xpose.msra.mxu0 %v424
  %1374 = vmatprep.subr.mxu0 0.0
  %1375 = vmatpush1.xpose.msra.mxu0 %v427
  %1376 = vmatprep.subr.mxu0 0.0
  %1377 = vmatpush1.xpose.msra.mxu0 0.0
  %1378 = vmatprep.subr.mxu0 0.0
  %1379 = vmatpush1.xpose.msra.mxu0 0.0
  %1380 = vmatprep.subr.mxu0 0.0
  %1381 = vmatpush1.xpose.msra.mxu0 0.0
  %1382 = vmatprep.subr.mxu0 0.0
  %1383 = vmatpush1.xpose.msra.mxu0 0.0
  %1384 = vmatprep.subr.mxu0 0.0
  %1385 = vmatpush1.xpose.msra.mxu0 0.0
  %1386 = vmatprep.subr.mxu0 0.0
  %1387 = vmatpush1.xpose.msra.mxu0 0.0
  %1388 = vmatprep.subr.mxu0 0.0
  %1389 = vmatpush1.xpose.msra.mxu0 0.0
  %1390 = vmatprep.subr.mxu0 0.0
  %1391 = vmatpush1.xpose.msra.mxu0 0.0
  %1392 = vmatprep.subr.mxu0 0.0
  %1393 = vmatpush1.xpose.msra.mxu0 0.0
  %1394 = vmatprep.subr.mxu0 0.0
  %1395 = vmatpush1.xpose.msra.mxu0 0.0
  %1396 = vmatprep.subr.mxu0 0.0
  %1397 = vmatpush1.xpose.msra.mxu0 0.0
  %1398 = vmatprep.subr.mxu0 0.0
  %1399 = vmatpush1.xpose.msra.mxu0 0.0
  %1400 = vmatprep.subr.mxu0 0.0
  %1401 = vmatpush1.xpose.msra.mxu0 0.0
  %1402 = vmatprep.subr.mxu0 0.0
  %1403 = vmatpush1.xpose.msra.mxu0 0.0
  %1404 = vmatprep.subr.mxu0 0.0
  %1405 = vmatpush1.xpose.msra.mxu0 0.0
  %1406 = vmatprep.subr.mxu0 0.0
  %1407 = vmatpush1.xpose.msra.mxu0 0.0
  %1408 = vmatprep.subr.mxu0 0.0
  %1409 = vmatpush1.xpose.msra.mxu0 0.0
  %1410 = vmatprep.subr.mxu0 0.0
  %1411 = vmatpush1.xpose.msra.mxu0 0.0
  %1412 = vmatprep.subr.mxu0 0.0
  %1413 = vmatpush1.xpose.msra.mxu0 0.0
  %1414 = vmatprep.subr.mxu0 0.0
  %1415 = vmatpush1.xpose.msra.mxu0 0.0
  %1416 = vmatprep.subr.mxu0 0.0
  %1417 = vmatpush1.xpose.msra.mxu0 0.0
  %1418 = vmatprep.subr.mxu0 0.0
  %1419 = vmatpush1.xpose.msra.mxu0 0.0
  %1420 = vmatprep.subr.mxu0 0.0
  %1421 = vmatpush1.xpose.msra.mxu0 0.0
  %1422 = vmatprep.subr.mxu0 0.0
  %1423 = vmatpush1.xpose.msra.mxu0 0.0
  %1424 = vmatprep.subr.mxu0 0.0
  %1425 = vmatpush1.xpose.msra.mxu0 0.0
  %1426 = vmatprep.subr.mxu0 0.0
  %1427 = vmatpush1.xpose.msra.mxu0 0.0
  %1428 = vmatprep.subr.mxu0 0.0
  %1429 = vmatpush1.xpose.msra.mxu0 0.0
  %1430 = vmatprep.subr.mxu0 0.0
  %1431 = vmatpush1.xpose.msra.mxu0 0.0
  %1432 = vmatprep.mubr.f32.mxu0 0.0
  %1433 = vmatmul.mubr.f32.gmra.mrb[0].mxu0 %v1357
  %v1434 = vpop.f32.mrb[0].mxu0
  %v1435 = vadd.f32 %v400, %v1434
  %v1436 = vpop.f32.mrb[0].mxu0
  %1437 = vmatprep.mubr.f32.mxu0 0.0
  %1438 = vmatmul.mubr.f32.gmra.mrb[0].mxu0 %v1360
  %v1439 = vpop.f32.mrb[0].mxu0
  %v1440 = vadd.f32 %v401, %v1439
  %v1441 = vpop.f32.mrb[0].mxu0
  %1442 = vmatprep.mubr.f32.mxu0 0.0
  %1443 = vmatmul.mubr.f32.gmra.mrb[0].mxu0 %v1363
  %v1444 = vpop.f32.mrb[0].mxu0
  %v1445 = vadd.f32 %v402, %v1444
  %v1446 = vpop.f32.mrb[0].mxu0
  %1447 = vmatprep.mubr.f32.mxu0 0.0
  %1448 = vmatmul.mubr.f32.gmra.mrb[0].mxu0 %v1366
  %v1449 = vpop.f32.mrb[0].mxu0
  %v1450 = vadd.f32 %v403, %v1449
  %v1451 = vpop.f32.mrb[0].mxu0
  %1452 = vdwg.mxu0
  %v1453 = vsel %vm330, %v1435, -inf
  %1454 = vmax.xlane.f32.xlu0 %v1453
  %v1455 = vpop.xlane.xlu0 %1454
  %v1456 = vsel %vm330, %v1440, -inf
  %1457 = vmax.xlane.f32.xlu0 %v1456
  %v1458 = vpop.xlane.xlu0 %1457
  %v1459 = vsel %vm330, %v1445, -inf
  %1460 = vmax.xlane.f32.xlu0 %v1459
  %v1461 = vpop.xlane.xlu0 %1460
  %v1462 = vsel %vm330, %v1450, -inf
  %1463 = vmax.xlane.f32.xlu0 %v1462
  %v1464 = vpop.xlane.xlu0 %1463
  %v1465 = vsub.f32 %v1435, %v1455
  %v1466 = vsub.f32 %v1440, %v1458
  %v1467 = vsub.f32 %v1445, %v1461
  %v1468 = vsub.f32 %v1450, %v1464
  %v1469 = vmul.f32 %v1465, 1.442695
  %v1470 = vpow.pop %v1469
  %v1471 = vmul.f32 %v1466, 1.442695
  %v1472 = vpow.pop %v1471
  %v1473 = vmul.f32 %v1467, 1.442695
  %v1474 = vpow.pop %v1473
  %v1475 = vmul.f32 %v1468, 1.442695
  %v1476 = vpow.pop %v1475
  %v1477 = vsel %vm330, %v1470, 0.0
  %1478 = vadd.xlane.f32.xlu0 %v1477
  %v1479 = vpop.xlane.xlu0 %1478
  %v1480 = vsel %vm330, %v1472, 0.0
  %1481 = vadd.xlane.f32.xlu0 %v1480
  %v1482 = vpop.xlane.xlu0 %1481
  %v1483 = vsel %vm330, %v1474, 0.0
  %1484 = vadd.xlane.f32.xlu0 %v1483
  %v1485 = vpop.xlane.xlu0 %1484
  %v1486 = vsel %vm330, %v1476, 0.0
  %1487 = vadd.xlane.f32.xlu0 %v1486
  %v1488 = vpop.xlane.xlu0 %1487
  %v1489 = vrcp.pop %v1479
  %v1490 = vrcp.pop %v1482
  %v1491 = vrcp.pop %v1485
  %v1492 = vrcp.pop %v1488
  %v1493 = vmul.f32 %v1470, %v1489
  %v1494 = vmul.f32 %v1472, %v1490
  %v1495 = vmul.f32 %v1474, %v1491
  %v1496 = vmul.f32 %v1476, %v1492
  %1497 = vmatprep.subr.mxu0 0.0
  %1498 = vmatpush1.msra.mxu0 %v1262
  %1499 = vmatprep.subr.mxu0 0.0
  %1500 = vmatpush1.msra.mxu0 %v1263
  %1501 = vmatprep.subr.mxu0 0.0
  %1502 = vmatpush1.msra.mxu0 %v1264
  %1503 = vmatprep.subr.mxu0 0.0
  %1504 = vmatpush1.msra.mxu0 %v1265
  %1505 = vmatprep.subr.mxu0 0.0
  %1506 = vmatpush1.msra.mxu0 0.0
  %1507 = vmatprep.subr.mxu0 0.0
  %1508 = vmatpush1.msra.mxu0 0.0
  %1509 = vmatprep.subr.mxu0 0.0
  %1510 = vmatpush1.msra.mxu0 0.0
  %1511 = vmatprep.subr.mxu0 0.0
  %1512 = vmatpush1.msra.mxu0 0.0
  %1513 = vmatprep.subr.mxu0 0.0
  %1514 = vmatpush1.msra.mxu0 0.0
  %1515 = vmatprep.subr.mxu0 0.0
  %1516 = vmatpush1.msra.mxu0 0.0
  %1517 = vmatprep.subr.mxu0 0.0
  %1518 = vmatpush1.msra.mxu0 0.0
  %1519 = vmatprep.subr.mxu0 0.0
  %1520 = vmatpush1.msra.mxu0 0.0
  %1521 = vmatprep.subr.mxu0 0.0
  %1522 = vmatpush1.msra.mxu0 0.0
  %1523 = vmatprep.subr.mxu0 0.0
  %1524 = vmatpush1.msra.mxu0 0.0
  %1525 = vmatprep.subr.mxu0 0.0
  %1526 = vmatpush1.msra.mxu0 0.0
  %1527 = vmatprep.subr.mxu0 0.0
  %1528 = vmatpush1.msra.mxu0 0.0
  %1529 = vmatprep.subr.mxu0 0.0
  %1530 = vmatpush1.msra.mxu0 0.0
  %1531 = vmatprep.subr.mxu0 0.0
  %1532 = vmatpush1.msra.mxu0 0.0
  %1533 = vmatprep.subr.mxu0 0.0
  %1534 = vmatpush1.msra.mxu0 0.0
  %1535 = vmatprep.subr.mxu0 0.0
  %1536 = vmatpush1.msra.mxu0 0.0
  %1537 = vmatprep.subr.mxu0 0.0
  %1538 = vmatpush1.msra.mxu0 0.0
  %1539 = vmatprep.subr.mxu0 0.0
  %1540 = vmatpush1.msra.mxu0 0.0
  %1541 = vmatprep.subr.mxu0 0.0
  %1542 = vmatpush1.msra.mxu0 0.0
  %1543 = vmatprep.subr.mxu0 0.0
  %1544 = vmatpush1.msra.mxu0 0.0
  %1545 = vmatprep.subr.mxu0 0.0
  %1546 = vmatpush1.msra.mxu0 0.0
  %1547 = vmatprep.subr.mxu0 0.0
  %1548 = vmatpush1.msra.mxu0 0.0
  %1549 = vmatprep.subr.mxu0 0.0
  %1550 = vmatpush1.msra.mxu0 0.0
  %1551 = vmatprep.subr.mxu0 0.0
  %1552 = vmatpush1.msra.mxu0 0.0
  %1553 = vmatprep.subr.mxu0 0.0
  %1554 = vmatpush1.msra.mxu0 0.0
  %1555 = vmatprep.subr.mxu0 0.0
  %1556 = vmatpush1.msra.mxu0 0.0
  %1557 = vmatprep.subr.mxu0 0.0
  %1558 = vmatpush1.msra.mxu0 0.0
  %1559 = vmatprep.subr.mxu0 0.0
  %1560 = vmatpush1.msra.mxu0 0.0
  %1561 = vmatprep.mubr.f32.mxu0 0.0
  %1562 = vmatmul.mubr.f32.gmra.mrb[0].mxu0 %v418
  %v1563 = vpop.f32.mrb[0].mxu0
  %v1564 = vadd.f32 0.0, %v1563
  %v1565 = vpop.f32.mrb[0].mxu0
  %1566 = vmatprep.mubr.f32.mxu0 0.0
  %1567 = vmatmul.mubr.f32.gmra.mrb[0].mxu0 %v421
  %v1568 = vpop.f32.mrb[0].mxu0
  %v1569 = vadd.f32 0.0, %v1568
  %v1570 = vpop.f32.mrb[0].mxu0
  %1571 = vmatprep.mubr.f32.mxu0 0.0
  %1572 = vmatmul.mubr.f32.gmra.mrb[0].mxu0 %v424
  %v1573 = vpop.f32.mrb[0].mxu0
  %v1574 = vadd.f32 0.0, %v1573
  %v1575 = vpop.f32.mrb[0].mxu0
  %1576 = vmatprep.mubr.f32.mxu0 0.0
  %1577 = vmatmul.mubr.f32.gmra.mrb[0].mxu0 %v427
  %v1578 = vpop.f32.mrb[0].mxu0
  %v1579 = vadd.f32 0.0, %v1578
  %v1580 = vpop.f32.mrb[0].mxu0
  %1581 = vdwg.mxu0
  %v1583 = vsel %vm330, %v1493, 0
  %v1586 = vsel %vm330, %v1494, 0
  %v1589 = vsel %vm330, %v1495, 0
  %v1592 = vsel %vm330, %v1496, 0
  %1594 = vmatprep.subr.mxu0 0.0
  %1595 = vmatpush1.msra.mxu0 %v1564
  %1596 = vmatprep.subr.mxu0 0.0
  %1597 = vmatpush1.msra.mxu0 %v1569
  %1598 = vmatprep.subr.mxu0 0.0
  %1599 = vmatpush1.msra.mxu0 %v1574
  %1600 = vmatprep.subr.mxu0 0.0
  %1601 = vmatpush1.msra.mxu0 %v1579
  %1602 = vmatprep.subr.mxu0 0.0
  %1603 = vmatpush1.msra.mxu0 0.0
  %1604 = vmatprep.subr.mxu0 0.0
  %1605 = vmatpush1.msra.mxu0 0.0
  %1606 = vmatprep.subr.mxu0 0.0
  %1607 = vmatpush1.msra.mxu0 0.0
  %1608 = vmatprep.subr.mxu0 0.0
  %1609 = vmatpush1.msra.mxu0 0.0
  %1610 = vmatprep.subr.mxu0 0.0
  %1611 = vmatpush1.msra.mxu0 0.0
  %1612 = vmatprep.subr.mxu0 0.0
  %1613 = vmatpush1.msra.mxu0 0.0
  %1614 = vmatprep.subr.mxu0 0.0
  %1615 = vmatpush1.msra.mxu0 0.0
  %1616 = vmatprep.subr.mxu0 0.0
  %1617 = vmatpush1.msra.mxu0 0.0
  %1618 = vmatprep.subr.mxu0 0.0
  %1619 = vmatpush1.msra.mxu0 0.0
  %1620 = vmatprep.subr.mxu0 0.0
  %1621 = vmatpush1.msra.mxu0 0.0
  %1622 = vmatprep.subr.mxu0 0.0
  %1623 = vmatpush1.msra.mxu0 0.0
  %1624 = vmatprep.subr.mxu0 0.0
  %1625 = vmatpush1.msra.mxu0 0.0
  %1626 = vmatprep.subr.mxu0 0.0
  %1627 = vmatpush1.msra.mxu0 0.0
  %1628 = vmatprep.subr.mxu0 0.0
  %1629 = vmatpush1.msra.mxu0 0.0
  %1630 = vmatprep.subr.mxu0 0.0
  %1631 = vmatpush1.msra.mxu0 0.0
  %1632 = vmatprep.subr.mxu0 0.0
  %1633 = vmatpush1.msra.mxu0 0.0
  %1634 = vmatprep.subr.mxu0 0.0
  %1635 = vmatpush1.msra.mxu0 0.0
  %1636 = vmatprep.subr.mxu0 0.0
  %1637 = vmatpush1.msra.mxu0 0.0
  %1638 = vmatprep.subr.mxu0 0.0
  %1639 = vmatpush1.msra.mxu0 0.0
  %1640 = vmatprep.subr.mxu0 0.0
  %1641 = vmatpush1.msra.mxu0 0.0
  %1642 = vmatprep.subr.mxu0 0.0
  %1643 = vmatpush1.msra.mxu0 0.0
  %1644 = vmatprep.subr.mxu0 0.0
  %1645 = vmatpush1.msra.mxu0 0.0
  %1646 = vmatprep.subr.mxu0 0.0
  %1647 = vmatpush1.msra.mxu0 0.0
  %1648 = vmatprep.subr.mxu0 0.0
  %1649 = vmatpush1.msra.mxu0 0.0
  %1650 = vmatprep.subr.mxu0 0.0
  %1651 = vmatpush1.msra.mxu0 0.0
  %1652 = vmatprep.subr.mxu0 0.0
  %1653 = vmatpush1.msra.mxu0 0.0
  %1654 = vmatprep.subr.mxu0 0.0
  %1655 = vmatpush1.msra.mxu0 0.0
  %1656 = vmatprep.subr.mxu0 0.0
  %1657 = vmatpush1.msra.mxu0 0.0
  %1658 = vmatprep.mubr.f32.mxu0 0.0
  %1659 = vmatmul.mubr.f32.gmra.mrb[0].mxu0 %v1583
  %v1660 = vpop.f32.mrb[0].mxu0
  %v1661 = vadd.f32 0.0, %v1660
  %v1662 = vpop.f32.mrb[0].mxu0
  %1663 = vmatprep.mubr.f32.mxu0 0.0
  %1664 = vmatmul.mubr.f32.gmra.mrb[0].mxu0 %v1586
  %v1665 = vpop.f32.mrb[0].mxu0
  %v1666 = vadd.f32 0.0, %v1665
  %v1667 = vpop.f32.mrb[0].mxu0
  %1668 = vmatprep.mubr.f32.mxu0 0.0
  %1669 = vmatmul.mubr.f32.gmra.mrb[0].mxu0 %v1589
  %v1670 = vpop.f32.mrb[0].mxu0
  %v1671 = vadd.f32 0.0, %v1670
  %v1672 = vpop.f32.mrb[0].mxu0
  %1673 = vmatprep.mubr.f32.mxu0 0.0
  %1674 = vmatmul.mubr.f32.gmra.mrb[0].mxu0 %v1592
  %v1675 = vpop.f32.mrb[0].mxu0
  %v1676 = vadd.f32 0.0, %v1675
  %v1677 = vpop.f32.mrb[0].mxu0
  %1678 = vdwg.mxu0
  %v1679 = vadd.f32 %v1240, %v1661
  %v1680 = vadd.f32 %v1245, %v1666
  %v1681 = vadd.f32 %v1250, %v1671
  %v1682 = vadd.f32 %v1255, %v1676
  %v1683 = vld [vmem:[%s4 + $0x60] sm:$0xff]
  %v1684 = vld [vmem:[%s4 + $0x68] sm:$0xff]
  %v1685 = vld [vmem:[%s4 + $0x70] sm:$0xff]
  %v1686 = vld [vmem:[%s4 + $0x78] sm:$0xff]
  %v1687 = vld [vmem:[%s4 + $0x160] sm:$0xff]
  %v1688 = vld [vmem:[%s4 + $0x168] sm:$0xff]
  %v1689 = vld [vmem:[%s4 + $0x170] sm:$0xff]
  %v1690 = vld [vmem:[%s4 + $0x178] sm:$0xff]
  %v1691 = vld [vmem:[%s5 + $0x6f] sm:$0x1]
  %v1692 = vlaneseq
  %v1693 = vshrl.u32 %v1692, 7
  %v1694 = vsub.s32 0, %v1693
  %v1695 = vrot.slane %v1691, %v1694
  %1696 = vmatprep.subr.mxu0 0.0
  %1697 = vmatpush1.msra.mxu0 %v1683
  %1698 = vmatprep.subr.mxu0 0.0
  %1699 = vmatpush1.msra.mxu0 %v1684
  %1700 = vmatprep.subr.mxu0 0.0
  %1701 = vmatpush1.msra.mxu0 %v1685
  %1702 = vmatprep.subr.mxu0 0.0
  %1703 = vmatpush1.msra.mxu0 %v1686
  %1704 = vmatprep.subr.mxu0 0.0
  %1705 = vmatpush1.msra.mxu0 0.0
  %1706 = vmatprep.subr.mxu0 0.0
  %1707 = vmatpush1.msra.mxu0 0.0
  %1708 = vmatprep.subr.mxu0 0.0
  %1709 = vmatpush1.msra.mxu0 0.0
  %1710 = vmatprep.subr.mxu0 0.0
  %1711 = vmatpush1.msra.mxu0 0.0
  %1712 = vmatprep.subr.mxu0 0.0
  %1713 = vmatpush1.msra.mxu0 0.0
  %1714 = vmatprep.subr.mxu0 0.0
  %1715 = vmatpush1.msra.mxu0 0.0
  %1716 = vmatprep.subr.mxu0 0.0
  %1717 = vmatpush1.msra.mxu0 0.0
  %1718 = vmatprep.subr.mxu0 0.0
  %1719 = vmatpush1.msra.mxu0 0.0
  %1720 = vmatprep.subr.mxu0 0.0
  %1721 = vmatpush1.msra.mxu0 0.0
  %1722 = vmatprep.subr.mxu0 0.0
  %1723 = vmatpush1.msra.mxu0 0.0
  %1724 = vmatprep.subr.mxu0 0.0
  %1725 = vmatpush1.msra.mxu0 0.0
  %1726 = vmatprep.subr.mxu0 0.0
  %1727 = vmatpush1.msra.mxu0 0.0
  %1728 = vmatprep.subr.mxu0 0.0
  %1729 = vmatpush1.msra.mxu0 0.0
  %1730 = vmatprep.subr.mxu0 0.0
  %1731 = vmatpush1.msra.mxu0 0.0
  %1732 = vmatprep.subr.mxu0 0.0
  %1733 = vmatpush1.msra.mxu0 0.0
  %1734 = vmatprep.subr.mxu0 0.0
  %1735 = vmatpush1.msra.mxu0 0.0
  %1736 = vmatprep.subr.mxu0 0.0
  %1737 = vmatpush1.msra.mxu0 0.0
  %1738 = vmatprep.subr.mxu0 0.0
  %1739 = vmatpush1.msra.mxu0 0.0
  %1740 = vmatprep.subr.mxu0 0.0
  %1741 = vmatpush1.msra.mxu0 0.0
  %1742 = vmatprep.subr.mxu0 0.0
  %1743 = vmatpush1.msra.mxu0 0.0
  %1744 = vmatprep.subr.mxu0 0.0
  %1745 = vmatpush1.msra.mxu0 0.0
  %1746 = vmatprep.subr.mxu0 0.0
  %1747 = vmatpush1.msra.mxu0 0.0
  %1748 = vmatprep.subr.mxu0 0.0
  %1749 = vmatpush1.msra.mxu0 0.0
  %1750 = vmatprep.subr.mxu0 0.0
  %1751 = vmatpush1.msra.mxu0 0.0
  %1752 = vmatprep.subr.mxu0 0.0
  %1753 = vmatpush1.msra.mxu0 0.0
  %1754 = vmatprep.subr.mxu0 0.0
  %1755 = vmatpush1.msra.mxu0 0.0
  %1756 = vmatprep.subr.mxu0 0.0
  %1757 = vmatpush1.msra.mxu0 0.0
  %1758 = vmatprep.subr.mxu0 0.0
  %1759 = vmatpush1.msra.mxu0 0.0
  %1760 = vmatprep.mubr.f32.mxu0 0.0
  %1761 = vmatmul.mubr.f32.gmra.mrb[0].mxu0 %v418
  %v1762 = vpop.f32.mrb[0].mxu0
  %v1763 = vadd.f32 %v1695, %v1762
  %v1764 = vpop.f32.mrb[0].mxu0
  %1765 = vmatprep.mubr.f32.mxu0 0.0
  %1766 = vmatmul.mubr.f32.gmra.mrb[0].mxu0 %v421
  %v1767 = vpop.f32.mrb[0].mxu0
  %v1768 = vadd.f32 %v1695, %v1767
  %v1769 = vpop.f32.mrb[0].mxu0
  %1770 = vmatprep.mubr.f32.mxu0 0.0
  %1771 = vmatmul.mubr.f32.gmra.mrb[0].mxu0 %v424
  %v1772 = vpop.f32.mrb[0].mxu0
  %v1773 = vadd.f32 %v1695, %v1772
  %v1774 = vpop.f32.mrb[0].mxu0
  %1775 = vmatprep.mubr.f32.mxu0 0.0
  %1776 = vmatmul.mubr.f32.gmra.mrb[0].mxu0 %v427
  %v1777 = vpop.f32.mrb[0].mxu0
  %v1778 = vadd.f32 %v1695, %v1777
  %v1779 = vpop.f32.mrb[0].mxu0
  %1780 = vdwg.mxu0
  %v1782 = vsel %vm330, %v1763, 0
  %v1785 = vsel %vm330, %v1768, 0
  %v1788 = vsel %vm330, %v1773, 0
  %v1791 = vsel %vm330, %v1778, 0
  %1793 = vmatprep.subr.mxu0 0.0
  %1794 = vmatpush1.xpose.msra.mxu0 %v418
  %1795 = vmatprep.subr.mxu0 0.0
  %1796 = vmatpush1.xpose.msra.mxu0 %v421
  %1797 = vmatprep.subr.mxu0 0.0
  %1798 = vmatpush1.xpose.msra.mxu0 %v424
  %1799 = vmatprep.subr.mxu0 0.0
  %1800 = vmatpush1.xpose.msra.mxu0 %v427
  %1801 = vmatprep.subr.mxu0 0.0
  %1802 = vmatpush1.xpose.msra.mxu0 0.0
  %1803 = vmatprep.subr.mxu0 0.0
  %1804 = vmatpush1.xpose.msra.mxu0 0.0
  %1805 = vmatprep.subr.mxu0 0.0
  %1806 = vmatpush1.xpose.msra.mxu0 0.0
  %1807 = vmatprep.subr.mxu0 0.0
  %1808 = vmatpush1.xpose.msra.mxu0 0.0
  %1809 = vmatprep.subr.mxu0 0.0
  %1810 = vmatpush1.xpose.msra.mxu0 0.0
  %1811 = vmatprep.subr.mxu0 0.0
  %1812 = vmatpush1.xpose.msra.mxu0 0.0
  %1813 = vmatprep.subr.mxu0 0.0
  %1814 = vmatpush1.xpose.msra.mxu0 0.0
  %1815 = vmatprep.subr.mxu0 0.0
  %1816 = vmatpush1.xpose.msra.mxu0 0.0
  %1817 = vmatprep.subr.mxu0 0.0
  %1818 = vmatpush1.xpose.msra.mxu0 0.0
  %1819 = vmatprep.subr.mxu0 0.0
  %1820 = vmatpush1.xpose.msra.mxu0 0.0
  %1821 = vmatprep.subr.mxu0 0.0
  %1822 = vmatpush1.xpose.msra.mxu0 0.0
  %1823 = vmatprep.subr.mxu0 0.0
  %1824 = vmatpush1.xpose.msra.mxu0 0.0
  %1825 = vmatprep.subr.mxu0 0.0
  %1826 = vmatpush1.xpose.msra.mxu0 0.0
  %1827 = vmatprep.subr.mxu0 0.0
  %1828 = vmatpush1.xpose.msra.mxu0 0.0
  %1829 = vmatprep.subr.mxu0 0.0
  %1830 = vmatpush1.xpose.msra.mxu0 0.0
  %1831 = vmatprep.subr.mxu0 0.0
  %1832 = vmatpush1.xpose.msra.mxu0 0.0
  %1833 = vmatprep.subr.mxu0 0.0
  %1834 = vmatpush1.xpose.msra.mxu0 0.0
  %1835 = vmatprep.subr.mxu0 0.0
  %1836 = vmatpush1.xpose.msra.mxu0 0.0
  %1837 = vmatprep.subr.mxu0 0.0
  %1838 = vmatpush1.xpose.msra.mxu0 0.0
  %1839 = vmatprep.subr.mxu0 0.0
  %1840 = vmatpush1.xpose.msra.mxu0 0.0
  %1841 = vmatprep.subr.mxu0 0.0
  %1842 = vmatpush1.xpose.msra.mxu0 0.0
  %1843 = vmatprep.subr.mxu0 0.0
  %1844 = vmatpush1.xpose.msra.mxu0 0.0
  %1845 = vmatprep.subr.mxu0 0.0
  %1846 = vmatpush1.xpose.msra.mxu0 0.0
  %1847 = vmatprep.subr.mxu0 0.0
  %1848 = vmatpush1.xpose.msra.mxu0 0.0
  %1849 = vmatprep.subr.mxu0 0.0
  %1850 = vmatpush1.xpose.msra.mxu0 0.0
  %1851 = vmatprep.subr.mxu0 0.0
  %1852 = vmatpush1.xpose.msra.mxu0 0.0
  %1853 = vmatprep.subr.mxu0 0.0
  %1854 = vmatpush1.xpose.msra.mxu0 0.0
  %1855 = vmatprep.subr.mxu0 0.0
  %1856 = vmatpush1.xpose.msra.mxu0 0.0
  %1857 = vmatprep.mubr.f32.mxu0 0.0
  %1858 = vmatmul.mubr.f32.gmra.mrb[0].mxu0 %v1782
  %v1859 = vpop.f32.mrb[0].mxu0
  %v1860 = vadd.f32 %v400, %v1859
  %v1861 = vpop.f32.mrb[0].mxu0
  %1862 = vmatprep.mubr.f32.mxu0 0.0
  %1863 = vmatmul.mubr.f32.gmra.mrb[0].mxu0 %v1785
  %v1864 = vpop.f32.mrb[0].mxu0
  %v1865 = vadd.f32 %v401, %v1864
  %v1866 = vpop.f32.mrb[0].mxu0
  %1867 = vmatprep.mubr.f32.mxu0 0.0
  %1868 = vmatmul.mubr.f32.gmra.mrb[0].mxu0 %v1788
  %v1869 = vpop.f32.mrb[0].mxu0
  %v1870 = vadd.f32 %v402, %v1869
  %v1871 = vpop.f32.mrb[0].mxu0
  %1872 = vmatprep.mubr.f32.mxu0 0.0
  %1873 = vmatmul.mubr.f32.gmra.mrb[0].mxu0 %v1791
  %v1874 = vpop.f32.mrb[0].mxu0
  %v1875 = vadd.f32 %v403, %v1874
  %v1876 = vpop.f32.mrb[0].mxu0
  %1877 = vdwg.mxu0
  %v1878 = vsel %vm330, %v1860, -inf
  %1879 = vmax.xlane.f32.xlu0 %v1878
  %v1880 = vpop.xlane.xlu0 %1879
  %v1881 = vsel %vm330, %v1865, -inf
  %1882 = vmax.xlane.f32.xlu0 %v1881
  %v1883 = vpop.xlane.xlu0 %1882
  %v1884 = vsel %vm330, %v1870, -inf
  %1885 = vmax.xlane.f32.xlu0 %v1884
  %v1886 = vpop.xlane.xlu0 %1885
  %v1887 = vsel %vm330, %v1875, -inf
  %1888 = vmax.xlane.f32.xlu0 %v1887
  %v1889 = vpop.xlane.xlu0 %1888
  %v1890 = vsub.f32 %v1860, %v1880
  %v1891 = vsub.f32 %v1865, %v1883
  %v1892 = vsub.f32 %v1870, %v1886
  %v1893 = vsub.f32 %v1875, %v1889
  %v1894 = vmul.f32 %v1890, 1.442695
  %v1895 = vpow.pop %v1894
  %v1896 = vmul.f32 %v1891, 1.442695
  %v1897 = vpow.pop %v1896
  %v1898 = vmul.f32 %v1892, 1.442695
  %v1899 = vpow.pop %v1898
  %v1900 = vmul.f32 %v1893, 1.442695
  %v1901 = vpow.pop %v1900
  %v1902 = vsel %vm330, %v1895, 0.0
  %1903 = vadd.xlane.f32.xlu0 %v1902
  %v1904 = vpop.xlane.xlu0 %1903
  %v1905 = vsel %vm330, %v1897, 0.0
  %1906 = vadd.xlane.f32.xlu0 %v1905
  %v1907 = vpop.xlane.xlu0 %1906
  %v1908 = vsel %vm330, %v1899, 0.0
  %1909 = vadd.xlane.f32.xlu0 %v1908
  %v1910 = vpop.xlane.xlu0 %1909
  %v1911 = vsel %vm330, %v1901, 0.0
  %1912 = vadd.xlane.f32.xlu0 %v1911
  %v1913 = vpop.xlane.xlu0 %1912
  %v1914 = vrcp.pop %v1904
  %v1915 = vrcp.pop %v1907
  %v1916 = vrcp.pop %v1910
  %v1917 = vrcp.pop %v1913
  %v1918 = vmul.f32 %v1895, %v1914
  %v1919 = vmul.f32 %v1897, %v1915
  %v1920 = vmul.f32 %v1899, %v1916
  %v1921 = vmul.f32 %v1901, %v1917
  %1922 = vmatprep.subr.mxu0 0.0
  %1923 = vmatpush1.msra.mxu0 %v1687
  %1924 = vmatprep.subr.mxu0 0.0
  %1925 = vmatpush1.msra.mxu0 %v1688
  %1926 = vmatprep.subr.mxu0 0.0
  %1927 = vmatpush1.msra.mxu0 %v1689
  %1928 = vmatprep.subr.mxu0 0.0
  %1929 = vmatpush1.msra.mxu0 %v1690
  %1930 = vmatprep.subr.mxu0 0.0
  %1931 = vmatpush1.msra.mxu0 0.0
  %1932 = vmatprep.subr.mxu0 0.0
  %1933 = vmatpush1.msra.mxu0 0.0
  %1934 = vmatprep.subr.mxu0 0.0
  %1935 = vmatpush1.msra.mxu0 0.0
  %1936 = vmatprep.subr.mxu0 0.0
  %1937 = vmatpush1.msra.mxu0 0.0
  %1938 = vmatprep.subr.mxu0 0.0
  %1939 = vmatpush1.msra.mxu0 0.0
  %1940 = vmatprep.subr.mxu0 0.0
  %1941 = vmatpush1.msra.mxu0 0.0
  %1942 = vmatprep.subr.mxu0 0.0
  %1943 = vmatpush1.msra.mxu0 0.0
  %1944 = vmatprep.subr.mxu0 0.0
  %1945 = vmatpush1.msra.mxu0 0.0
  %1946 = vmatprep.subr.mxu0 0.0
  %1947 = vmatpush1.msra.mxu0 0.0
  %1948 = vmatprep.subr.mxu0 0.0
  %1949 = vmatpush1.msra.mxu0 0.0
  %1950 = vmatprep.subr.mxu0 0.0
  %1951 = vmatpush1.msra.mxu0 0.0
  %1952 = vmatprep.subr.mxu0 0.0
  %1953 = vmatpush1.msra.mxu0 0.0
  %1954 = vmatprep.subr.mxu0 0.0
  %1955 = vmatpush1.msra.mxu0 0.0
  %1956 = vmatprep.subr.mxu0 0.0
  %1957 = vmatpush1.msra.mxu0 0.0
  %1958 = vmatprep.subr.mxu0 0.0
  %1959 = vmatpush1.msra.mxu0 0.0
  %1960 = vmatprep.subr.mxu0 0.0
  %1961 = vmatpush1.msra.mxu0 0.0
  %1962 = vmatprep.subr.mxu0 0.0
  %1963 = vmatpush1.msra.mxu0 0.0
  %1964 = vmatprep.subr.mxu0 0.0
  %1965 = vmatpush1.msra.mxu0 0.0
  %1966 = vmatprep.subr.mxu0 0.0
  %1967 = vmatpush1.msra.mxu0 0.0
  %1968 = vmatprep.subr.mxu0 0.0
  %1969 = vmatpush1.msra.mxu0 0.0
  %1970 = vmatprep.subr.mxu0 0.0
  %1971 = vmatpush1.msra.mxu0 0.0
  %1972 = vmatprep.subr.mxu0 0.0
  %1973 = vmatpush1.msra.mxu0 0.0
  %1974 = vmatprep.subr.mxu0 0.0
  %1975 = vmatpush1.msra.mxu0 0.0
  %1976 = vmatprep.subr.mxu0 0.0
  %1977 = vmatpush1.msra.mxu0 0.0
  %1978 = vmatprep.subr.mxu0 0.0
  %1979 = vmatpush1.msra.mxu0 0.0
  %1980 = vmatprep.subr.mxu0 0.0
  %1981 = vmatpush1.msra.mxu0 0.0
  %1982 = vmatprep.subr.mxu0 0.0
  %1983 = vmatpush1.msra.mxu0 0.0
  %1984 = vmatprep.subr.mxu0 0.0
  %1985 = vmatpush1.msra.mxu0 0.0
  %1986 = vmatprep.mubr.f32.mxu0 0.0
  %1987 = vmatmul.mubr.f32.gmra.mrb[0].mxu0 %v418
  %v1988 = vpop.f32.mrb[0].mxu0
  %v1989 = vadd.f32 0.0, %v1988
  %v1990 = vpop.f32.mrb[0].mxu0
  %1991 = vmatprep.mubr.f32.mxu0 0.0
  %1992 = vmatmul.mubr.f32.gmra.mrb[0].mxu0 %v421
  %v1993 = vpop.f32.mrb[0].mxu0
  %v1994 = vadd.f32 0.0, %v1993
  %v1995 = vpop.f32.mrb[0].mxu0
  %1996 = vmatprep.mubr.f32.mxu0 0.0
  %1997 = vmatmul.mubr.f32.gmra.mrb[0].mxu0 %v424
  %v1998 = vpop.f32.mrb[0].mxu0
  %v1999 = vadd.f32 0.0, %v1998
  %v2000 = vpop.f32.mrb[0].mxu0
  %2001 = vmatprep.mubr.f32.mxu0 0.0
  %2002 = vmatmul.mubr.f32.gmra.mrb[0].mxu0 %v427
  %v2003 = vpop.f32.mrb[0].mxu0
  %v2004 = vadd.f32 0.0, %v2003
  %v2005 = vpop.f32.mrb[0].mxu0
  %2006 = vdwg.mxu0
  %v2008 = vsel %vm330, %v1918, 0
  %v2011 = vsel %vm330, %v1919, 0
  %v2014 = vsel %vm330, %v1920, 0
  %v2017 = vsel %vm330, %v1921, 0
  %2019 = vmatprep.subr.mxu0 0.0
  %2020 = vmatpush1.msra.mxu0 %v1989
  %2021 = vmatprep.subr.mxu0 0.0
  %2022 = vmatpush1.msra.mxu0 %v1994
  %2023 = vmatprep.subr.mxu0 0.0
  %2024 = vmatpush1.msra.mxu0 %v1999
  %2025 = vmatprep.subr.mxu0 0.0
  %2026 = vmatpush1.msra.mxu0 %v2004
  %2027 = vmatprep.subr.mxu0 0.0
  %2028 = vmatpush1.msra.mxu0 0.0
  %2029 = vmatprep.subr.mxu0 0.0
  %2030 = vmatpush1.msra.mxu0 0.0
  %2031 = vmatprep.subr.mxu0 0.0
  %2032 = vmatpush1.msra.mxu0 0.0
  %2033 = vmatprep.subr.mxu0 0.0
  %2034 = vmatpush1.msra.mxu0 0.0
  %2035 = vmatprep.subr.mxu0 0.0
  %2036 = vmatpush1.msra.mxu0 0.0
  %2037 = vmatprep.subr.mxu0 0.0
  %2038 = vmatpush1.msra.mxu0 0.0
  %2039 = vmatprep.subr.mxu0 0.0
  %2040 = vmatpush1.msra.mxu0 0.0
  %2041 = vmatprep.subr.mxu0 0.0
  %2042 = vmatpush1.msra.mxu0 0.0
  %2043 = vmatprep.subr.mxu0 0.0
  %2044 = vmatpush1.msra.mxu0 0.0
  %2045 = vmatprep.subr.mxu0 0.0
  %2046 = vmatpush1.msra.mxu0 0.0
  %2047 = vmatprep.subr.mxu0 0.0
  %2048 = vmatpush1.msra.mxu0 0.0
  %2049 = vmatprep.subr.mxu0 0.0
  %2050 = vmatpush1.msra.mxu0 0.0
  %2051 = vmatprep.subr.mxu0 0.0
  %2052 = vmatpush1.msra.mxu0 0.0
  %2053 = vmatprep.subr.mxu0 0.0
  %2054 = vmatpush1.msra.mxu0 0.0
  %2055 = vmatprep.subr.mxu0 0.0
  %2056 = vmatpush1.msra.mxu0 0.0
  %2057 = vmatprep.subr.mxu0 0.0
  %2058 = vmatpush1.msra.mxu0 0.0
  %2059 = vmatprep.subr.mxu0 0.0
  %2060 = vmatpush1.msra.mxu0 0.0
  %2061 = vmatprep.subr.mxu0 0.0
  %2062 = vmatpush1.msra.mxu0 0.0
  %2063 = vmatprep.subr.mxu0 0.0
  %2064 = vmatpush1.msra.mxu0 0.0
  %2065 = vmatprep.subr.mxu0 0.0
  %2066 = vmatpush1.msra.mxu0 0.0
  %2067 = vmatprep.subr.mxu0 0.0
  %2068 = vmatpush1.msra.mxu0 0.0
  %2069 = vmatprep.subr.mxu0 0.0
  %2070 = vmatpush1.msra.mxu0 0.0
  %2071 = vmatprep.subr.mxu0 0.0
  %2072 = vmatpush1.msra.mxu0 0.0
  %2073 = vmatprep.subr.mxu0 0.0
  %2074 = vmatpush1.msra.mxu0 0.0
  %2075 = vmatprep.subr.mxu0 0.0
  %2076 = vmatpush1.msra.mxu0 0.0
  %2077 = vmatprep.subr.mxu0 0.0
  %2078 = vmatpush1.msra.mxu0 0.0
  %2079 = vmatprep.subr.mxu0 0.0
  %2080 = vmatpush1.msra.mxu0 0.0
  %2081 = vmatprep.subr.mxu0 0.0
  %2082 = vmatpush1.msra.mxu0 0.0
  %2083 = vmatprep.mubr.f32.mxu0 0.0
  %2084 = vmatmul.mubr.f32.gmra.mrb[0].mxu0 %v2008
  %v2085 = vpop.f32.mrb[0].mxu0
  %v2086 = vadd.f32 0.0, %v2085
  %v2087 = vpop.f32.mrb[0].mxu0
  %2088 = vmatprep.mubr.f32.mxu0 0.0
  %2089 = vmatmul.mubr.f32.gmra.mrb[0].mxu0 %v2011
  %v2090 = vpop.f32.mrb[0].mxu0
  %v2091 = vadd.f32 0.0, %v2090
  %v2092 = vpop.f32.mrb[0].mxu0
  %2093 = vmatprep.mubr.f32.mxu0 0.0
  %2094 = vmatmul.mubr.f32.gmra.mrb[0].mxu0 %v2014
  %v2095 = vpop.f32.mrb[0].mxu0
  %v2096 = vadd.f32 0.0, %v2095
  %v2097 = vpop.f32.mrb[0].mxu0
  %2098 = vmatprep.mubr.f32.mxu0 0.0
  %2099 = vmatmul.mubr.f32.gmra.mrb[0].mxu0 %v2017
  %v2100 = vpop.f32.mrb[0].mxu0
  %v2101 = vadd.f32 0.0, %v2100
  %v2102 = vpop.f32.mrb[0].mxu0
  %2103 = vdwg.mxu0
  %v2104 = vadd.f32 %v1679, %v2086
  %v2105 = vadd.f32 %v1680, %v2091
  %v2106 = vadd.f32 %v1681, %v2096
  %v2107 = vadd.f32 %v1682, %v2101
  %v2108 = vld [vmem:[%s5 + $0x70] sm:$0x1]
  %v2109 = vlaneseq
  %v2110 = vshrl.u32 %v2109, 7
  %v2111 = vsub.s32 0, %v2110
  %v2112 = vrot.slane %v2108, %v2111
  %v2113 = vadd.f32 %v2104, %v2112
  %v2114 = vadd.f32 %v2105, %v2112
  %v2115 = vadd.f32 %v2106, %v2112
  %v2116 = vadd.f32 %v2107, %v2112
  %v2117 = vadd.f32 %v2113, %v396
  %v2118 = vadd.f32 %v2114, %v397
  %v2119 = vadd.f32 %v2115, %v398
  %v2120 = vadd.f32 %v2116, %v399
  %v2121 = vld [vmem:[%s5 + $0x71] sm:$0x1]
  %v2122 = vld [vmem:[%s5 + $0x72] sm:$0x1]
  %v2123 = vsel %vm330, %v2117, 0.0
  %2124 = vadd.xlane.f32.xlu0 %v2123
  %v2125 = vpop.xlane.xlu0 %2124
  %v2126 = vsel %vm330, %v2118, 0.0
  %2127 = vadd.xlane.f32.xlu0 %v2126
  %v2128 = vpop.xlane.xlu0 %2127
  %v2129 = vsel %vm330, %v2119, 0.0
  %2130 = vadd.xlane.f32.xlu0 %v2129
  %v2131 = vpop.xlane.xlu0 %2130
  %v2132 = vsel %vm330, %v2120, 0.0
  %2133 = vadd.xlane.f32.xlu0 %v2132
  %v2134 = vpop.xlane.xlu0 %2133
  %v2135 = vmul.f32 %v2125, %v343
  %v2136 = vmul.f32 %v2128, %v343
  %v2137 = vmul.f32 %v2131, %v343
  %v2138 = vmul.f32 %v2134, %v343
  %v2139 = vsub.f32 %v2117, %v2135
  %v2140 = vsub.f32 %v2118, %v2136
  %v2141 = vsub.f32 %v2119, %v2137
  %v2142 = vsub.f32 %v2120, %v2138
  %v2143 = vmul.f32 %v2139, %v2139
  %v2144 = vmul.f32 %v2140, %v2140
  %v2145 = vmul.f32 %v2141, %v2141
  %v2146 = vmul.f32 %v2142, %v2142
  %v2147 = vsel %vm330, %v2143, 0.0
  %2148 = vadd.xlane.f32.xlu0 %v2147
  %v2149 = vpop.xlane.xlu0 %2148
  %v2150 = vsel %vm330, %v2144, 0.0
  %2151 = vadd.xlane.f32.xlu0 %v2150
  %v2152 = vpop.xlane.xlu0 %2151
  %v2153 = vsel %vm330, %v2145, 0.0
  %2154 = vadd.xlane.f32.xlu0 %v2153
  %v2155 = vpop.xlane.xlu0 %2154
  %v2156 = vsel %vm330, %v2146, 0.0
  %2157 = vadd.xlane.f32.xlu0 %v2156
  %v2158 = vpop.xlane.xlu0 %2157
  %v2159 = vmul.f32 %v2149, %v343
  %v2160 = vmul.f32 %v2152, %v343
  %v2161 = vmul.f32 %v2155, %v343
  %v2162 = vmul.f32 %v2158, %v343
  %v2163 = vadd.f32 %v2159, 1e-12
  %v2164 = vadd.f32 %v2160, 1e-12
  %v2165 = vadd.f32 %v2161, 1e-12
  %v2166 = vadd.f32 %v2162, 1e-12
  %v2167 = vrsqrt.pop %v2163
  %v2168 = vrsqrt.pop %v2164
  %v2169 = vrsqrt.pop %v2165
  %v2170 = vrsqrt.pop %v2166
  %v2171 = vmul.f32 %v2139, %v2167
  %v2172 = vmul.f32 %v2140, %v2168
  %v2173 = vmul.f32 %v2141, %v2169
  %v2174 = vmul.f32 %v2142, %v2170
  %v2175 = vlaneseq
  %v2176 = vshrl.u32 %v2175, 7
  %v2177 = vsub.s32 0, %v2176
  %v2178 = vrot.slane %v2121, %v2177
  %v2179 = vmul.f32 %v2171, %v2178
  %v2180 = vmul.f32 %v2172, %v2178
  %v2181 = vmul.f32 %v2173, %v2178
  %v2182 = vmul.f32 %v2174, %v2178
  %v2183 = vlaneseq
  %v2184 = vshrl.u32 %v2183, 7
  %v2185 = vsub.s32 0, %v2184
  %v2186 = vrot.slane %v2122, %v2185
  %v2187 = vadd.f32 %v2179, %v2186
  %v2188 = vadd.f32 %v2180, %v2186
  %v2189 = vadd.f32 %v2181, %v2186
  %v2190 = vadd.f32 %v2182, %v2186
  %v2191 = vld [vmem:[%s5] sm:$0xff]
  %v2192 = vld [vmem:[%s5 + $0x8] sm:$0xff]
  %v2193 = vld [vmem:[%s5 + $0x10] sm:$0xff]
  %v2194 = vld [vmem:[%s5 + $0x18] sm:$0xff]
  %v2195 = vld [vmem:[%s5 + $0x73] sm:$0x1]
  %v2196 = vlaneseq
  %v2197 = vshrl.u32 %v2196, 7
  %v2198 = vsub.s32 0, %v2197
  %v2199 = vrot.slane %v2195, %v2198
  %v2201 = vsel %vm330, %v2187, 0
  %v2204 = vsel %vm330, %v2188, 0
  %v2207 = vsel %vm330, %v2189, 0
  %v2210 = vsel %vm330, %v2190, 0
  %2212 = vmatprep.subr.mxu0 0.0
  %2213 = vmatpush1.msra.mxu0 %v2191
  %2214 = vmatprep.subr.mxu0 0.0
  %2215 = vmatpush1.msra.mxu0 %v2192
  %2216 = vmatprep.subr.mxu0 0.0
  %2217 = vmatpush1.msra.mxu0 %v2193
  %2218 = vmatprep.subr.mxu0 0.0
  %2219 = vmatpush1.msra.mxu0 %v2194
  %2220 = vmatprep.subr.mxu0 0.0
  %2221 = vmatpush1.msra.mxu0 0.0
  %2222 = vmatprep.subr.mxu0 0.0
  %2223 = vmatpush1.msra.mxu0 0.0
  %2224 = vmatprep.subr.mxu0 0.0
  %2225 = vmatpush1.msra.mxu0 0.0
  %2226 = vmatprep.subr.mxu0 0.0
  %2227 = vmatpush1.msra.mxu0 0.0
  %2228 = vmatprep.subr.mxu0 0.0
  %2229 = vmatpush1.msra.mxu0 0.0
  %2230 = vmatprep.subr.mxu0 0.0
  %2231 = vmatpush1.msra.mxu0 0.0
  %2232 = vmatprep.subr.mxu0 0.0
  %2233 = vmatpush1.msra.mxu0 0.0
  %2234 = vmatprep.subr.mxu0 0.0
  %2235 = vmatpush1.msra.mxu0 0.0
  %2236 = vmatprep.subr.mxu0 0.0
  %2237 = vmatpush1.msra.mxu0 0.0
  %2238 = vmatprep.subr.mxu0 0.0
  %2239 = vmatpush1.msra.mxu0 0.0
  %2240 = vmatprep.subr.mxu0 0.0
  %2241 = vmatpush1.msra.mxu0 0.0
  %2242 = vmatprep.subr.mxu0 0.0
  %2243 = vmatpush1.msra.mxu0 0.0
  %2244 = vmatprep.subr.mxu0 0.0
  %2245 = vmatpush1.msra.mxu0 0.0
  %2246 = vmatprep.subr.mxu0 0.0
  %2247 = vmatpush1.msra.mxu0 0.0
  %2248 = vmatprep.subr.mxu0 0.0
  %2249 = vmatpush1.msra.mxu0 0.0
  %2250 = vmatprep.subr.mxu0 0.0
  %2251 = vmatpush1.msra.mxu0 0.0
  %2252 = vmatprep.subr.mxu0 0.0
  %2253 = vmatpush1.msra.mxu0 0.0
  %2254 = vmatprep.subr.mxu0 0.0
  %2255 = vmatpush1.msra.mxu0 0.0
  %2256 = vmatprep.subr.mxu0 0.0
  %2257 = vmatpush1.msra.mxu0 0.0
  %2258 = vmatprep.subr.mxu0 0.0
  %2259 = vmatpush1.msra.mxu0 0.0
  %2260 = vmatprep.subr.mxu0 0.0
  %2261 = vmatpush1.msra.mxu0 0.0
  %2262 = vmatprep.subr.mxu0 0.0
  %2263 = vmatpush1.msra.mxu0 0.0
  %2264 = vmatprep.subr.mxu0 0.0
  %2265 = vmatpush1.msra.mxu0 0.0
  %2266 = vmatprep.subr.mxu0 0.0
  %2267 = vmatpush1.msra.mxu0 0.0
  %2268 = vmatprep.subr.mxu0 0.0
  %2269 = vmatpush1.msra.mxu0 0.0
  %2270 = vmatprep.subr.mxu0 0.0
  %2271 = vmatpush1.msra.mxu0 0.0
  %2272 = vmatprep.subr.mxu0 0.0
  %2273 = vmatpush1.msra.mxu0 0.0
  %2274 = vmatprep.subr.mxu0 0.0
  %2275 = vmatpush1.msra.mxu0 0.0
  %2276 = vmatprep.mubr.f32.mxu0 0.0
  %2277 = vmatmul.mubr.f32.gmra.mrb[0].mxu0 %v2201
  %v2278 = vpop.f32.mrb[0].mxu0
  %v2279 = vadd.f32 %v2199, %v2278
  %v2280 = vpop.f32.mrb[0].mxu0
  %2281 = vmatprep.mubr.f32.mxu0 0.0
  %2282 = vmatmul.mubr.f32.gmra.mrb[0].mxu0 %v2204
  %v2283 = vpop.f32.mrb[0].mxu0
  %v2284 = vadd.f32 %v2199, %v2283
  %v2285 = vpop.f32.mrb[0].mxu0
  %2286 = vmatprep.mubr.f32.mxu0 0.0
  %2287 = vmatmul.mubr.f32.gmra.mrb[0].mxu0 %v2207
  %v2288 = vpop.f32.mrb[0].mxu0
  %v2289 = vadd.f32 %v2199, %v2288
  %v2290 = vpop.f32.mrb[0].mxu0
  %2291 = vmatprep.mubr.f32.mxu0 0.0
  %2292 = vmatmul.mubr.f32.gmra.mrb[0].mxu0 %v2210
  %v2293 = vpop.f32.mrb[0].mxu0
  %v2294 = vadd.f32 %v2199, %v2293
  %v2295 = vpop.f32.mrb[0].mxu0
  %2296 = vdwg.mxu0
  %v2297 = vmul.f32 %v2279, 0.5
  %v2298 = vmul.f32 %v2284, 0.5
  %v2299 = vmul.f32 %v2289, 0.5
  %v2300 = vmul.f32 %v2294, 0.5
  %v2301 = vmul.f32 %v2279, 0.044715
  %v2302 = vmul.f32 %v2284, 0.044715
  %v2303 = vmul.f32 %v2289, 0.044715
  %v2304 = vmul.f32 %v2294, 0.044715
  %v2305 = vmul.f32 %v2301, %v2279
  %v2306 = vmul.f32 %v2302, %v2284
  %v2307 = vmul.f32 %v2303, %v2289
  %v2308 = vmul.f32 %v2304, %v2294
  %v2309 = vmul.f32 %v2305, %v2279
  %v2310 = vmul.f32 %v2306, %v2284
  %v2311 = vmul.f32 %v2307, %v2289
  %v2312 = vmul.f32 %v2308, %v2294
  %v2313 = vadd.f32 %v2279, %v2309
  %v2314 = vadd.f32 %v2284, %v2310
  %v2315 = vadd.f32 %v2289, %v2311
  %v2316 = vadd.f32 %v2294, %v2312
  %v2317 = vmul.f32 %v2313, 0.7978846
  %v2318 = vmul.f32 %v2314, 0.7978846
  %v2319 = vmul.f32 %v2315, 0.7978846
  %v2320 = vmul.f32 %v2316, 0.7978846
  %v2321 = vtanh.pop %v2317
  %v2322 = vtanh.pop %v2318
  %v2323 = vtanh.pop %v2319
  %v2324 = vtanh.pop %v2320
  %v2325 = vadd.f32 %v2321, 1.0
  %v2326 = vadd.f32 %v2322, 1.0
  %v2327 = vadd.f32 %v2323, 1.0
  %v2328 = vadd.f32 %v2324, 1.0
  %v2329 = vmul.f32 %v2297, %v2325
  %v2330 = vmul.f32 %v2298, %v2326
  %v2331 = vmul.f32 %v2299, %v2327
  %v2332 = vmul.f32 %v2300, %v2328
  %v2333 = vld [vmem:[%s4 + $0x200] sm:$0xff]
  %v2334 = vld [vmem:[%s4 + $0x208] sm:$0xff]
  %v2335 = vld [vmem:[%s4 + $0x210] sm:$0xff]
  %v2336 = vld [vmem:[%s4 + $0x218] sm:$0xff]
  %v2337 = vld [vmem:[%s4 + $0x220] sm:$0xff]
  %v2338 = vld [vmem:[%s4 + $0x228] sm:$0xff]
  %v2339 = vld [vmem:[%s4 + $0x230] sm:$0xff]
  %v2340 = vld [vmem:[%s4 + $0x238] sm:$0xff]
  %v2341 = vld [vmem:[%s5 + $0x74] sm:$0x1]
  %v2342 = vlaneseq
  %v2343 = vshrl.u32 %v2342, 7
  %v2344 = vsub.s32 0, %v2343
  %v2345 = vrot.slane %v2341, %v2344
  %vm2346 = vcmask 523264
  %v2348 = vsel %vm2346, %v2329, 0
  %v2351 = vsel %vm2346, %v2330, 0
  %v2354 = vsel %vm2346, %v2331, 0
  %v2357 = vsel %vm2346, %v2332, 0
  %2359 = vmatprep.subr.mxu0 0.0
  %2360 = vmatpush1.msra.mxu0 %v2333
  %2361 = vmatprep.subr.mxu0 0.0
  %2362 = vmatpush1.msra.mxu0 %v2334
  %2363 = vmatprep.subr.mxu0 0.0
  %2364 = vmatpush1.msra.mxu0 %v2335
  %2365 = vmatprep.subr.mxu0 0.0
  %2366 = vmatpush1.msra.mxu0 %v2336
  %2367 = vmatprep.subr.mxu0 0.0
  %2368 = vmatpush1.msra.mxu0 %v2337
  %2369 = vmatprep.subr.mxu0 0.0
  %2370 = vmatpush1.msra.mxu0 %v2338
  %2371 = vmatprep.subr.mxu0 0.0
  %2372 = vmatpush1.msra.mxu0 %v2339
  %2373 = vmatprep.subr.mxu0 0.0
  %2374 = vmatpush1.msra.mxu0 %v2340
  %2375 = vmatprep.subr.mxu0 0.0
  %2376 = vmatpush1.msra.mxu0 0.0
  %2377 = vmatprep.subr.mxu0 0.0
  %2378 = vmatpush1.msra.mxu0 0.0
  %2379 = vmatprep.subr.mxu0 0.0
  %2380 = vmatpush1.msra.mxu0 0.0
  %2381 = vmatprep.subr.mxu0 0.0
  %2382 = vmatpush1.msra.mxu0 0.0
  %2383 = vmatprep.subr.mxu0 0.0
  %2384 = vmatpush1.msra.mxu0 0.0
  %2385 = vmatprep.subr.mxu0 0.0
  %2386 = vmatpush1.msra.mxu0 0.0
  %2387 = vmatprep.subr.mxu0 0.0
  %2388 = vmatpush1.msra.mxu0 0.0
  %2389 = vmatprep.subr.mxu0 0.0
  %2390 = vmatpush1.msra.mxu0 0.0
  %2391 = vmatprep.subr.mxu0 0.0
  %2392 = vmatpush1.msra.mxu0 0.0
  %2393 = vmatprep.subr.mxu0 0.0
  %2394 = vmatpush1.msra.mxu0 0.0
  %2395 = vmatprep.subr.mxu0 0.0
  %2396 = vmatpush1.msra.mxu0 0.0
  %2397 = vmatprep.subr.mxu0 0.0
  %2398 = vmatpush1.msra.mxu0 0.0
  %2399 = vmatprep.subr.mxu0 0.0
  %2400 = vmatpush1.msra.mxu0 0.0
  %2401 = vmatprep.subr.mxu0 0.0
  %2402 = vmatpush1.msra.mxu0 0.0
  %2403 = vmatprep.subr.mxu0 0.0
  %2404 = vmatpush1.msra.mxu0 0.0
  %2405 = vmatprep.subr.mxu0 0.0
  %2406 = vmatpush1.msra.mxu0 0.0
  %2407 = vmatprep.subr.mxu0 0.0
  %2408 = vmatpush1.msra.mxu0 0.0
  %2409 = vmatprep.subr.mxu0 0.0
  %2410 = vmatpush1.msra.mxu0 0.0
  %2411 = vmatprep.subr.mxu0 0.0
  %2412 = vmatpush1.msra.mxu0 0.0
  %2413 = vmatprep.subr.mxu0 0.0
  %2414 = vmatpush1.msra.mxu0 0.0
  %2415 = vmatprep.subr.mxu0 0.0
  %2416 = vmatpush1.msra.mxu0 0.0
  %2417 = vmatprep.subr.mxu0 0.0
  %2418 = vmatpush1.msra.mxu0 0.0
  %2419 = vmatprep.subr.mxu0 0.0
  %2420 = vmatpush1.msra.mxu0 0.0
  %2421 = vmatprep.subr.mxu0 0.0
  %2422 = vmatpush1.msra.mxu0 0.0
  %2423 = vmatprep.mubr.f32.mxu0 0.0
  %2424 = vmatmul.mubr.f32.gmra.mrb[0].mxu0 %v2348
  %v2425 = vpop.f32.mrb[0].mxu0
  %v2426 = vadd.f32 %v2345, %v2425
  %v2427 = vpop.f32.mrb[0].mxu0
  %2428 = vmatprep.mubr.f32.mxu0 0.0
  %2429 = vmatmul.mubr.f32.gmra.mrb[0].mxu0 %v2351
  %v2430 = vpop.f32.mrb[0].mxu0
  %v2431 = vadd.f32 %v2345, %v2430
  %v2432 = vpop.f32.mrb[0].mxu0
  %2433 = vmatprep.mubr.f32.mxu0 0.0
  %2434 = vmatmul.mubr.f32.gmra.mrb[0].mxu0 %v2354
  %v2435 = vpop.f32.mrb[0].mxu0
  %v2436 = vadd.f32 %v2345, %v2435
  %v2437 = vpop.f32.mrb[0].mxu0
  %2438 = vmatprep.mubr.f32.mxu0 0.0
  %2439 = vmatmul.mubr.f32.gmra.mrb[0].mxu0 %v2357
  %v2440 = vpop.f32.mrb[0].mxu0
  %v2441 = vadd.f32 %v2345, %v2440
  %v2442 = vpop.f32.mrb[0].mxu0
  %2443 = vdwg.mxu0
  %v2444 = vadd.f32 %v2426, %v2187
  %v2445 = vadd.f32 %v2431, %v2188
  %v2446 = vadd.f32 %v2436, %v2189
  %v2447 = vadd.f32 %v2441, %v2190
  %v2448 = vld [vmem:[%s5 + $0x75] sm:$0x1]
  %v2449 = vld [vmem:[%s5 + $0x76] sm:$0x1]
  %v2450 = vsel %vm330, %v2444, 0.0
  %2451 = vadd.xlane.f32.xlu0 %v2450
  %v2452 = vpop.xlane.xlu0 %2451
  %v2453 = vsel %vm330, %v2445, 0.0
  %2454 = vadd.xlane.f32.xlu0 %v2453
  %v2455 = vpop.xlane.xlu0 %2454
  %v2456 = vsel %vm330, %v2446, 0.0
  %2457 = vadd.xlane.f32.xlu0 %v2456
  %v2458 = vpop.xlane.xlu0 %2457
  %v2459 = vsel %vm330, %v2447, 0.0
  %2460 = vadd.xlane.f32.xlu0 %v2459
  %v2461 = vpop.xlane.xlu0 %2460
  %v2462 = vmul.f32 %v2452, %v343
  %v2463 = vmul.f32 %v2455, %v343
  %v2464 = vmul.f32 %v2458, %v343
  %v2465 = vmul.f32 %v2461, %v343
  %v2466 = vsub.f32 %v2444, %v2462
  %v2467 = vsub.f32 %v2445, %v2463
  %v2468 = vsub.f32 %v2446, %v2464
  %v2469 = vsub.f32 %v2447, %v2465
  %v2470 = vmul.f32 %v2466, %v2466
  %v2471 = vmul.f32 %v2467, %v2467
  %v2472 = vmul.f32 %v2468, %v2468
  %v2473 = vmul.f32 %v2469, %v2469
  %v2474 = vsel %vm330, %v2470, 0.0
  %2475 = vadd.xlane.f32.xlu0 %v2474
  %v2476 = vpop.xlane.xlu0 %2475
  %v2477 = vsel %vm330, %v2471, 0.0
  %2478 = vadd.xlane.f32.xlu0 %v2477
  %v2479 = vpop.xlane.xlu0 %2478
  %v2480 = vsel %vm330, %v2472, 0.0
  %2481 = vadd.xlane.f32.xlu0 %v2480
  %v2482 = vpop.xlane.xlu0 %2481
  %v2483 = vsel %vm330, %v2473, 0.0
  %2484 = vadd.xlane.f32.xlu0 %v2483
  %v2485 = vpop.xlane.xlu0 %2484
  %v2486 = vmul.f32 %v2476, %v343
  %v2487 = vmul.f32 %v2479, %v343
  %v2488 = vmul.f32 %v2482, %v343
  %v2489 = vmul.f32 %v2485, %v343
  %v2490 = vadd.f32 %v2486, 1e-12
  %v2491 = vadd.f32 %v2487, 1e-12
  %v2492 = vadd.f32 %v2488, 1e-12
  %v2493 = vadd.f32 %v2489, 1e-12
  %v2494 = vrsqrt.pop %v2490
  %v2495 = vrsqrt.pop %v2491
  %v2496 = vrsqrt.pop %v2492
  %v2497 = vrsqrt.pop %v2493
  %v2498 = vmul.f32 %v2466, %v2494
  %v2499 = vmul.f32 %v2467, %v2495
  %v2500 = vmul.f32 %v2468, %v2496
  %v2501 = vmul.f32 %v2469, %v2497
  %v2502 = vlaneseq
  %v2503 = vshrl.u32 %v2502, 7
  %v2504 = vsub.s32 0, %v2503
  %v2505 = vrot.slane %v2448, %v2504
  %v2506 = vmul.f32 %v2498, %v2505
  %v2507 = vmul.f32 %v2499, %v2505
  %v2508 = vmul.f32 %v2500, %v2505
  %v2509 = vmul.f32 %v2501, %v2505
  %v2510 = vlaneseq
  %v2511 = vshrl.u32 %v2510, 7
  %v2512 = vsub.s32 0, %v2511
  %v2513 = vrot.slane %v2449, %v2512
  %v2514 = vadd.f32 %v2506, %v2513
  %v2515 = vadd.f32 %v2507, %v2513
  %v2516 = vadd.f32 %v2508, %v2513
  %v2517 = vadd.f32 %v2509, %v2513
  %v2518 = vld [vmem:[%s4 + $0x80] sm:$0xff]
  %v2519 = vld [vmem:[%s4 + $0x88] sm:$0xff]
  %v2520 = vld [vmem:[%s4 + $0x90] sm:$0xff]
  %v2521 = vld [vmem:[%s4 + $0x98] sm:$0xff]
  %v2522 = vld [vmem:[%s4 + $0x180] sm:$0xff]
  %v2523 = vld [vmem:[%s4 + $0x188] sm:$0xff]
  %v2524 = vld [vmem:[%s4 + $0x190] sm:$0xff]
  %v2525 = vld [vmem:[%s4 + $0x198] sm:$0xff]
  %v2526 = vld [vmem:[%s5 + $0x77] sm:$0x1]
  %v2527 = vlaneseq
  %v2528 = vshrl.u32 %v2527, 7
  %v2529 = vsub.s32 0, %v2528
  %v2530 = vrot.slane %v2526, %v2529
  %v2532 = vsel %vm330, %v2514, 0
  %v2535 = vsel %vm330, %v2515, 0
  %v2538 = vsel %vm330, %v2516, 0
  %v2541 = vsel %vm330, %v2517, 0
  %2543 = vmatprep.subr.mxu0 0.0
  %2544 = vmatpush1.msra.mxu0 %v2518
  %2545 = vmatprep.subr.mxu0 0.0
  %2546 = vmatpush1.msra.mxu0 %v2519
  %2547 = vmatprep.subr.mxu0 0.0
  %2548 = vmatpush1.msra.mxu0 %v2520
  %2549 = vmatprep.subr.mxu0 0.0
  %2550 = vmatpush1.msra.mxu0 %v2521
  %2551 = vmatprep.subr.mxu0 0.0
  %2552 = vmatpush1.msra.mxu0 0.0
  %2553 = vmatprep.subr.mxu0 0.0
  %2554 = vmatpush1.msra.mxu0 0.0
  %2555 = vmatprep.subr.mxu0 0.0
  %2556 = vmatpush1.msra.mxu0 0.0
  %2557 = vmatprep.subr.mxu0 0.0
  %2558 = vmatpush1.msra.mxu0 0.0
  %2559 = vmatprep.subr.mxu0 0.0
  %2560 = vmatpush1.msra.mxu0 0.0
  %2561 = vmatprep.subr.mxu0 0.0
  %2562 = vmatpush1.msra.mxu0 0.0
  %2563 = vmatprep.subr.mxu0 0.0
  %2564 = vmatpush1.msra.mxu0 0.0
  %2565 = vmatprep.subr.mxu0 0.0
  %2566 = vmatpush1.msra.mxu0 0.0
  %2567 = vmatprep.subr.mxu0 0.0
  %2568 = vmatpush1.msra.mxu0 0.0
  %2569 = vmatprep.subr.mxu0 0.0
  %2570 = vmatpush1.msra.mxu0 0.0
  %2571 = vmatprep.subr.mxu0 0.0
  %2572 = vmatpush1.msra.mxu0 0.0
  %2573 = vmatprep.subr.mxu0 0.0
  %2574 = vmatpush1.msra.mxu0 0.0
  %2575 = vmatprep.subr.mxu0 0.0
  %2576 = vmatpush1.msra.mxu0 0.0
  %2577 = vmatprep.subr.mxu0 0.0
  %2578 = vmatpush1.msra.mxu0 0.0
  %2579 = vmatprep.subr.mxu0 0.0
  %2580 = vmatpush1.msra.mxu0 0.0
  %2581 = vmatprep.subr.mxu0 0.0
  %2582 = vmatpush1.msra.mxu0 0.0
  %2583 = vmatprep.subr.mxu0 0.0
  %2584 = vmatpush1.msra.mxu0 0.0
  %2585 = vmatprep.subr.mxu0 0.0
  %2586 = vmatpush1.msra.mxu0 0.0
  %2587 = vmatprep.subr.mxu0 0.0
  %2588 = vmatpush1.msra.mxu0 0.0
  %2589 = vmatprep.subr.mxu0 0.0
  %2590 = vmatpush1.msra.mxu0 0.0
  %2591 = vmatprep.subr.mxu0 0.0
  %2592 = vmatpush1.msra.mxu0 0.0
  %2593 = vmatprep.subr.mxu0 0.0
  %2594 = vmatpush1.msra.mxu0 0.0
  %2595 = vmatprep.subr.mxu0 0.0
  %2596 = vmatpush1.msra.mxu0 0.0
  %2597 = vmatprep.subr.mxu0 0.0
  %2598 = vmatpush1.msra.mxu0 0.0
  %2599 = vmatprep.subr.mxu0 0.0
  %2600 = vmatpush1.msra.mxu0 0.0
  %2601 = vmatprep.subr.mxu0 0.0
  %2602 = vmatpush1.msra.mxu0 0.0
  %2603 = vmatprep.subr.mxu0 0.0
  %2604 = vmatpush1.msra.mxu0 0.0
  %2605 = vmatprep.subr.mxu0 0.0
  %2606 = vmatpush1.msra.mxu0 0.0
  %2607 = vmatprep.mubr.f32.mxu0 0.0
  %2608 = vmatmul.mubr.f32.gmra.mrb[0].mxu0 %v2532
  %v2609 = vpop.f32.mrb[0].mxu0
  %v2610 = vadd.f32 %v2530, %v2609
  %v2611 = vpop.f32.mrb[0].mxu0
  %2612 = vmatprep.mubr.f32.mxu0 0.0
  %2613 = vmatmul.mubr.f32.gmra.mrb[0].mxu0 %v2535
  %v2614 = vpop.f32.mrb[0].mxu0
  %v2615 = vadd.f32 %v2530, %v2614
  %v2616 = vpop.f32.mrb[0].mxu0
  %2617 = vmatprep.mubr.f32.mxu0 0.0
  %2618 = vmatmul.mubr.f32.gmra.mrb[0].mxu0 %v2538
  %v2619 = vpop.f32.mrb[0].mxu0
  %v2620 = vadd.f32 %v2530, %v2619
  %v2621 = vpop.f32.mrb[0].mxu0
  %2622 = vmatprep.mubr.f32.mxu0 0.0
  %2623 = vmatmul.mubr.f32.gmra.mrb[0].mxu0 %v2541
  %v2624 = vpop.f32.mrb[0].mxu0
  %v2625 = vadd.f32 %v2530, %v2624
  %v2626 = vpop.f32.mrb[0].mxu0
  %2627 = vdwg.mxu0
  %v2629 = vsel %vm330, %v2610, 0
  %v2632 = vsel %vm330, %v2615, 0
  %v2635 = vsel %vm330, %v2620, 0
  %v2638 = vsel %vm330, %v2625, 0
  %2640 = vmatprep.subr.mxu0 0.0
  %2641 = vmatpush1.xpose.msra.mxu0 %v2532
  %2642 = vmatprep.subr.mxu0 0.0
  %2643 = vmatpush1.xpose.msra.mxu0 %v2535
  %2644 = vmatprep.subr.mxu0 0.0
  %2645 = vmatpush1.xpose.msra.mxu0 %v2538
  %2646 = vmatprep.subr.mxu0 0.0
  %2647 = vmatpush1.xpose.msra.mxu0 %v2541
  %2648 = vmatprep.subr.mxu0 0.0
  %2649 = vmatpush1.xpose.msra.mxu0 0.0
  %2650 = vmatprep.subr.mxu0 0.0
  %2651 = vmatpush1.xpose.msra.mxu0 0.0
  %2652 = vmatprep.subr.mxu0 0.0
  %2653 = vmatpush1.xpose.msra.mxu0 0.0
  %2654 = vmatprep.subr.mxu0 0.0
  %2655 = vmatpush1.xpose.msra.mxu0 0.0
  %2656 = vmatprep.subr.mxu0 0.0
  %2657 = vmatpush1.xpose.msra.mxu0 0.0
  %2658 = vmatprep.subr.mxu0 0.0
  %2659 = vmatpush1.xpose.msra.mxu0 0.0
  %2660 = vmatprep.subr.mxu0 0.0
  %2661 = vmatpush1.xpose.msra.mxu0 0.0
  %2662 = vmatprep.subr.mxu0 0.0
  %2663 = vmatpush1.xpose.msra.mxu0 0.0
  %2664 = vmatprep.subr.mxu0 0.0
  %2665 = vmatpush1.xpose.msra.mxu0 0.0
  %2666 = vmatprep.subr.mxu0 0.0
  %2667 = vmatpush1.xpose.msra.mxu0 0.0
  %2668 = vmatprep.subr.mxu0 0.0
  %2669 = vmatpush1.xpose.msra.mxu0 0.0
  %2670 = vmatprep.subr.mxu0 0.0
  %2671 = vmatpush1.xpose.msra.mxu0 0.0
  %2672 = vmatprep.subr.mxu0 0.0
  %2673 = vmatpush1.xpose.msra.mxu0 0.0
  %2674 = vmatprep.subr.mxu0 0.0
  %2675 = vmatpush1.xpose.msra.mxu0 0.0
  %2676 = vmatprep.subr.mxu0 0.0
  %2677 = vmatpush1.xpose.msra.mxu0 0.0
  %2678 = vmatprep.subr.mxu0 0.0
  %2679 = vmatpush1.xpose.msra.mxu0 0.0
  %2680 = vmatprep.subr.mxu0 0.0
  %2681 = vmatpush1.xpose.msra.mxu0 0.0
  %2682 = vmatprep.subr.mxu0 0.0
  %2683 = vmatpush1.xpose.msra.mxu0 0.0
  %2684 = vmatprep.subr.mxu0 0.0
  %2685 = vmatpush1.xpose.msra.mxu0 0.0
  %2686 = vmatprep.subr.mxu0 0.0
  %2687 = vmatpush1.xpose.msra.mxu0 0.0
  %2688 = vmatprep.subr.mxu0 0.0
  %2689 = vmatpush1.xpose.msra.mxu0 0.0
  %2690 = vmatprep.subr.mxu0 0.0
  %2691 = vmatpush1.xpose.msra.mxu0 0.0
  %2692 = vmatprep.subr.mxu0 0.0
  %2693 = vmatpush1.xpose.msra.mxu0 0.0
  %2694 = vmatprep.subr.mxu0 0.0
  %2695 = vmatpush1.xpose.msra.mxu0 0.0
  %2696 = vmatprep.subr.mxu0 0.0
  %2697 = vmatpush1.xpose.msra.mxu0 0.0
  %2698 = vmatprep.subr.mxu0 0.0
  %2699 = vmatpush1.xpose.msra.mxu0 0.0
  %2700 = vmatprep.subr.mxu0 0.0
  %2701 = vmatpush1.xpose.msra.mxu0 0.0
  %2702 = vmatprep.subr.mxu0 0.0
  %2703 = vmatpush1.xpose.msra.mxu0 0.0
  %2704 = vmatprep.mubr.f32.mxu0 0.0
  %2705 = vmatmul.mubr.f32.gmra.mrb[0].mxu0 %v2629
  %v2706 = vpop.f32.mrb[0].mxu0
  %v2707 = vadd.f32 %v400, %v2706
  %v2708 = vpop.f32.mrb[0].mxu0
  %2709 = vmatprep.mubr.f32.mxu0 0.0
  %2710 = vmatmul.mubr.f32.gmra.mrb[0].mxu0 %v2632
  %v2711 = vpop.f32.mrb[0].mxu0
  %v2712 = vadd.f32 %v401, %v2711
  %v2713 = vpop.f32.mrb[0].mxu0
  %2714 = vmatprep.mubr.f32.mxu0 0.0
  %2715 = vmatmul.mubr.f32.gmra.mrb[0].mxu0 %v2635
  %v2716 = vpop.f32.mrb[0].mxu0
  %v2717 = vadd.f32 %v402, %v2716
  %v2718 = vpop.f32.mrb[0].mxu0
  %2719 = vmatprep.mubr.f32.mxu0 0.0
  %2720 = vmatmul.mubr.f32.gmra.mrb[0].mxu0 %v2638
  %v2721 = vpop.f32.mrb[0].mxu0
  %v2722 = vadd.f32 %v403, %v2721
  %v2723 = vpop.f32.mrb[0].mxu0
  %2724 = vdwg.mxu0
  %v2725 = vsel %vm330, %v2707, -inf
  %2726 = vmax.xlane.f32.xlu0 %v2725
  %v2727 = vpop.xlane.xlu0 %2726
  %v2728 = vsel %vm330, %v2712, -inf
  %2729 = vmax.xlane.f32.xlu0 %v2728
  %v2730 = vpop.xlane.xlu0 %2729
  %v2731 = vsel %vm330, %v2717, -inf
  %2732 = vmax.xlane.f32.xlu0 %v2731
  %v2733 = vpop.xlane.xlu0 %2732
  %v2734 = vsel %vm330, %v2722, -inf
  %2735 = vmax.xlane.f32.xlu0 %v2734
  %v2736 = vpop.xlane.xlu0 %2735
  %v2737 = vsub.f32 %v2707, %v2727
  %v2738 = vsub.f32 %v2712, %v2730
  %v2739 = vsub.f32 %v2717, %v2733
  %v2740 = vsub.f32 %v2722, %v2736
  %v2741 = vmul.f32 %v2737, 1.442695
  %v2742 = vpow.pop %v2741
  %v2743 = vmul.f32 %v2738, 1.442695
  %v2744 = vpow.pop %v2743
  %v2745 = vmul.f32 %v2739, 1.442695
  %v2746 = vpow.pop %v2745
  %v2747 = vmul.f32 %v2740, 1.442695
  %v2748 = vpow.pop %v2747
  %v2749 = vsel %vm330, %v2742, 0.0
  %2750 = vadd.xlane.f32.xlu0 %v2749
  %v2751 = vpop.xlane.xlu0 %2750
  %v2752 = vsel %vm330, %v2744, 0.0
  %2753 = vadd.xlane.f32.xlu0 %v2752
  %v2754 = vpop.xlane.xlu0 %2753
  %v2755 = vsel %vm330, %v2746, 0.0
  %2756 = vadd.xlane.f32.xlu0 %v2755
  %v2757 = vpop.xlane.xlu0 %2756
  %v2758 = vsel %vm330, %v2748, 0.0
  %2759 = vadd.xlane.f32.xlu0 %v2758
  %v2760 = vpop.xlane.xlu0 %2759
  %v2761 = vrcp.pop %v2751
  %v2762 = vrcp.pop %v2754
  %v2763 = vrcp.pop %v2757
  %v2764 = vrcp.pop %v2760
  %v2765 = vmul.f32 %v2742, %v2761
  %v2766 = vmul.f32 %v2744, %v2762
  %v2767 = vmul.f32 %v2746, %v2763
  %v2768 = vmul.f32 %v2748, %v2764
  %2769 = vmatprep.subr.mxu0 0.0
  %2770 = vmatpush1.msra.mxu0 %v2522
  %2771 = vmatprep.subr.mxu0 0.0
  %2772 = vmatpush1.msra.mxu0 %v2523
  %2773 = vmatprep.subr.mxu0 0.0
  %2774 = vmatpush1.msra.mxu0 %v2524
  %2775 = vmatprep.subr.mxu0 0.0
  %2776 = vmatpush1.msra.mxu0 %v2525
  %2777 = vmatprep.subr.mxu0 0.0
  %2778 = vmatpush1.msra.mxu0 0.0
  %2779 = vmatprep.subr.mxu0 0.0
  %2780 = vmatpush1.msra.mxu0 0.0
  %2781 = vmatprep.subr.mxu0 0.0
  %2782 = vmatpush1.msra.mxu0 0.0
  %2783 = vmatprep.subr.mxu0 0.0
  %2784 = vmatpush1.msra.mxu0 0.0
  %2785 = vmatprep.subr.mxu0 0.0
  %2786 = vmatpush1.msra.mxu0 0.0
  %2787 = vmatprep.subr.mxu0 0.0
  %2788 = vmatpush1.msra.mxu0 0.0
  %2789 = vmatprep.subr.mxu0 0.0
  %2790 = vmatpush1.msra.mxu0 0.0
  %2791 = vmatprep.subr.mxu0 0.0
  %2792 = vmatpush1.msra.mxu0 0.0
  %2793 = vmatprep.subr.mxu0 0.0
  %2794 = vmatpush1.msra.mxu0 0.0
  %2795 = vmatprep.subr.mxu0 0.0
  %2796 = vmatpush1.msra.mxu0 0.0
  %2797 = vmatprep.subr.mxu0 0.0
  %2798 = vmatpush1.msra.mxu0 0.0
  %2799 = vmatprep.subr.mxu0 0.0
  %2800 = vmatpush1.msra.mxu0 0.0
  %2801 = vmatprep.subr.mxu0 0.0
  %2802 = vmatpush1.msra.mxu0 0.0
  %2803 = vmatprep.subr.mxu0 0.0
  %2804 = vmatpush1.msra.mxu0 0.0
  %2805 = vmatprep.subr.mxu0 0.0
  %2806 = vmatpush1.msra.mxu0 0.0
  %2807 = vmatprep.subr.mxu0 0.0
  %2808 = vmatpush1.msra.mxu0 0.0
  %2809 = vmatprep.subr.mxu0 0.0
  %2810 = vmatpush1.msra.mxu0 0.0
  %2811 = vmatprep.subr.mxu0 0.0
  %2812 = vmatpush1.msra.mxu0 0.0
  %2813 = vmatprep.subr.mxu0 0.0
  %2814 = vmatpush1.msra.mxu0 0.0
  %2815 = vmatprep.subr.mxu0 0.0
  %2816 = vmatpush1.msra.mxu0 0.0
  %2817 = vmatprep.subr.mxu0 0.0
  %2818 = vmatpush1.msra.mxu0 0.0
  %2819 = vmatprep.subr.mxu0 0.0
  %2820 = vmatpush1.msra.mxu0 0.0
  %2821 = vmatprep.subr.mxu0 0.0
  %2822 = vmatpush1.msra.mxu0 0.0
  %2823 = vmatprep.subr.mxu0 0.0
  %2824 = vmatpush1.msra.mxu0 0.0
  %2825 = vmatprep.subr.mxu0 0.0
  %2826 = vmatpush1.msra.mxu0 0.0
  %2827 = vmatprep.subr.mxu0 0.0
  %2828 = vmatpush1.msra.mxu0 0.0
  %2829 = vmatprep.subr.mxu0 0.0
  %2830 = vmatpush1.msra.mxu0 0.0
  %2831 = vmatprep.subr.mxu0 0.0
  %2832 = vmatpush1.msra.mxu0 0.0
  %2833 = vmatprep.mubr.f32.mxu0 0.0
  %2834 = vmatmul.mubr.f32.gmra.mrb[0].mxu0 %v2532
  %v2835 = vpop.f32.mrb[0].mxu0
  %v2836 = vadd.f32 0.0, %v2835
  %v2837 = vpop.f32.mrb[0].mxu0
  %2838 = vmatprep.mubr.f32.mxu0 0.0
  %2839 = vmatmul.mubr.f32.gmra.mrb[0].mxu0 %v2535
  %v2840 = vpop.f32.mrb[0].mxu0
  %v2841 = vadd.f32 0.0, %v2840
  %v2842 = vpop.f32.mrb[0].mxu0
  %2843 = vmatprep.mubr.f32.mxu0 0.0
  %2844 = vmatmul.mubr.f32.gmra.mrb[0].mxu0 %v2538
  %v2845 = vpop.f32.mrb[0].mxu0
  %v2846 = vadd.f32 0.0, %v2845
  %v2847 = vpop.f32.mrb[0].mxu0
  %2848 = vmatprep.mubr.f32.mxu0 0.0
  %2849 = vmatmul.mubr.f32.gmra.mrb[0].mxu0 %v2541
  %v2850 = vpop.f32.mrb[0].mxu0
  %v2851 = vadd.f32 0.0, %v2850
  %v2852 = vpop.f32.mrb[0].mxu0
  %2853 = vdwg.mxu0
  %v2854 = vld [vmem:[%s4 + $0xa0] sm:$0xff]
  %v2855 = vld [vmem:[%s4 + $0xa8] sm:$0xff]
  %v2856 = vld [vmem:[%s4 + $0xb0] sm:$0xff]
  %v2857 = vld [vmem:[%s4 + $0xb8] sm:$0xff]
  %v2858 = vld [vmem:[%s4 + $0x1a0] sm:$0xff]
  %v2859 = vld [vmem:[%s4 + $0x1a8] sm:$0xff]
  %v2860 = vld [vmem:[%s4 + $0x1b0] sm:$0xff]
  %v2861 = vld [vmem:[%s4 + $0x1b8] sm:$0xff]
  %v2862 = vld [vmem:[%s5 + $0x78] sm:$0x1]
  %v2863 = vlaneseq
  %v2864 = vshrl.u32 %v2863, 7
  %v2865 = vsub.s32 0, %v2864
  %v2866 = vrot.slane %v2862, %v2865
  %2867 = vmatprep.subr.mxu0 0.0
  %2868 = vmatpush1.msra.mxu0 %v2854
  %2869 = vmatprep.subr.mxu0 0.0
  %2870 = vmatpush1.msra.mxu0 %v2855
  %2871 = vmatprep.subr.mxu0 0.0
  %2872 = vmatpush1.msra.mxu0 %v2856
  %2873 = vmatprep.subr.mxu0 0.0
  %2874 = vmatpush1.msra.mxu0 %v2857
  %2875 = vmatprep.subr.mxu0 0.0
  %2876 = vmatpush1.msra.mxu0 0.0
  %2877 = vmatprep.subr.mxu0 0.0
  %2878 = vmatpush1.msra.mxu0 0.0
  %2879 = vmatprep.subr.mxu0 0.0
  %2880 = vmatpush1.msra.mxu0 0.0
  %2881 = vmatprep.subr.mxu0 0.0
  %2882 = vmatpush1.msra.mxu0 0.0
  %2883 = vmatprep.subr.mxu0 0.0
  %2884 = vmatpush1.msra.mxu0 0.0
  %2885 = vmatprep.subr.mxu0 0.0
  %2886 = vmatpush1.msra.mxu0 0.0
  %2887 = vmatprep.subr.mxu0 0.0
  %2888 = vmatpush1.msra.mxu0 0.0
  %2889 = vmatprep.subr.mxu0 0.0
  %2890 = vmatpush1.msra.mxu0 0.0
  %2891 = vmatprep.subr.mxu0 0.0
  %2892 = vmatpush1.msra.mxu0 0.0
  %2893 = vmatprep.subr.mxu0 0.0
  %2894 = vmatpush1.msra.mxu0 0.0
  %2895 = vmatprep.subr.mxu0 0.0
  %2896 = vmatpush1.msra.mxu0 0.0
  %2897 = vmatprep.subr.mxu0 0.0
  %2898 = vmatpush1.msra.mxu0 0.0
  %2899 = vmatprep.subr.mxu0 0.0
  %2900 = vmatpush1.msra.mxu0 0.0
  %2901 = vmatprep.subr.mxu0 0.0
  %2902 = vmatpush1.msra.mxu0 0.0
  %2903 = vmatprep.subr.mxu0 0.0
  %2904 = vmatpush1.msra.mxu0 0.0
  %2905 = vmatprep.subr.mxu0 0.0
  %2906 = vmatpush1.msra.mxu0 0.0
  %2907 = vmatprep.subr.mxu0 0.0
  %2908 = vmatpush1.msra.mxu0 0.0
  %2909 = vmatprep.subr.mxu0 0.0
  %2910 = vmatpush1.msra.mxu0 0.0
  %2911 = vmatprep.subr.mxu0 0.0
  %2912 = vmatpush1.msra.mxu0 0.0
  %2913 = vmatprep.subr.mxu0 0.0
  %2914 = vmatpush1.msra.mxu0 0.0
  %2915 = vmatprep.subr.mxu0 0.0
  %2916 = vmatpush1.msra.mxu0 0.0
  %2917 = vmatprep.subr.mxu0 0.0
  %2918 = vmatpush1.msra.mxu0 0.0
  %2919 = vmatprep.subr.mxu0 0.0
  %2920 = vmatpush1.msra.mxu0 0.0
  %2921 = vmatprep.subr.mxu0 0.0
  %2922 = vmatpush1.msra.mxu0 0.0
  %2923 = vmatprep.subr.mxu0 0.0
  %2924 = vmatpush1.msra.mxu0 0.0
  %2925 = vmatprep.subr.mxu0 0.0
  %2926 = vmatpush1.msra.mxu0 0.0
  %2927 = vmatprep.subr.mxu0 0.0
  %2928 = vmatpush1.msra.mxu0 0.0
  %2929 = vmatprep.subr.mxu0 0.0
  %2930 = vmatpush1.msra.mxu0 0.0
  %2931 = vmatprep.mubr.f32.mxu0 0.0
  %2932 = vmatmul.mubr.f32.gmra.mrb[0].mxu0 %v2532
  %v2933 = vpop.f32.mrb[0].mxu0
  %v2934 = vadd.f32 %v2866, %v2933
  %v2935 = vpop.f32.mrb[0].mxu0
  %2936 = vmatprep.mubr.f32.mxu0 0.0
  %2937 = vmatmul.mubr.f32.gmra.mrb[0].mxu0 %v2535
  %v2938 = vpop.f32.mrb[0].mxu0
  %v2939 = vadd.f32 %v2866, %v2938
  %v2940 = vpop.f32.mrb[0].mxu0
  %2941 = vmatprep.mubr.f32.mxu0 0.0
  %2942 = vmatmul.mubr.f32.gmra.mrb[0].mxu0 %v2538
  %v2943 = vpop.f32.mrb[0].mxu0
  %v2944 = vadd.f32 %v2866, %v2943
  %v2945 = vpop.f32.mrb[0].mxu0
  %2946 = vmatprep.mubr.f32.mxu0 0.0
  %2947 = vmatmul.mubr.f32.gmra.mrb[0].mxu0 %v2541
  %v2948 = vpop.f32.mrb[0].mxu0
  %v2949 = vadd.f32 %v2866, %v2948
  %v2950 = vpop.f32.mrb[0].mxu0
  %2951 = vdwg.mxu0
  %v2953 = vsel %vm330, %v2934, 0
  %v2956 = vsel %vm330, %v2939, 0
  %v2959 = vsel %vm330, %v2944, 0
  %v2962 = vsel %vm330, %v2949, 0
  %2964 = vmatprep.subr.mxu0 0.0
  %2965 = vmatpush1.xpose.msra.mxu0 %v2532
  %2966 = vmatprep.subr.mxu0 0.0
  %2967 = vmatpush1.xpose.msra.mxu0 %v2535
  %2968 = vmatprep.subr.mxu0 0.0
  %2969 = vmatpush1.xpose.msra.mxu0 %v2538
  %2970 = vmatprep.subr.mxu0 0.0
  %2971 = vmatpush1.xpose.msra.mxu0 %v2541
  %2972 = vmatprep.subr.mxu0 0.0
  %2973 = vmatpush1.xpose.msra.mxu0 0.0
  %2974 = vmatprep.subr.mxu0 0.0
  %2975 = vmatpush1.xpose.msra.mxu0 0.0
  %2976 = vmatprep.subr.mxu0 0.0
  %2977 = vmatpush1.xpose.msra.mxu0 0.0
  %2978 = vmatprep.subr.mxu0 0.0
  %2979 = vmatpush1.xpose.msra.mxu0 0.0
  %2980 = vmatprep.subr.mxu0 0.0
  %2981 = vmatpush1.xpose.msra.mxu0 0.0
  %2982 = vmatprep.subr.mxu0 0.0
  %2983 = vmatpush1.xpose.msra.mxu0 0.0
  %2984 = vmatprep.subr.mxu0 0.0
  %2985 = vmatpush1.xpose.msra.mxu0 0.0
  %2986 = vmatprep.subr.mxu0 0.0
  %2987 = vmatpush1.xpose.msra.mxu0 0.0
  %2988 = vmatprep.subr.mxu0 0.0
  %2989 = vmatpush1.xpose.msra.mxu0 0.0
  %2990 = vmatprep.subr.mxu0 0.0
  %2991 = vmatpush1.xpose.msra.mxu0 0.0
  %2992 = vmatprep.subr.mxu0 0.0
  %2993 = vmatpush1.xpose.msra.mxu0 0.0
  %2994 = vmatprep.subr.mxu0 0.0
  %2995 = vmatpush1.xpose.msra.mxu0 0.0
  %2996 = vmatprep.subr.mxu0 0.0
  %2997 = vmatpush1.xpose.msra.mxu0 0.0
  %2998 = vmatprep.subr.mxu0 0.0
  %2999 = vmatpush1.xpose.msra.mxu0 0.0
  %3000 = vmatprep.subr.mxu0 0.0
  %3001 = vmatpush1.xpose.msra.mxu0 0.0
  %3002 = vmatprep.subr.mxu0 0.0
  %3003 = vmatpush1.xpose.msra.mxu0 0.0
  %3004 = vmatprep.subr.mxu0 0.0
  %3005 = vmatpush1.xpose.msra.mxu0 0.0
  %3006 = vmatprep.subr.mxu0 0.0
  %3007 = vmatpush1.xpose.msra.mxu0 0.0
  %3008 = vmatprep.subr.mxu0 0.0
  %3009 = vmatpush1.xpose.msra.mxu0 0.0
  %3010 = vmatprep.subr.mxu0 0.0
  %3011 = vmatpush1.xpose.msra.mxu0 0.0
  %3012 = vmatprep.subr.mxu0 0.0
  %3013 = vmatpush1.xpose.msra.mxu0 0.0
  %3014 = vmatprep.subr.mxu0 0.0
  %3015 = vmatpush1.xpose.msra.mxu0 0.0
  %3016 = vmatprep.subr.mxu0 0.0
  %3017 = vmatpush1.xpose.msra.mxu0 0.0
  %3018 = vmatprep.subr.mxu0 0.0
  %3019 = vmatpush1.xpose.msra.mxu0 0.0
  %3020 = vmatprep.subr.mxu0 0.0
  %3021 = vmatpush1.xpose.msra.mxu0 0.0
  %3022 = vmatprep.subr.mxu0 0.0
  %3023 = vmatpush1.xpose.msra.mxu0 0.0
  %3024 = vmatprep.subr.mxu0 0.0
  %3025 = vmatpush1.xpose.msra.mxu0 0.0
  %3026 = vmatprep.subr.mxu0 0.0
  %3027 = vmatpush1.xpose.msra.mxu0 0.0
  %3028 = vmatprep.mubr.f32.mxu0 0.0
  %3029 = vmatmul.mubr.f32.gmra.mrb[0].mxu0 %v2953
  %v3030 = vpop.f32.mrb[0].mxu0
  %v3031 = vadd.f32 %v400, %v3030
  %v3032 = vpop.f32.mrb[0].mxu0
  %3033 = vmatprep.mubr.f32.mxu0 0.0
  %3034 = vmatmul.mubr.f32.gmra.mrb[0].mxu0 %v2956
  %v3035 = vpop.f32.mrb[0].mxu0
  %v3036 = vadd.f32 %v401, %v3035
  %v3037 = vpop.f32.mrb[0].mxu0
  %3038 = vmatprep.mubr.f32.mxu0 0.0
  %3039 = vmatmul.mubr.f32.gmra.mrb[0].mxu0 %v2959
  %v3040 = vpop.f32.mrb[0].mxu0
  %v3041 = vadd.f32 %v402, %v3040
  %v3042 = vpop.f32.mrb[0].mxu0
  %3043 = vmatprep.mubr.f32.mxu0 0.0
  %3044 = vmatmul.mubr.f32.gmra.mrb[0].mxu0 %v2962
  %v3045 = vpop.f32.mrb[0].mxu0
  %v3046 = vadd.f32 %v403, %v3045
  %v3047 = vpop.f32.mrb[0].mxu0
  %3048 = vdwg.mxu0
  %v3049 = vsel %vm330, %v3031, -inf
  %3050 = vmax.xlane.f32.xlu0 %v3049
  %v3051 = vpop.xlane.xlu0 %3050
  %v3052 = vsel %vm330, %v3036, -inf
  %3053 = vmax.xlane.f32.xlu0 %v3052
  %v3054 = vpop.xlane.xlu0 %3053
  %v3055 = vsel %vm330, %v3041, -inf
  %3056 = vmax.xlane.f32.xlu0 %v3055
  %v3057 = vpop.xlane.xlu0 %3056
  %v3058 = vsel %vm330, %v3046, -inf
  %3059 = vmax.xlane.f32.xlu0 %v3058
  %v3060 = vpop.xlane.xlu0 %3059
  %v3061 = vsub.f32 %v3031, %v3051
  %v3062 = vsub.f32 %v3036, %v3054
  %v3063 = vsub.f32 %v3041, %v3057
  %v3064 = vsub.f32 %v3046, %v3060
  %v3065 = vmul.f32 %v3061, 1.442695
  %v3066 = vpow.pop %v3065
  %v3067 = vmul.f32 %v3062, 1.442695
  %v3068 = vpow.pop %v3067
  %v3069 = vmul.f32 %v3063, 1.442695
  %v3070 = vpow.pop %v3069
  %v3071 = vmul.f32 %v3064, 1.442695
  %v3072 = vpow.pop %v3071
  %v3073 = vsel %vm330, %v3066, 0.0
  %3074 = vadd.xlane.f32.xlu0 %v3073
  %v3075 = vpop.xlane.xlu0 %3074
  %v3076 = vsel %vm330, %v3068, 0.0
  %3077 = vadd.xlane.f32.xlu0 %v3076
  %v3078 = vpop.xlane.xlu0 %3077
  %v3079 = vsel %vm330, %v3070, 0.0
  %3080 = vadd.xlane.f32.xlu0 %v3079
  %v3081 = vpop.xlane.xlu0 %3080
  %v3082 = vsel %vm330, %v3072, 0.0
  %3083 = vadd.xlane.f32.xlu0 %v3082
  %v3084 = vpop.xlane.xlu0 %3083
  %v3085 = vrcp.pop %v3075
  %v3086 = vrcp.pop %v3078
  %v3087 = vrcp.pop %v3081
  %v3088 = vrcp.pop %v3084
  %v3089 = vmul.f32 %v3066, %v3085
  %v3090 = vmul.f32 %v3068, %v3086
  %v3091 = vmul.f32 %v3070, %v3087
  %v3092 = vmul.f32 %v3072, %v3088
  %3093 = vmatprep.subr.mxu0 0.0
  %3094 = vmatpush1.msra.mxu0 %v2858
  %3095 = vmatprep.subr.mxu0 0.0
  %3096 = vmatpush1.msra.mxu0 %v2859
  %3097 = vmatprep.subr.mxu0 0.0
  %3098 = vmatpush1.msra.mxu0 %v2860
  %3099 = vmatprep.subr.mxu0 0.0
  %3100 = vmatpush1.msra.mxu0 %v2861
  %3101 = vmatprep.subr.mxu0 0.0
  %3102 = vmatpush1.msra.mxu0 0.0
  %3103 = vmatprep.subr.mxu0 0.0
  %3104 = vmatpush1.msra.mxu0 0.0
  %3105 = vmatprep.subr.mxu0 0.0
  %3106 = vmatpush1.msra.mxu0 0.0
  %3107 = vmatprep.subr.mxu0 0.0
  %3108 = vmatpush1.msra.mxu0 0.0
  %3109 = vmatprep.subr.mxu0 0.0
  %3110 = vmatpush1.msra.mxu0 0.0
  %3111 = vmatprep.subr.mxu0 0.0
  %3112 = vmatpush1.msra.mxu0 0.0
  %3113 = vmatprep.subr.mxu0 0.0
  %3114 = vmatpush1.msra.mxu0 0.0
  %3115 = vmatprep.subr.mxu0 0.0
  %3116 = vmatpush1.msra.mxu0 0.0
  %3117 = vmatprep.subr.mxu0 0.0
  %3118 = vmatpush1.msra.mxu0 0.0
  %3119 = vmatprep.subr.mxu0 0.0
  %3120 = vmatpush1.msra.mxu0 0.0
  %3121 = vmatprep.subr.mxu0 0.0
  %3122 = vmatpush1.msra.mxu0 0.0
  %3123 = vmatprep.subr.mxu0 0.0
  %3124 = vmatpush1.msra.mxu0 0.0
  %3125 = vmatprep.subr.mxu0 0.0
  %3126 = vmatpush1.msra.mxu0 0.0
  %3127 = vmatprep.subr.mxu0 0.0
  %3128 = vmatpush1.msra.mxu0 0.0
  %3129 = vmatprep.subr.mxu0 0.0
  %3130 = vmatpush1.msra.mxu0 0.0
  %3131 = vmatprep.subr.mxu0 0.0
  %3132 = vmatpush1.msra.mxu0 0.0
  %3133 = vmatprep.subr.mxu0 0.0
  %3134 = vmatpush1.msra.mxu0 0.0
  %3135 = vmatprep.subr.mxu0 0.0
  %3136 = vmatpush1.msra.mxu0 0.0
  %3137 = vmatprep.subr.mxu0 0.0
  %3138 = vmatpush1.msra.mxu0 0.0
  %3139 = vmatprep.subr.mxu0 0.0
  %3140 = vmatpush1.msra.mxu0 0.0
  %3141 = vmatprep.subr.mxu0 0.0
  %3142 = vmatpush1.msra.mxu0 0.0
  %3143 = vmatprep.subr.mxu0 0.0
  %3144 = vmatpush1.msra.mxu0 0.0
  %3145 = vmatprep.subr.mxu0 0.0
  %3146 = vmatpush1.msra.mxu0 0.0
  %3147 = vmatprep.subr.mxu0 0.0
  %3148 = vmatpush1.msra.mxu0 0.0
  %3149 = vmatprep.subr.mxu0 0.0
  %3150 = vmatpush1.msra.mxu0 0.0
  %3151 = vmatprep.subr.mxu0 0.0
  %3152 = vmatpush1.msra.mxu0 0.0
  %3153 = vmatprep.subr.mxu0 0.0
  %3154 = vmatpush1.msra.mxu0 0.0
  %3155 = vmatprep.subr.mxu0 0.0
  %3156 = vmatpush1.msra.mxu0 0.0
  %3157 = vmatprep.mubr.f32.mxu0 0.0
  %3158 = vmatmul.mubr.f32.gmra.mrb[0].mxu0 %v2532
  %v3159 = vpop.f32.mrb[0].mxu0
  %v3160 = vadd.f32 0.0, %v3159
  %v3161 = vpop.f32.mrb[0].mxu0
  %3162 = vmatprep.mubr.f32.mxu0 0.0
  %3163 = vmatmul.mubr.f32.gmra.mrb[0].mxu0 %v2535
  %v3164 = vpop.f32.mrb[0].mxu0
  %v3165 = vadd.f32 0.0, %v3164
  %v3166 = vpop.f32.mrb[0].mxu0
  %3167 = vmatprep.mubr.f32.mxu0 0.0
  %3168 = vmatmul.mubr.f32.gmra.mrb[0].mxu0 %v2538
  %v3169 = vpop.f32.mrb[0].mxu0
  %v3170 = vadd.f32 0.0, %v3169
  %v3171 = vpop.f32.mrb[0].mxu0
  %3172 = vmatprep.mubr.f32.mxu0 0.0
  %3173 = vmatmul.mubr.f32.gmra.mrb[0].mxu0 %v2541
  %v3174 = vpop.f32.mrb[0].mxu0
  %v3175 = vadd.f32 0.0, %v3174
  %v3176 = vpop.f32.mrb[0].mxu0
  %3177 = vdwg.mxu0
  %v3179 = vsel %vm330, %v3089, 0
  %v3182 = vsel %vm330, %v3090, 0
  %v3185 = vsel %vm330, %v3091, 0
  %v3188 = vsel %vm330, %v3092, 0
  %3190 = vmatprep.subr.mxu0 0.0
  %3191 = vmatpush1.msra.mxu0 %v3160
  %3192 = vmatprep.subr.mxu0 0.0
  %3193 = vmatpush1.msra.mxu0 %v3165
  %3194 = vmatprep.subr.mxu0 0.0
  %3195 = vmatpush1.msra.mxu0 %v3170
  %3196 = vmatprep.subr.mxu0 0.0
  %3197 = vmatpush1.msra.mxu0 %v3175
  %3198 = vmatprep.subr.mxu0 0.0
  %3199 = vmatpush1.msra.mxu0 0.0
  %3200 = vmatprep.subr.mxu0 0.0
  %3201 = vmatpush1.msra.mxu0 0.0
  %3202 = vmatprep.subr.mxu0 0.0
  %3203 = vmatpush1.msra.mxu0 0.0
  %3204 = vmatprep.subr.mxu0 0.0
  %3205 = vmatpush1.msra.mxu0 0.0
  %3206 = vmatprep.subr.mxu0 0.0
  %3207 = vmatpush1.msra.mxu0 0.0
  %3208 = vmatprep.subr.mxu0 0.0
  %3209 = vmatpush1.msra.mxu0 0.0
  %3210 = vmatprep.subr.mxu0 0.0
  %3211 = vmatpush1.msra.mxu0 0.0
  %3212 = vmatprep.subr.mxu0 0.0
  %3213 = vmatpush1.msra.mxu0 0.0
  %3214 = vmatprep.subr.mxu0 0.0
  %3215 = vmatpush1.msra.mxu0 0.0
  %3216 = vmatprep.subr.mxu0 0.0
  %3217 = vmatpush1.msra.mxu0 0.0
  %3218 = vmatprep.subr.mxu0 0.0
  %3219 = vmatpush1.msra.mxu0 0.0
  %3220 = vmatprep.subr.mxu0 0.0
  %3221 = vmatpush1.msra.mxu0 0.0
  %3222 = vmatprep.subr.mxu0 0.0
  %3223 = vmatpush1.msra.mxu0 0.0
  %3224 = vmatprep.subr.mxu0 0.0
  %3225 = vmatpush1.msra.mxu0 0.0
  %3226 = vmatprep.subr.mxu0 0.0
  %3227 = vmatpush1.msra.mxu0 0.0
  %3228 = vmatprep.subr.mxu0 0.0
  %3229 = vmatpush1.msra.mxu0 0.0
  %3230 = vmatprep.subr.mxu0 0.0
  %3231 = vmatpush1.msra.mxu0 0.0
  %3232 = vmatprep.subr.mxu0 0.0
  %3233 = vmatpush1.msra.mxu0 0.0
  %3234 = vmatprep.subr.mxu0 0.0
  %3235 = vmatpush1.msra.mxu0 0.0
  %3236 = vmatprep.subr.mxu0 0.0
  %3237 = vmatpush1.msra.mxu0 0.0
  %3238 = vmatprep.subr.mxu0 0.0
  %3239 = vmatpush1.msra.mxu0 0.0
  %3240 = vmatprep.subr.mxu0 0.0
  %3241 = vmatpush1.msra.mxu0 0.0
  %3242 = vmatprep.subr.mxu0 0.0
  %3243 = vmatpush1.msra.mxu0 0.0
  %3244 = vmatprep.subr.mxu0 0.0
  %3245 = vmatpush1.msra.mxu0 0.0
  %3246 = vmatprep.subr.mxu0 0.0
  %3247 = vmatpush1.msra.mxu0 0.0
  %3248 = vmatprep.subr.mxu0 0.0
  %3249 = vmatpush1.msra.mxu0 0.0
  %3250 = vmatprep.subr.mxu0 0.0
  %3251 = vmatpush1.msra.mxu0 0.0
  %3252 = vmatprep.subr.mxu0 0.0
  %3253 = vmatpush1.msra.mxu0 0.0
  %3254 = vmatprep.mubr.f32.mxu0 0.0
  %3255 = vmatmul.mubr.f32.gmra.mrb[0].mxu0 %v3179
  %v3256 = vpop.f32.mrb[0].mxu0
  %v3257 = vadd.f32 0.0, %v3256
  %v3258 = vpop.f32.mrb[0].mxu0
  %3259 = vmatprep.mubr.f32.mxu0 0.0
  %3260 = vmatmul.mubr.f32.gmra.mrb[0].mxu0 %v3182
  %v3261 = vpop.f32.mrb[0].mxu0
  %v3262 = vadd.f32 0.0, %v3261
  %v3263 = vpop.f32.mrb[0].mxu0
  %3264 = vmatprep.mubr.f32.mxu0 0.0
  %3265 = vmatmul.mubr.f32.gmra.mrb[0].mxu0 %v3185
  %v3266 = vpop.f32.mrb[0].mxu0
  %v3267 = vadd.f32 0.0, %v3266
  %v3268 = vpop.f32.mrb[0].mxu0
  %3269 = vmatprep.mubr.f32.mxu0 0.0
  %3270 = vmatmul.mubr.f32.gmra.mrb[0].mxu0 %v3188
  %v3271 = vpop.f32.mrb[0].mxu0
  %v3272 = vadd.f32 0.0, %v3271
  %v3273 = vpop.f32.mrb[0].mxu0
  %3274 = vdwg.mxu0
  %v3276 = vsel %vm330, %v2765, 0
  %v3279 = vsel %vm330, %v2766, 0
  %v3282 = vsel %vm330, %v2767, 0
  %v3285 = vsel %vm330, %v2768, 0
  %3287 = vmatprep.subr.mxu0 0.0
  %3288 = vmatpush1.msra.mxu0 %v2836
  %3289 = vmatprep.subr.mxu0 0.0
  %3290 = vmatpush1.msra.mxu0 %v2841
  %3291 = vmatprep.subr.mxu0 0.0
  %3292 = vmatpush1.msra.mxu0 %v2846
  %3293 = vmatprep.subr.mxu0 0.0
  %3294 = vmatpush1.msra.mxu0 %v2851
  %3295 = vmatprep.subr.mxu0 0.0
  %3296 = vmatpush1.msra.mxu0 0.0
  %3297 = vmatprep.subr.mxu0 0.0
  %3298 = vmatpush1.msra.mxu0 0.0
  %3299 = vmatprep.subr.mxu0 0.0
  %3300 = vmatpush1.msra.mxu0 0.0
  %3301 = vmatprep.subr.mxu0 0.0
  %3302 = vmatpush1.msra.mxu0 0.0
  %3303 = vmatprep.subr.mxu0 0.0
  %3304 = vmatpush1.msra.mxu0 0.0
  %3305 = vmatprep.subr.mxu0 0.0
  %3306 = vmatpush1.msra.mxu0 0.0
  %3307 = vmatprep.subr.mxu0 0.0
  %3308 = vmatpush1.msra.mxu0 0.0
  %3309 = vmatprep.subr.mxu0 0.0
  %3310 = vmatpush1.msra.mxu0 0.0
  %3311 = vmatprep.subr.mxu0 0.0
  %3312 = vmatpush1.msra.mxu0 0.0
  %3313 = vmatprep.subr.mxu0 0.0
  %3314 = vmatpush1.msra.mxu0 0.0
  %3315 = vmatprep.subr.mxu0 0.0
  %3316 = vmatpush1.msra.mxu0 0.0
  %3317 = vmatprep.subr.mxu0 0.0
  %3318 = vmatpush1.msra.mxu0 0.0
  %3319 = vmatprep.subr.mxu0 0.0
  %3320 = vmatpush1.msra.mxu0 0.0
  %3321 = vmatprep.subr.mxu0 0.0
  %3322 = vmatpush1.msra.mxu0 0.0
  %3323 = vmatprep.subr.mxu0 0.0
  %3324 = vmatpush1.msra.mxu0 0.0
  %3325 = vmatprep.subr.mxu0 0.0
  %3326 = vmatpush1.msra.mxu0 0.0
  %3327 = vmatprep.subr.mxu0 0.0
  %3328 = vmatpush1.msra.mxu0 0.0
  %3329 = vmatprep.subr.mxu0 0.0
  %3330 = vmatpush1.msra.mxu0 0.0
  %3331 = vmatprep.subr.mxu0 0.0
  %3332 = vmatpush1.msra.mxu0 0.0
  %3333 = vmatprep.subr.mxu0 0.0
  %3334 = vmatpush1.msra.mxu0 0.0
  %3335 = vmatprep.subr.mxu0 0.0
  %3336 = vmatpush1.msra.mxu0 0.0
  %3337 = vmatprep.subr.mxu0 0.0
  %3338 = vmatpush1.msra.mxu0 0.0
  %3339 = vmatprep.subr.mxu0 0.0
  %3340 = vmatpush1.msra.mxu0 0.0
  %3341 = vmatprep.subr.mxu0 0.0
  %3342 = vmatpush1.msra.mxu0 0.0
  %3343 = vmatprep.subr.mxu0 0.0
  %3344 = vmatpush1.msra.mxu0 0.0
  %3345 = vmatprep.subr.mxu0 0.0
  %3346 = vmatpush1.msra.mxu0 0.0
  %3347 = vmatprep.subr.mxu0 0.0
  %3348 = vmatpush1.msra.mxu0 0.0
  %3349 = vmatprep.subr.mxu0 0.0
  %3350 = vmatpush1.msra.mxu0 0.0
  %3351 = vmatprep.mubr.f32.mxu0 0.0
  %3352 = vmatmul.mubr.f32.gmra.mrb[0].mxu0 %v3276
  %v3353 = vpop.f32.mrb[0].mxu0
  %v3354 = vadd.f32 %v3257, %v3353
  %v3355 = vpop.f32.mrb[0].mxu0
  %3356 = vmatprep.mubr.f32.mxu0 0.0
  %3357 = vmatmul.mubr.f32.gmra.mrb[0].mxu0 %v3279
  %v3358 = vpop.f32.mrb[0].mxu0
  %v3359 = vadd.f32 %v3262, %v3358
  %v3360 = vpop.f32.mrb[0].mxu0
  %3361 = vmatprep.mubr.f32.mxu0 0.0
  %3362 = vmatmul.mubr.f32.gmra.mrb[0].mxu0 %v3282
  %v3363 = vpop.f32.mrb[0].mxu0
  %v3364 = vadd.f32 %v3267, %v3363
  %v3365 = vpop.f32.mrb[0].mxu0
  %3366 = vmatprep.mubr.f32.mxu0 0.0
  %3367 = vmatmul.mubr.f32.gmra.mrb[0].mxu0 %v3285
  %v3368 = vpop.f32.mrb[0].mxu0
  %v3369 = vadd.f32 %v3272, %v3368
  %v3370 = vpop.f32.mrb[0].mxu0
  %3371 = vdwg.mxu0
  %v3372 = vld [vmem:[%s4 + $0xc0] sm:$0xff]
  %v3373 = vld [vmem:[%s4 + $0xc8] sm:$0xff]
  %v3374 = vld [vmem:[%s4 + $0xd0] sm:$0xff]
  %v3375 = vld [vmem:[%s4 + $0xd8] sm:$0xff]
  %v3376 = vld [vmem:[%s4 + $0x1c0] sm:$0xff]
  %v3377 = vld [vmem:[%s4 + $0x1c8] sm:$0xff]
  %v3378 = vld [vmem:[%s4 + $0x1d0] sm:$0xff]
  %v3379 = vld [vmem:[%s4 + $0x1d8] sm:$0xff]
  %v3380 = vld [vmem:[%s5 + $0x79] sm:$0x1]
  %v3381 = vlaneseq
  %v3382 = vshrl.u32 %v3381, 7
  %v3383 = vsub.s32 0, %v3382
  %v3384 = vrot.slane %v3380, %v3383
  %3385 = vmatprep.subr.mxu0 0.0
  %3386 = vmatpush1.msra.mxu0 %v3372
  %3387 = vmatprep.subr.mxu0 0.0
  %3388 = vmatpush1.msra.mxu0 %v3373
  %3389 = vmatprep.subr.mxu0 0.0
  %3390 = vmatpush1.msra.mxu0 %v3374
  %3391 = vmatprep.subr.mxu0 0.0
  %3392 = vmatpush1.msra.mxu0 %v3375
  %3393 = vmatprep.subr.mxu0 0.0
  %3394 = vmatpush1.msra.mxu0 0.0
  %3395 = vmatprep.subr.mxu0 0.0
  %3396 = vmatpush1.msra.mxu0 0.0
  %3397 = vmatprep.subr.mxu0 0.0
  %3398 = vmatpush1.msra.mxu0 0.0
  %3399 = vmatprep.subr.mxu0 0.0
  %3400 = vmatpush1.msra.mxu0 0.0
  %3401 = vmatprep.subr.mxu0 0.0
  %3402 = vmatpush1.msra.mxu0 0.0
  %3403 = vmatprep.subr.mxu0 0.0
  %3404 = vmatpush1.msra.mxu0 0.0
  %3405 = vmatprep.subr.mxu0 0.0
  %3406 = vmatpush1.msra.mxu0 0.0
  %3407 = vmatprep.subr.mxu0 0.0
  %3408 = vmatpush1.msra.mxu0 0.0
  %3409 = vmatprep.subr.mxu0 0.0
  %3410 = vmatpush1.msra.mxu0 0.0
  %3411 = vmatprep.subr.mxu0 0.0
  %3412 = vmatpush1.msra.mxu0 0.0
  %3413 = vmatprep.subr.mxu0 0.0
  %3414 = vmatpush1.msra.mxu0 0.0
  %3415 = vmatprep.subr.mxu0 0.0
  %3416 = vmatpush1.msra.mxu0 0.0
  %3417 = vmatprep.subr.mxu0 0.0
  %3418 = vmatpush1.msra.mxu0 0.0
  %3419 = vmatprep.subr.mxu0 0.0
  %3420 = vmatpush1.msra.mxu0 0.0
  %3421 = vmatprep.subr.mxu0 0.0
  %3422 = vmatpush1.msra.mxu0 0.0
  %3423 = vmatprep.subr.mxu0 0.0
  %3424 = vmatpush1.msra.mxu0 0.0
  %3425 = vmatprep.subr.mxu0 0.0
  %3426 = vmatpush1.msra.mxu0 0.0
  %3427 = vmatprep.subr.mxu0 0.0
  %3428 = vmatpush1.msra.mxu0 0.0
  %3429 = vmatprep.subr.mxu0 0.0
  %3430 = vmatpush1.msra.mxu0 0.0
  %3431 = vmatprep.subr.mxu0 0.0
  %3432 = vmatpush1.msra.mxu0 0.0
  %3433 = vmatprep.subr.mxu0 0.0
  %3434 = vmatpush1.msra.mxu0 0.0
  %3435 = vmatprep.subr.mxu0 0.0
  %3436 = vmatpush1.msra.mxu0 0.0
  %3437 = vmatprep.subr.mxu0 0.0
  %3438 = vmatpush1.msra.mxu0 0.0
  %3439 = vmatprep.subr.mxu0 0.0
  %3440 = vmatpush1.msra.mxu0 0.0
  %3441 = vmatprep.subr.mxu0 0.0
  %3442 = vmatpush1.msra.mxu0 0.0
  %3443 = vmatprep.subr.mxu0 0.0
  %3444 = vmatpush1.msra.mxu0 0.0
  %3445 = vmatprep.subr.mxu0 0.0
  %3446 = vmatpush1.msra.mxu0 0.0
  %3447 = vmatprep.subr.mxu0 0.0
  %3448 = vmatpush1.msra.mxu0 0.0
  %3449 = vmatprep.mubr.f32.mxu0 0.0
  %3450 = vmatmul.mubr.f32.gmra.mrb[0].mxu0 %v2532
  %v3451 = vpop.f32.mrb[0].mxu0
  %v3452 = vadd.f32 %v3384, %v3451
  %v3453 = vpop.f32.mrb[0].mxu0
  %3454 = vmatprep.mubr.f32.mxu0 0.0
  %3455 = vmatmul.mubr.f32.gmra.mrb[0].mxu0 %v2535
  %v3456 = vpop.f32.mrb[0].mxu0
  %v3457 = vadd.f32 %v3384, %v3456
  %v3458 = vpop.f32.mrb[0].mxu0
  %3459 = vmatprep.mubr.f32.mxu0 0.0
  %3460 = vmatmul.mubr.f32.gmra.mrb[0].mxu0 %v2538
  %v3461 = vpop.f32.mrb[0].mxu0
  %v3462 = vadd.f32 %v3384, %v3461
  %v3463 = vpop.f32.mrb[0].mxu0
  %3464 = vmatprep.mubr.f32.mxu0 0.0
  %3465 = vmatmul.mubr.f32.gmra.mrb[0].mxu0 %v2541
  %v3466 = vpop.f32.mrb[0].mxu0
  %v3467 = vadd.f32 %v3384, %v3466
  %v3468 = vpop.f32.mrb[0].mxu0
  %3469 = vdwg.mxu0
  %v3471 = vsel %vm330, %v3452, 0
  %v3474 = vsel %vm330, %v3457, 0
  %v3477 = vsel %vm330, %v3462, 0
  %v3480 = vsel %vm330, %v3467, 0
  %3482 = vmatprep.subr.mxu0 0.0
  %3483 = vmatpush1.xpose.msra.mxu0 %v2532
  %3484 = vmatprep.subr.mxu0 0.0
  %3485 = vmatpush1.xpose.msra.mxu0 %v2535
  %3486 = vmatprep.subr.mxu0 0.0
  %3487 = vmatpush1.xpose.msra.mxu0 %v2538
  %3488 = vmatprep.subr.mxu0 0.0
  %3489 = vmatpush1.xpose.msra.mxu0 %v2541
  %3490 = vmatprep.subr.mxu0 0.0
  %3491 = vmatpush1.xpose.msra.mxu0 0.0
  %3492 = vmatprep.subr.mxu0 0.0
  %3493 = vmatpush1.xpose.msra.mxu0 0.0
  %3494 = vmatprep.subr.mxu0 0.0
  %3495 = vmatpush1.xpose.msra.mxu0 0.0
  %3496 = vmatprep.subr.mxu0 0.0
  %3497 = vmatpush1.xpose.msra.mxu0 0.0
  %3498 = vmatprep.subr.mxu0 0.0
  %3499 = vmatpush1.xpose.msra.mxu0 0.0
  %3500 = vmatprep.subr.mxu0 0.0
  %3501 = vmatpush1.xpose.msra.mxu0 0.0
  %3502 = vmatprep.subr.mxu0 0.0
  %3503 = vmatpush1.xpose.msra.mxu0 0.0
  %3504 = vmatprep.subr.mxu0 0.0
  %3505 = vmatpush1.xpose.msra.mxu0 0.0
  %3506 = vmatprep.subr.mxu0 0.0
  %3507 = vmatpush1.xpose.msra.mxu0 0.0
  %3508 = vmatprep.subr.mxu0 0.0
  %3509 = vmatpush1.xpose.msra.mxu0 0.0
  %3510 = vmatprep.subr.mxu0 0.0
  %3511 = vmatpush1.xpose.msra.mxu0 0.0
  %3512 = vmatprep.subr.mxu0 0.0
  %3513 = vmatpush1.xpose.msra.mxu0 0.0
  %3514 = vmatprep.subr.mxu0 0.0
  %3515 = vmatpush1.xpose.msra.mxu0 0.0
  %3516 = vmatprep.subr.mxu0 0.0
  %3517 = vmatpush1.xpose.msra.mxu0 0.0
  %3518 = vmatprep.subr.mxu0 0.0
  %3519 = vmatpush1.xpose.msra.mxu0 0.0
  %3520 = vmatprep.subr.mxu0 0.0
  %3521 = vmatpush1.xpose.msra.mxu0 0.0
  %3522 = vmatprep.subr.mxu0 0.0
  %3523 = vmatpush1.xpose.msra.mxu0 0.0
  %3524 = vmatprep.subr.mxu0 0.0
  %3525 = vmatpush1.xpose.msra.mxu0 0.0
  %3526 = vmatprep.subr.mxu0 0.0
  %3527 = vmatpush1.xpose.msra.mxu0 0.0
  %3528 = vmatprep.subr.mxu0 0.0
  %3529 = vmatpush1.xpose.msra.mxu0 0.0
  %3530 = vmatprep.subr.mxu0 0.0
  %3531 = vmatpush1.xpose.msra.mxu0 0.0
  %3532 = vmatprep.subr.mxu0 0.0
  %3533 = vmatpush1.xpose.msra.mxu0 0.0
  %3534 = vmatprep.subr.mxu0 0.0
  %3535 = vmatpush1.xpose.msra.mxu0 0.0
  %3536 = vmatprep.subr.mxu0 0.0
  %3537 = vmatpush1.xpose.msra.mxu0 0.0
  %3538 = vmatprep.subr.mxu0 0.0
  %3539 = vmatpush1.xpose.msra.mxu0 0.0
  %3540 = vmatprep.subr.mxu0 0.0
  %3541 = vmatpush1.xpose.msra.mxu0 0.0
  %3542 = vmatprep.subr.mxu0 0.0
  %3543 = vmatpush1.xpose.msra.mxu0 0.0
  %3544 = vmatprep.subr.mxu0 0.0
  %3545 = vmatpush1.xpose.msra.mxu0 0.0
  %3546 = vmatprep.mubr.f32.mxu0 0.0
  %3547 = vmatmul.mubr.f32.gmra.mrb[0].mxu0 %v3471
  %v3548 = vpop.f32.mrb[0].mxu0
  %v3549 = vadd.f32 %v400, %v3548
  %v3550 = vpop.f32.mrb[0].mxu0
  %3551 = vmatprep.mubr.f32.mxu0 0.0
  %3552 = vmatmul.mubr.f32.gmra.mrb[0].mxu0 %v3474
  %v3553 = vpop.f32.mrb[0].mxu0
  %v3554 = vadd.f32 %v401, %v3553
  %v3555 = vpop.f32.mrb[0].mxu0
  %3556 = vmatprep.mubr.f32.mxu0 0.0
  %3557 = vmatmul.mubr.f32.gmra.mrb[0].mxu0 %v3477
  %v3558 = vpop.f32.mrb[0].mxu0
  %v3559 = vadd.f32 %v402, %v3558
  %v3560 = vpop.f32.mrb[0].mxu0
  %3561 = vmatprep.mubr.f32.mxu0 0.0
  %3562 = vmatmul.mubr.f32.gmra.mrb[0].mxu0 %v3480
  %v3563 = vpop.f32.mrb[0].mxu0
  %v3564 = vadd.f32 %v403, %v3563
  %v3565 = vpop.f32.mrb[0].mxu0
  %3566 = vdwg.mxu0
  %v3567 = vsel %vm330, %v3549, -inf
  %3568 = vmax.xlane.f32.xlu0 %v3567
  %v3569 = vpop.xlane.xlu0 %3568
  %v3570 = vsel %vm330, %v3554, -inf
  %3571 = vmax.xlane.f32.xlu0 %v3570
  %v3572 = vpop.xlane.xlu0 %3571
  %v3573 = vsel %vm330, %v3559, -inf
  %3574 = vmax.xlane.f32.xlu0 %v3573
  %v3575 = vpop.xlane.xlu0 %3574
  %v3576 = vsel %vm330, %v3564, -inf
  %3577 = vmax.xlane.f32.xlu0 %v3576
  %v3578 = vpop.xlane.xlu0 %3577
  %v3579 = vsub.f32 %v3549, %v3569
  %v3580 = vsub.f32 %v3554, %v3572
  %v3581 = vsub.f32 %v3559, %v3575
  %v3582 = vsub.f32 %v3564, %v3578
  %v3583 = vmul.f32 %v3579, 1.442695
  %v3584 = vpow.pop %v3583
  %v3585 = vmul.f32 %v3580, 1.442695
  %v3586 = vpow.pop %v3585
  %v3587 = vmul.f32 %v3581, 1.442695
  %v3588 = vpow.pop %v3587
  %v3589 = vmul.f32 %v3582, 1.442695
  %v3590 = vpow.pop %v3589
  %v3591 = vsel %vm330, %v3584, 0.0
  %3592 = vadd.xlane.f32.xlu0 %v3591
  %v3593 = vpop.xlane.xlu0 %3592
  %v3594 = vsel %vm330, %v3586, 0.0
  %3595 = vadd.xlane.f32.xlu0 %v3594
  %v3596 = vpop.xlane.xlu0 %3595
  %v3597 = vsel %vm330, %v3588, 0.0
  %3598 = vadd.xlane.f32.xlu0 %v3597
  %v3599 = vpop.xlane.xlu0 %3598
  %v3600 = vsel %vm330, %v3590, 0.0
  %3601 = vadd.xlane.f32.xlu0 %v3600
  %v3602 = vpop.xlane.xlu0 %3601
  %v3603 = vrcp.pop %v3593
  %v3604 = vrcp.pop %v3596
  %v3605 = vrcp.pop %v3599
  %v3606 = vrcp.pop %v3602
  %v3607 = vmul.f32 %v3584, %v3603
  %v3608 = vmul.f32 %v3586, %v3604
  %v3609 = vmul.f32 %v3588, %v3605
  %v3610 = vmul.f32 %v3590, %v3606
  %3611 = vmatprep.subr.mxu0 0.0
  %3612 = vmatpush1.msra.mxu0 %v3376
  %3613 = vmatprep.subr.mxu0 0.0
  %3614 = vmatpush1.msra.mxu0 %v3377
  %3615 = vmatprep.subr.mxu0 0.0
  %3616 = vmatpush1.msra.mxu0 %v3378
  %3617 = vmatprep.subr.mxu0 0.0
  %3618 = vmatpush1.msra.mxu0 %v3379
  %3619 = vmatprep.subr.mxu0 0.0
  %3620 = vmatpush1.msra.mxu0 0.0
  %3621 = vmatprep.subr.mxu0 0.0
  %3622 = vmatpush1.msra.mxu0 0.0
  %3623 = vmatprep.subr.mxu0 0.0
  %3624 = vmatpush1.msra.mxu0 0.0
  %3625 = vmatprep.subr.mxu0 0.0
  %3626 = vmatpush1.msra.mxu0 0.0
  %3627 = vmatprep.subr.mxu0 0.0
  %3628 = vmatpush1.msra.mxu0 0.0
  %3629 = vmatprep.subr.mxu0 0.0
  %3630 = vmatpush1.msra.mxu0 0.0
  %3631 = vmatprep.subr.mxu0 0.0
  %3632 = vmatpush1.msra.mxu0 0.0
  %3633 = vmatprep.subr.mxu0 0.0
  %3634 = vmatpush1.msra.mxu0 0.0
  %3635 = vmatprep.subr.mxu0 0.0
  %3636 = vmatpush1.msra.mxu0 0.0
  %3637 = vmatprep.subr.mxu0 0.0
  %3638 = vmatpush1.msra.mxu0 0.0
  %3639 = vmatprep.subr.mxu0 0.0
  %3640 = vmatpush1.msra.mxu0 0.0
  %3641 = vmatprep.subr.mxu0 0.0
  %3642 = vmatpush1.msra.mxu0 0.0
  %3643 = vmatprep.subr.mxu0 0.0
  %3644 = vmatpush1.msra.mxu0 0.0
  %3645 = vmatprep.subr.mxu0 0.0
  %3646 = vmatpush1.msra.mxu0 0.0
  %3647 = vmatprep.subr.mxu0 0.0
  %3648 = vmatpush1.msra.mxu0 0.0
  %3649 = vmatprep.subr.mxu0 0.0
  %3650 = vmatpush1.msra.mxu0 0.0
  %3651 = vmatprep.subr.mxu0 0.0
  %3652 = vmatpush1.msra.mxu0 0.0
  %3653 = vmatprep.subr.mxu0 0.0
  %3654 = vmatpush1.msra.mxu0 0.0
  %3655 = vmatprep.subr.mxu0 0.0
  %3656 = vmatpush1.msra.mxu0 0.0
  %3657 = vmatprep.subr.mxu0 0.0
  %3658 = vmatpush1.msra.mxu0 0.0
  %3659 = vmatprep.subr.mxu0 0.0
  %3660 = vmatpush1.msra.mxu0 0.0
  %3661 = vmatprep.subr.mxu0 0.0
  %3662 = vmatpush1.msra.mxu0 0.0
  %3663 = vmatprep.subr.mxu0 0.0
  %3664 = vmatpush1.msra.mxu0 0.0
  %3665 = vmatprep.subr.mxu0 0.0
  %3666 = vmatpush1.msra.mxu0 0.0
  %3667 = vmatprep.subr.mxu0 0.0
  %3668 = vmatpush1.msra.mxu0 0.0
  %3669 = vmatprep.subr.mxu0 0.0
  %3670 = vmatpush1.msra.mxu0 0.0
  %3671 = vmatprep.subr.mxu0 0.0
  %3672 = vmatpush1.msra.mxu0 0.0
  %3673 = vmatprep.subr.mxu0 0.0
  %3674 = vmatpush1.msra.mxu0 0.0
  %3675 = vmatprep.mubr.f32.mxu0 0.0
  %3676 = vmatmul.mubr.f32.gmra.mrb[0].mxu0 %v2532
  %v3677 = vpop.f32.mrb[0].mxu0
  %v3678 = vadd.f32 0.0, %v3677
  %v3679 = vpop.f32.mrb[0].mxu0
  %3680 = vmatprep.mubr.f32.mxu0 0.0
  %3681 = vmatmul.mubr.f32.gmra.mrb[0].mxu0 %v2535
  %v3682 = vpop.f32.mrb[0].mxu0
  %v3683 = vadd.f32 0.0, %v3682
  %v3684 = vpop.f32.mrb[0].mxu0
  %3685 = vmatprep.mubr.f32.mxu0 0.0
  %3686 = vmatmul.mubr.f32.gmra.mrb[0].mxu0 %v2538
  %v3687 = vpop.f32.mrb[0].mxu0
  %v3688 = vadd.f32 0.0, %v3687
  %v3689 = vpop.f32.mrb[0].mxu0
  %3690 = vmatprep.mubr.f32.mxu0 0.0
  %3691 = vmatmul.mubr.f32.gmra.mrb[0].mxu0 %v2541
  %v3692 = vpop.f32.mrb[0].mxu0
  %v3693 = vadd.f32 0.0, %v3692
  %v3694 = vpop.f32.mrb[0].mxu0
  %3695 = vdwg.mxu0
  %v3697 = vsel %vm330, %v3607, 0
  %v3700 = vsel %vm330, %v3608, 0
  %v3703 = vsel %vm330, %v3609, 0
  %v3706 = vsel %vm330, %v3610, 0
  %3708 = vmatprep.subr.mxu0 0.0
  %3709 = vmatpush1.msra.mxu0 %v3678
  %3710 = vmatprep.subr.mxu0 0.0
  %3711 = vmatpush1.msra.mxu0 %v3683
  %3712 = vmatprep.subr.mxu0 0.0
  %3713 = vmatpush1.msra.mxu0 %v3688
  %3714 = vmatprep.subr.mxu0 0.0
  %3715 = vmatpush1.msra.mxu0 %v3693
  %3716 = vmatprep.subr.mxu0 0.0
  %3717 = vmatpush1.msra.mxu0 0.0
  %3718 = vmatprep.subr.mxu0 0.0
  %3719 = vmatpush1.msra.mxu0 0.0
  %3720 = vmatprep.subr.mxu0 0.0
  %3721 = vmatpush1.msra.mxu0 0.0
  %3722 = vmatprep.subr.mxu0 0.0
  %3723 = vmatpush1.msra.mxu0 0.0
  %3724 = vmatprep.subr.mxu0 0.0
  %3725 = vmatpush1.msra.mxu0 0.0
  %3726 = vmatprep.subr.mxu0 0.0
  %3727 = vmatpush1.msra.mxu0 0.0
  %3728 = vmatprep.subr.mxu0 0.0
  %3729 = vmatpush1.msra.mxu0 0.0
  %3730 = vmatprep.subr.mxu0 0.0
  %3731 = vmatpush1.msra.mxu0 0.0
  %3732 = vmatprep.subr.mxu0 0.0
  %3733 = vmatpush1.msra.mxu0 0.0
  %3734 = vmatprep.subr.mxu0 0.0
  %3735 = vmatpush1.msra.mxu0 0.0
  %3736 = vmatprep.subr.mxu0 0.0
  %3737 = vmatpush1.msra.mxu0 0.0
  %3738 = vmatprep.subr.mxu0 0.0
  %3739 = vmatpush1.msra.mxu0 0.0
  %3740 = vmatprep.subr.mxu0 0.0
  %3741 = vmatpush1.msra.mxu0 0.0
  %3742 = vmatprep.subr.mxu0 0.0
  %3743 = vmatpush1.msra.mxu0 0.0
  %3744 = vmatprep.subr.mxu0 0.0
  %3745 = vmatpush1.msra.mxu0 0.0
  %3746 = vmatprep.subr.mxu0 0.0
  %3747 = vmatpush1.msra.mxu0 0.0
  %3748 = vmatprep.subr.mxu0 0.0
  %3749 = vmatpush1.msra.mxu0 0.0
  %3750 = vmatprep.subr.mxu0 0.0
  %3751 = vmatpush1.msra.mxu0 0.0
  %3752 = vmatprep.subr.mxu0 0.0
  %3753 = vmatpush1.msra.mxu0 0.0
  %3754 = vmatprep.subr.mxu0 0.0
  %3755 = vmatpush1.msra.mxu0 0.0
  %3756 = vmatprep.subr.mxu0 0.0
  %3757 = vmatpush1.msra.mxu0 0.0
  %3758 = vmatprep.subr.mxu0 0.0
  %3759 = vmatpush1.msra.mxu0 0.0
  %3760 = vmatprep.subr.mxu0 0.0
  %3761 = vmatpush1.msra.mxu0 0.0
  %3762 = vmatprep.subr.mxu0 0.0
  %3763 = vmatpush1.msra.mxu0 0.0
  %3764 = vmatprep.subr.mxu0 0.0
  %3765 = vmatpush1.msra.mxu0 0.0
  %3766 = vmatprep.subr.mxu0 0.0
  %3767 = vmatpush1.msra.mxu0 0.0
  %3768 = vmatprep.subr.mxu0 0.0
  %3769 = vmatpush1.msra.mxu0 0.0
  %3770 = vmatprep.subr.mxu0 0.0
  %3771 = vmatpush1.msra.mxu0 0.0
  %3772 = vmatprep.mubr.f32.mxu0 0.0
  %3773 = vmatmul.mubr.f32.gmra.mrb[0].mxu0 %v3697
  %v3774 = vpop.f32.mrb[0].mxu0
  %v3775 = vadd.f32 0.0, %v3774
  %v3776 = vpop.f32.mrb[0].mxu0
  %3777 = vmatprep.mubr.f32.mxu0 0.0
  %3778 = vmatmul.mubr.f32.gmra.mrb[0].mxu0 %v3700
  %v3779 = vpop.f32.mrb[0].mxu0
  %v3780 = vadd.f32 0.0, %v3779
  %v3781 = vpop.f32.mrb[0].mxu0
  %3782 = vmatprep.mubr.f32.mxu0 0.0
  %3783 = vmatmul.mubr.f32.gmra.mrb[0].mxu0 %v3703
  %v3784 = vpop.f32.mrb[0].mxu0
  %v3785 = vadd.f32 0.0, %v3784
  %v3786 = vpop.f32.mrb[0].mxu0
  %3787 = vmatprep.mubr.f32.mxu0 0.0
  %3788 = vmatmul.mubr.f32.gmra.mrb[0].mxu0 %v3706
  %v3789 = vpop.f32.mrb[0].mxu0
  %v3790 = vadd.f32 0.0, %v3789
  %v3791 = vpop.f32.mrb[0].mxu0
  %3792 = vdwg.mxu0
  %v3793 = vadd.f32 %v3354, %v3775
  %v3794 = vadd.f32 %v3359, %v3780
  %v3795 = vadd.f32 %v3364, %v3785
  %v3796 = vadd.f32 %v3369, %v3790
  %v3797 = vld [vmem:[%s4 + $0xe0] sm:$0xff]
  %v3798 = vld [vmem:[%s4 + $0xe8] sm:$0xff]
  %v3799 = vld [vmem:[%s4 + $0xf0] sm:$0xff]
  %v3800 = vld [vmem:[%s4 + $0xf8] sm:$0xff]
  %v3801 = vld [vmem:[%s4 + $0x1e0] sm:$0xff]
  %v3802 = vld [vmem:[%s4 + $0x1e8] sm:$0xff]
  %v3803 = vld [vmem:[%s4 + $0x1f0] sm:$0xff]
  %v3804 = vld [vmem:[%s4 + $0x1f8] sm:$0xff]
  %v3805 = vld [vmem:[%s5 + $0x7a] sm:$0x1]
  %v3806 = vlaneseq
  %v3807 = vshrl.u32 %v3806, 7
  %v3808 = vsub.s32 0, %v3807
  %v3809 = vrot.slane %v3805, %v3808
  %3810 = vmatprep.subr.mxu0 0.0
  %3811 = vmatpush1.msra.mxu0 %v3797
  %3812 = vmatprep.subr.mxu0 0.0
  %3813 = vmatpush1.msra.mxu0 %v3798
  %3814 = vmatprep.subr.mxu0 0.0
  %3815 = vmatpush1.msra.mxu0 %v3799
  %3816 = vmatprep.subr.mxu0 0.0
  %3817 = vmatpush1.msra.mxu0 %v3800
  %3818 = vmatprep.subr.mxu0 0.0
  %3819 = vmatpush1.msra.mxu0 0.0
  %3820 = vmatprep.subr.mxu0 0.0
  %3821 = vmatpush1.msra.mxu0 0.0
  %3822 = vmatprep.subr.mxu0 0.0
  %3823 = vmatpush1.msra.mxu0 0.0
  %3824 = vmatprep.subr.mxu0 0.0
  %3825 = vmatpush1.msra.mxu0 0.0
  %3826 = vmatprep.subr.mxu0 0.0
  %3827 = vmatpush1.msra.mxu0 0.0
  %3828 = vmatprep.subr.mxu0 0.0
  %3829 = vmatpush1.msra.mxu0 0.0
  %3830 = vmatprep.subr.mxu0 0.0
  %3831 = vmatpush1.msra.mxu0 0.0
  %3832 = vmatprep.subr.mxu0 0.0
  %3833 = vmatpush1.msra.mxu0 0.0
  %3834 = vmatprep.subr.mxu0 0.0
  %3835 = vmatpush1.msra.mxu0 0.0
  %3836 = vmatprep.subr.mxu0 0.0
  %3837 = vmatpush1.msra.mxu0 0.0
  %3838 = vmatprep.subr.mxu0 0.0
  %3839 = vmatpush1.msra.mxu0 0.0
  %3840 = vmatprep.subr.mxu0 0.0
  %3841 = vmatpush1.msra.mxu0 0.0
  %3842 = vmatprep.subr.mxu0 0.0
  %3843 = vmatpush1.msra.mxu0 0.0
  %3844 = vmatprep.subr.mxu0 0.0
  %3845 = vmatpush1.msra.mxu0 0.0
  %3846 = vmatprep.subr.mxu0 0.0
  %3847 = vmatpush1.msra.mxu0 0.0
  %3848 = vmatprep.subr.mxu0 0.0
  %3849 = vmatpush1.msra.mxu0 0.0
  %3850 = vmatprep.subr.mxu0 0.0
  %3851 = vmatpush1.msra.mxu0 0.0
  %3852 = vmatprep.subr.mxu0 0.0
  %3853 = vmatpush1.msra.mxu0 0.0
  %3854 = vmatprep.subr.mxu0 0.0
  %3855 = vmatpush1.msra.mxu0 0.0
  %3856 = vmatprep.subr.mxu0 0.0
  %3857 = vmatpush1.msra.mxu0 0.0
  %3858 = vmatprep.subr.mxu0 0.0
  %3859 = vmatpush1.msra.mxu0 0.0
  %3860 = vmatprep.subr.mxu0 0.0
  %3861 = vmatpush1.msra.mxu0 0.0
  %3862 = vmatprep.subr.mxu0 0.0
  %3863 = vmatpush1.msra.mxu0 0.0
  %3864 = vmatprep.subr.mxu0 0.0
  %3865 = vmatpush1.msra.mxu0 0.0
  %3866 = vmatprep.subr.mxu0 0.0
  %3867 = vmatpush1.msra.mxu0 0.0
  %3868 = vmatprep.subr.mxu0 0.0
  %3869 = vmatpush1.msra.mxu0 0.0
  %3870 = vmatprep.subr.mxu0 0.0
  %3871 = vmatpush1.msra.mxu0 0.0
  %3872 = vmatprep.subr.mxu0 0.0
  %3873 = vmatpush1.msra.mxu0 0.0
  %3874 = vmatprep.mubr.f32.mxu0 0.0
  %3875 = vmatmul.mubr.f32.gmra.mrb[0].mxu0 %v2532
  %v3876 = vpop.f32.mrb[0].mxu0
  %v3877 = vadd.f32 %v3809, %v3876
  %v3878 = vpop.f32.mrb[0].mxu0
  %3879 = vmatprep.mubr.f32.mxu0 0.0
  %3880 = vmatmul.mubr.f32.gmra.mrb[0].mxu0 %v2535
  %v3881 = vpop.f32.mrb[0].mxu0
  %v3882 = vadd.f32 %v3809, %v3881
  %v3883 = vpop.f32.mrb[0].mxu0
  %3884 = vmatprep.mubr.f32.mxu0 0.0
  %3885 = vmatmul.mubr.f32.gmra.mrb[0].mxu0 %v2538
  %v3886 = vpop.f32.mrb[0].mxu0
  %v3887 = vadd.f32 %v3809, %v3886
  %v3888 = vpop.f32.mrb[0].mxu0
  %3889 = vmatprep.mubr.f32.mxu0 0.0
  %3890 = vmatmul.mubr.f32.gmra.mrb[0].mxu0 %v2541
  %v3891 = vpop.f32.mrb[0].mxu0
  %v3892 = vadd.f32 %v3809, %v3891
  %v3893 = vpop.f32.mrb[0].mxu0
  %3894 = vdwg.mxu0
  %v3896 = vsel %vm330, %v3877, 0
  %v3899 = vsel %vm330, %v3882, 0
  %v3902 = vsel %vm330, %v3887, 0
  %v3905 = vsel %vm330, %v3892, 0
  %3907 = vmatprep.subr.mxu0 0.0
  %3908 = vmatpush1.xpose.msra.mxu0 %v2532
  %3909 = vmatprep.subr.mxu0 0.0
  %3910 = vmatpush1.xpose.msra.mxu0 %v2535
  %3911 = vmatprep.subr.mxu0 0.0
  %3912 = vmatpush1.xpose.msra.mxu0 %v2538
  %3913 = vmatprep.subr.mxu0 0.0
  %3914 = vmatpush1.xpose.msra.mxu0 %v2541
  %3915 = vmatprep.subr.mxu0 0.0
  %3916 = vmatpush1.xpose.msra.mxu0 0.0
  %3917 = vmatprep.subr.mxu0 0.0
  %3918 = vmatpush1.xpose.msra.mxu0 0.0
  %3919 = vmatprep.subr.mxu0 0.0
  %3920 = vmatpush1.xpose.msra.mxu0 0.0
  %3921 = vmatprep.subr.mxu0 0.0
  %3922 = vmatpush1.xpose.msra.mxu0 0.0
  %3923 = vmatprep.subr.mxu0 0.0
  %3924 = vmatpush1.xpose.msra.mxu0 0.0
  %3925 = vmatprep.subr.mxu0 0.0
  %3926 = vmatpush1.xpose.msra.mxu0 0.0
  %3927 = vmatprep.subr.mxu0 0.0
  %3928 = vmatpush1.xpose.msra.mxu0 0.0
  %3929 = vmatprep.subr.mxu0 0.0
  %3930 = vmatpush1.xpose.msra.mxu0 0.0
  %3931 = vmatprep.subr.mxu0 0.0
  %3932 = vmatpush1.xpose.msra.mxu0 0.0
  %3933 = vmatprep.subr.mxu0 0.0
  %3934 = vmatpush1.xpose.msra.mxu0 0.0
  %3935 = vmatprep.subr.mxu0 0.0
  %3936 = vmatpush1.xpose.msra.mxu0 0.0
  %3937 = vmatprep.subr.mxu0 0.0
  %3938 = vmatpush1.xpose.msra.mxu0 0.0
  %3939 = vmatprep.subr.mxu0 0.0
  %3940 = vmatpush1.xpose.msra.mxu0 0.0
  %3941 = vmatprep.subr.mxu0 0.0
  %3942 = vmatpush1.xpose.msra.mxu0 0.0
  %3943 = vmatprep.subr.mxu0 0.0
  %3944 = vmatpush1.xpose.msra.mxu0 0.0
  %3945 = vmatprep.subr.mxu0 0.0
  %3946 = vmatpush1.xpose.msra.mxu0 0.0
  %3947 = vmatprep.subr.mxu0 0.0
  %3948 = vmatpush1.xpose.msra.mxu0 0.0
  %3949 = vmatprep.subr.mxu0 0.0
  %3950 = vmatpush1.xpose.msra.mxu0 0.0
  %3951 = vmatprep.subr.mxu0 0.0
  %3952 = vmatpush1.xpose.msra.mxu0 0.0
  %3953 = vmatprep.subr.mxu0 0.0
  %3954 = vmatpush1.xpose.msra.mxu0 0.0
  %3955 = vmatprep.subr.mxu0 0.0
  %3956 = vmatpush1.xpose.msra.mxu0 0.0
  %3957 = vmatprep.subr.mxu0 0.0
  %3958 = vmatpush1.xpose.msra.mxu0 0.0
  %3959 = vmatprep.subr.mxu0 0.0
  %3960 = vmatpush1.xpose.msra.mxu0 0.0
  %3961 = vmatprep.subr.mxu0 0.0
  %3962 = vmatpush1.xpose.msra.mxu0 0.0
  %3963 = vmatprep.subr.mxu0 0.0
  %3964 = vmatpush1.xpose.msra.mxu0 0.0
  %3965 = vmatprep.subr.mxu0 0.0
  %3966 = vmatpush1.xpose.msra.mxu0 0.0
  %3967 = vmatprep.subr.mxu0 0.0
  %3968 = vmatpush1.xpose.msra.mxu0 0.0
  %3969 = vmatprep.subr.mxu0 0.0
  %3970 = vmatpush1.xpose.msra.mxu0 0.0
  %3971 = vmatprep.mubr.f32.mxu0 0.0
  %3972 = vmatmul.mubr.f32.gmra.mrb[0].mxu0 %v3896
  %v3973 = vpop.f32.mrb[0].mxu0
  %v3974 = vadd.f32 %v400, %v3973
  %v3975 = vpop.f32.mrb[0].mxu0
  %3976 = vmatprep.mubr.f32.mxu0 0.0
  %3977 = vmatmul.mubr.f32.gmra.mrb[0].mxu0 %v3899
  %v3978 = vpop.f32.mrb[0].mxu0
  %v3979 = vadd.f32 %v401, %v3978
  %v3980 = vpop.f32.mrb[0].mxu0
  %3981 = vmatprep.mubr.f32.mxu0 0.0
  %3982 = vmatmul.mubr.f32.gmra.mrb[0].mxu0 %v3902
  %v3983 = vpop.f32.mrb[0].mxu0
  %v3984 = vadd.f32 %v402, %v3983
  %v3985 = vpop.f32.mrb[0].mxu0
  %3986 = vmatprep.mubr.f32.mxu0 0.0
  %3987 = vmatmul.mubr.f32.gmra.mrb[0].mxu0 %v3905
  %v3988 = vpop.f32.mrb[0].mxu0
  %v3989 = vadd.f32 %v403, %v3988
  %v3990 = vpop.f32.mrb[0].mxu0
  %3991 = vdwg.mxu0
  %v3992 = vsel %vm330, %v3974, -inf
  %3993 = vmax.xlane.f32.xlu0 %v3992
  %v3994 = vpop.xlane.xlu0 %3993
  %v3995 = vsel %vm330, %v3979, -inf
  %3996 = vmax.xlane.f32.xlu0 %v3995
  %v3997 = vpop.xlane.xlu0 %3996
  %v3998 = vsel %vm330, %v3984, -inf
  %3999 = vmax.xlane.f32.xlu0 %v3998
  %v4000 = vpop.xlane.xlu0 %3999
  %v4001 = vsel %vm330, %v3989, -inf
  %4002 = vmax.xlane.f32.xlu0 %v4001
  %v4003 = vpop.xlane.xlu0 %4002
  %v4004 = vsub.f32 %v3974, %v3994
  %v4005 = vsub.f32 %v3979, %v3997
  %v4006 = vsub.f32 %v3984, %v4000
  %v4007 = vsub.f32 %v3989, %v4003
  %v4008 = vmul.f32 %v4004, 1.442695
  %v4009 = vpow.pop %v4008
  %v4010 = vmul.f32 %v4005, 1.442695
  %v4011 = vpow.pop %v4010
  %v4012 = vmul.f32 %v4006, 1.442695
  %v4013 = vpow.pop %v4012
  %v4014 = vmul.f32 %v4007, 1.442695
  %v4015 = vpow.pop %v4014
  %v4016 = vsel %vm330, %v4009, 0.0
  %4017 = vadd.xlane.f32.xlu0 %v4016
  %v4018 = vpop.xlane.xlu0 %4017
  %v4019 = vsel %vm330, %v4011, 0.0
  %4020 = vadd.xlane.f32.xlu0 %v4019
  %v4021 = vpop.xlane.xlu0 %4020
  %v4022 = vsel %vm330, %v4013, 0.0
  %4023 = vadd.xlane.f32.xlu0 %v4022
  %v4024 = vpop.xlane.xlu0 %4023
  %v4025 = vsel %vm330, %v4015, 0.0
  %4026 = vadd.xlane.f32.xlu0 %v4025
  %v4027 = vpop.xlane.xlu0 %4026
  %v4028 = vrcp.pop %v4018
  %v4029 = vrcp.pop %v4021
  %v4030 = vrcp.pop %v4024
  %v4031 = vrcp.pop %v4027
  %v4032 = vmul.f32 %v4009, %v4028
  %v4033 = vmul.f32 %v4011, %v4029
  %v4034 = vmul.f32 %v4013, %v4030
  %v4035 = vmul.f32 %v4015, %v4031
  %4036 = vmatprep.subr.mxu0 0.0
  %4037 = vmatpush1.msra.mxu0 %v3801
  %4038 = vmatprep.subr.mxu0 0.0
  %4039 = vmatpush1.msra.mxu0 %v3802
  %4040 = vmatprep.subr.mxu0 0.0
  %4041 = vmatpush1.msra.mxu0 %v3803
  %4042 = vmatprep.subr.mxu0 0.0
  %4043 = vmatpush1.msra.mxu0 %v3804
  %4044 = vmatprep.subr.mxu0 0.0
  %4045 = vmatpush1.msra.mxu0 0.0
  %4046 = vmatprep.subr.mxu0 0.0
  %4047 = vmatpush1.msra.mxu0 0.0
  %4048 = vmatprep.subr.mxu0 0.0
  %4049 = vmatpush1.msra.mxu0 0.0
  %4050 = vmatprep.subr.mxu0 0.0
  %4051 = vmatpush1.msra.mxu0 0.0
  %4052 = vmatprep.subr.mxu0 0.0
  %4053 = vmatpush1.msra.mxu0 0.0
  %4054 = vmatprep.subr.mxu0 0.0
  %4055 = vmatpush1.msra.mxu0 0.0
  %4056 = vmatprep.subr.mxu0 0.0
  %4057 = vmatpush1.msra.mxu0 0.0
  %4058 = vmatprep.subr.mxu0 0.0
  %4059 = vmatpush1.msra.mxu0 0.0
  %4060 = vmatprep.subr.mxu0 0.0
  %4061 = vmatpush1.msra.mxu0 0.0
  %4062 = vmatprep.subr.mxu0 0.0
  %4063 = vmatpush1.msra.mxu0 0.0
  %4064 = vmatprep.subr.mxu0 0.0
  %4065 = vmatpush1.msra.mxu0 0.0
  %4066 = vmatprep.subr.mxu0 0.0
  %4067 = vmatpush1.msra.mxu0 0.0
  %4068 = vmatprep.subr.mxu0 0.0
  %4069 = vmatpush1.msra.mxu0 0.0
  %4070 = vmatprep.subr.mxu0 0.0
  %4071 = vmatpush1.msra.mxu0 0.0
  %4072 = vmatprep.subr.mxu0 0.0
  %4073 = vmatpush1.msra.mxu0 0.0
  %4074 = vmatprep.subr.mxu0 0.0
  %4075 = vmatpush1.msra.mxu0 0.0
  %4076 = vmatprep.subr.mxu0 0.0
  %4077 = vmatpush1.msra.mxu0 0.0
  %4078 = vmatprep.subr.mxu0 0.0
  %4079 = vmatpush1.msra.mxu0 0.0
  %4080 = vmatprep.subr.mxu0 0.0
  %4081 = vmatpush1.msra.mxu0 0.0
  %4082 = vmatprep.subr.mxu0 0.0
  %4083 = vmatpush1.msra.mxu0 0.0
  %4084 = vmatprep.subr.mxu0 0.0
  %4085 = vmatpush1.msra.mxu0 0.0
  %4086 = vmatprep.subr.mxu0 0.0
  %4087 = vmatpush1.msra.mxu0 0.0
  %4088 = vmatprep.subr.mxu0 0.0
  %4089 = vmatpush1.msra.mxu0 0.0
  %4090 = vmatprep.subr.mxu0 0.0
  %4091 = vmatpush1.msra.mxu0 0.0
  %4092 = vmatprep.subr.mxu0 0.0
  %4093 = vmatpush1.msra.mxu0 0.0
  %4094 = vmatprep.subr.mxu0 0.0
  %4095 = vmatpush1.msra.mxu0 0.0
  %4096 = vmatprep.subr.mxu0 0.0
  %4097 = vmatpush1.msra.mxu0 0.0
  %4098 = vmatprep.subr.mxu0 0.0
  %4099 = vmatpush1.msra.mxu0 0.0
  %4100 = vmatprep.mubr.f32.mxu0 0.0
  %4101 = vmatmul.mubr.f32.gmra.mrb[0].mxu0 %v2532
  %v4102 = vpop.f32.mrb[0].mxu0
  %v4103 = vadd.f32 0.0, %v4102
  %v4104 = vpop.f32.mrb[0].mxu0
  %4105 = vmatprep.mubr.f32.mxu0 0.0
  %4106 = vmatmul.mubr.f32.gmra.mrb[0].mxu0 %v2535
  %v4107 = vpop.f32.mrb[0].mxu0
  %v4108 = vadd.f32 0.0, %v4107
  %v4109 = vpop.f32.mrb[0].mxu0
  %4110 = vmatprep.mubr.f32.mxu0 0.0
  %4111 = vmatmul.mubr.f32.gmra.mrb[0].mxu0 %v2538
  %v4112 = vpop.f32.mrb[0].mxu0
  %v4113 = vadd.f32 0.0, %v4112
  %v4114 = vpop.f32.mrb[0].mxu0
  %4115 = vmatprep.mubr.f32.mxu0 0.0
  %4116 = vmatmul.mubr.f32.gmra.mrb[0].mxu0 %v2541
  %v4117 = vpop.f32.mrb[0].mxu0
  %v4118 = vadd.f32 0.0, %v4117
  %v4119 = vpop.f32.mrb[0].mxu0
  %4120 = vdwg.mxu0
  %v4122 = vsel %vm330, %v4032, 0
  %v4125 = vsel %vm330, %v4033, 0
  %v4128 = vsel %vm330, %v4034, 0
  %v4131 = vsel %vm330, %v4035, 0
  %4133 = vmatprep.subr.mxu0 0.0
  %4134 = vmatpush1.msra.mxu0 %v4103
  %4135 = vmatprep.subr.mxu0 0.0
  %4136 = vmatpush1.msra.mxu0 %v4108
  %4137 = vmatprep.subr.mxu0 0.0
  %4138 = vmatpush1.msra.mxu0 %v4113
  %4139 = vmatprep.subr.mxu0 0.0
  %4140 = vmatpush1.msra.mxu0 %v4118
  %4141 = vmatprep.subr.mxu0 0.0
  %4142 = vmatpush1.msra.mxu0 0.0
  %4143 = vmatprep.subr.mxu0 0.0
  %4144 = vmatpush1.msra.mxu0 0.0
  %4145 = vmatprep.subr.mxu0 0.0
  %4146 = vmatpush1.msra.mxu0 0.0
  %4147 = vmatprep.subr.mxu0 0.0
  %4148 = vmatpush1.msra.mxu0 0.0
  %4149 = vmatprep.subr.mxu0 0.0
  %4150 = vmatpush1.msra.mxu0 0.0
  %4151 = vmatprep.subr.mxu0 0.0
  %4152 = vmatpush1.msra.mxu0 0.0
  %4153 = vmatprep.subr.mxu0 0.0
  %4154 = vmatpush1.msra.mxu0 0.0
  %4155 = vmatprep.subr.mxu0 0.0
  %4156 = vmatpush1.msra.mxu0 0.0
  %4157 = vmatprep.subr.mxu0 0.0
  %4158 = vmatpush1.msra.mxu0 0.0
  %4159 = vmatprep.subr.mxu0 0.0
  %4160 = vmatpush1.msra.mxu0 0.0
  %4161 = vmatprep.subr.mxu0 0.0
  %4162 = vmatpush1.msra.mxu0 0.0
  %4163 = vmatprep.subr.mxu0 0.0
  %4164 = vmatpush1.msra.mxu0 0.0
  %4165 = vmatprep.subr.mxu0 0.0
  %4166 = vmatpush1.msra.mxu0 0.0
  %4167 = vmatprep.subr.mxu0 0.0
  %4168 = vmatpush1.msra.mxu0 0.0
  %4169 = vmatprep.subr.mxu0 0.0
  %4170 = vmatpush1.msra.mxu0 0.0
  %4171 = vmatprep.subr.mxu0 0.0
  %4172 = vmatpush1.msra.mxu0 0.0
  %4173 = vmatprep.subr.mxu0 0.0
  %4174 = vmatpush1.msra.mxu0 0.0
  %4175 = vmatprep.subr.mxu0 0.0
  %4176 = vmatpush1.msra.mxu0 0.0
  %4177 = vmatprep.subr.mxu0 0.0
  %4178 = vmatpush1.msra.mxu0 0.0
  %4179 = vmatprep.subr.mxu0 0.0
  %4180 = vmatpush1.msra.mxu0 0.0
  %4181 = vmatprep.subr.mxu0 0.0
  %4182 = vmatpush1.msra.mxu0 0.0
  %4183 = vmatprep.subr.mxu0 0.0
  %4184 = vmatpush1.msra.mxu0 0.0
  %4185 = vmatprep.subr.mxu0 0.0
  %4186 = vmatpush1.msra.mxu0 0.0
  %4187 = vmatprep.subr.mxu0 0.0
  %4188 = vmatpush1.msra.mxu0 0.0
  %4189 = vmatprep.subr.mxu0 0.0
  %4190 = vmatpush1.msra.mxu0 0.0
  %4191 = vmatprep.subr.mxu0 0.0
  %4192 = vmatpush1.msra.mxu0 0.0
  %4193 = vmatprep.subr.mxu0 0.0
  %4194 = vmatpush1.msra.mxu0 0.0
  %4195 = vmatprep.subr.mxu0 0.0
  %4196 = vmatpush1.msra.mxu0 0.0
  %4197 = vmatprep.mubr.f32.mxu0 0.0
  %4198 = vmatmul.mubr.f32.gmra.mrb[0].mxu0 %v4122
  %v4199 = vpop.f32.mrb[0].mxu0
  %v4200 = vadd.f32 0.0, %v4199
  %v4201 = vpop.f32.mrb[0].mxu0
  %4202 = vmatprep.mubr.f32.mxu0 0.0
  %4203 = vmatmul.mubr.f32.gmra.mrb[0].mxu0 %v4125
  %v4204 = vpop.f32.mrb[0].mxu0
  %v4205 = vadd.f32 0.0, %v4204
  %v4206 = vpop.f32.mrb[0].mxu0
  %4207 = vmatprep.mubr.f32.mxu0 0.0
  %4208 = vmatmul.mubr.f32.gmra.mrb[0].mxu0 %v4128
  %v4209 = vpop.f32.mrb[0].mxu0
  %v4210 = vadd.f32 0.0, %v4209
  %v4211 = vpop.f32.mrb[0].mxu0
  %4212 = vmatprep.mubr.f32.mxu0 0.0
  %4213 = vmatmul.mubr.f32.gmra.mrb[0].mxu0 %v4131
  %v4214 = vpop.f32.mrb[0].mxu0
  %v4215 = vadd.f32 0.0, %v4214
  %v4216 = vpop.f32.mrb[0].mxu0
  %4217 = vdwg.mxu0
  %v4218 = vadd.f32 %v3793, %v4200
  %v4219 = vadd.f32 %v3794, %v4205
  %v4220 = vadd.f32 %v3795, %v4210
  %v4221 = vadd.f32 %v3796, %v4215
  %v4222 = vld [vmem:[%s5 + $0x7b] sm:$0x1]
  %v4223 = vlaneseq
  %v4224 = vshrl.u32 %v4223, 7
  %v4225 = vsub.s32 0, %v4224
  %v4226 = vrot.slane %v4222, %v4225
  %v4227 = vadd.f32 %v4218, %v4226
  %v4228 = vadd.f32 %v4219, %v4226
  %v4229 = vadd.f32 %v4220, %v4226
  %v4230 = vadd.f32 %v4221, %v4226
  %v4231 = vadd.f32 %v4227, %v2514
  %v4232 = vadd.f32 %v4228, %v2515
  %v4233 = vadd.f32 %v4229, %v2516
  %v4234 = vadd.f32 %v4230, %v2517
  %v4235 = vld [vmem:[%s5 + $0x7c] sm:$0x1]
  %v4236 = vld [vmem:[%s5 + $0x7d] sm:$0x1]
  %v4237 = vsel %vm330, %v4231, 0.0
  %4238 = vadd.xlane.f32.xlu0 %v4237
  %v4239 = vpop.xlane.xlu0 %4238
  %v4240 = vsel %vm330, %v4232, 0.0
  %4241 = vadd.xlane.f32.xlu0 %v4240
  %v4242 = vpop.xlane.xlu0 %4241
  %v4243 = vsel %vm330, %v4233, 0.0
  %4244 = vadd.xlane.f32.xlu0 %v4243
  %v4245 = vpop.xlane.xlu0 %4244
  %v4246 = vsel %vm330, %v4234, 0.0
  %4247 = vadd.xlane.f32.xlu0 %v4246
  %v4248 = vpop.xlane.xlu0 %4247
  %v4249 = vmul.f32 %v4239, %v343
  %v4250 = vmul.f32 %v4242, %v343
  %v4251 = vmul.f32 %v4245, %v343
  %v4252 = vmul.f32 %v4248, %v343
  %v4253 = vsub.f32 %v4231, %v4249
  %v4254 = vsub.f32 %v4232, %v4250
  %v4255 = vsub.f32 %v4233, %v4251
  %v4256 = vsub.f32 %v4234, %v4252
  %v4257 = vmul.f32 %v4253, %v4253
  %v4258 = vmul.f32 %v4254, %v4254
  %v4259 = vmul.f32 %v4255, %v4255
  %v4260 = vmul.f32 %v4256, %v4256
  %v4261 = vsel %vm330, %v4257, 0.0
  %4262 = vadd.xlane.f32.xlu0 %v4261
  %v4263 = vpop.xlane.xlu0 %4262
  %v4264 = vsel %vm330, %v4258, 0.0
  %4265 = vadd.xlane.f32.xlu0 %v4264
  %v4266 = vpop.xlane.xlu0 %4265
  %v4267 = vsel %vm330, %v4259, 0.0
  %4268 = vadd.xlane.f32.xlu0 %v4267
  %v4269 = vpop.xlane.xlu0 %4268
  %v4270 = vsel %vm330, %v4260, 0.0
  %4271 = vadd.xlane.f32.xlu0 %v4270
  %v4272 = vpop.xlane.xlu0 %4271
  %v4273 = vmul.f32 %v4263, %v343
  %v4274 = vmul.f32 %v4266, %v343
  %v4275 = vmul.f32 %v4269, %v343
  %v4276 = vmul.f32 %v4272, %v343
  %v4277 = vadd.f32 %v4273, 1e-12
  %v4278 = vadd.f32 %v4274, 1e-12
  %v4279 = vadd.f32 %v4275, 1e-12
  %v4280 = vadd.f32 %v4276, 1e-12
  %v4281 = vrsqrt.pop %v4277
  %v4282 = vrsqrt.pop %v4278
  %v4283 = vrsqrt.pop %v4279
  %v4284 = vrsqrt.pop %v4280
  %v4285 = vmul.f32 %v4253, %v4281
  %v4286 = vmul.f32 %v4254, %v4282
  %v4287 = vmul.f32 %v4255, %v4283
  %v4288 = vmul.f32 %v4256, %v4284
  %v4289 = vlaneseq
  %v4290 = vshrl.u32 %v4289, 7
  %v4291 = vsub.s32 0, %v4290
  %v4292 = vrot.slane %v4235, %v4291
  %v4293 = vmul.f32 %v4285, %v4292
  %v4294 = vmul.f32 %v4286, %v4292
  %v4295 = vmul.f32 %v4287, %v4292
  %v4296 = vmul.f32 %v4288, %v4292
  %v4297 = vlaneseq
  %v4298 = vshrl.u32 %v4297, 7
  %v4299 = vsub.s32 0, %v4298
  %v4300 = vrot.slane %v4236, %v4299
  %v4301 = vadd.f32 %v4293, %v4300
  %v4302 = vadd.f32 %v4294, %v4300
  %v4303 = vadd.f32 %v4295, %v4300
  %v4304 = vadd.f32 %v4296, %v4300
  %v4305 = vld [vmem:[%s5 + $0x20] sm:$0xff]
  %v4306 = vld [vmem:[%s5 + $0x28] sm:$0xff]
  %v4307 = vld [vmem:[%s5 + $0x30] sm:$0xff]
  %v4308 = vld [vmem:[%s5 + $0x38] sm:$0xff]
  %v4309 = vld [vmem:[%s5 + $0x7e] sm:$0x1]
  %v4310 = vlaneseq
  %v4311 = vshrl.u32 %v4310, 7
  %v4312 = vsub.s32 0, %v4311
  %v4313 = vrot.slane %v4309, %v4312
  %v4315 = vsel %vm330, %v4301, 0
  %v4318 = vsel %vm330, %v4302, 0
  %v4321 = vsel %vm330, %v4303, 0
  %v4324 = vsel %vm330, %v4304, 0
  %4326 = vmatprep.subr.mxu0 0.0
  %4327 = vmatpush1.msra.mxu0 %v4305
  %4328 = vmatprep.subr.mxu0 0.0
  %4329 = vmatpush1.msra.mxu0 %v4306
  %4330 = vmatprep.subr.mxu0 0.0
  %4331 = vmatpush1.msra.mxu0 %v4307
  %4332 = vmatprep.subr.mxu0 0.0
  %4333 = vmatpush1.msra.mxu0 %v4308
  %4334 = vmatprep.subr.mxu0 0.0
  %4335 = vmatpush1.msra.mxu0 0.0
  %4336 = vmatprep.subr.mxu0 0.0
  %4337 = vmatpush1.msra.mxu0 0.0
  %4338 = vmatprep.subr.mxu0 0.0
  %4339 = vmatpush1.msra.mxu0 0.0
  %4340 = vmatprep.subr.mxu0 0.0
  %4341 = vmatpush1.msra.mxu0 0.0
  %4342 = vmatprep.subr.mxu0 0.0
  %4343 = vmatpush1.msra.mxu0 0.0
  %4344 = vmatprep.subr.mxu0 0.0
  %4345 = vmatpush1.msra.mxu0 0.0
  %4346 = vmatprep.subr.mxu0 0.0
  %4347 = vmatpush1.msra.mxu0 0.0
  %4348 = vmatprep.subr.mxu0 0.0
  %4349 = vmatpush1.msra.mxu0 0.0
  %4350 = vmatprep.subr.mxu0 0.0
  %4351 = vmatpush1.msra.mxu0 0.0
  %4352 = vmatprep.subr.mxu0 0.0
  %4353 = vmatpush1.msra.mxu0 0.0
  %4354 = vmatprep.subr.mxu0 0.0
  %4355 = vmatpush1.msra.mxu0 0.0
  %4356 = vmatprep.subr.mxu0 0.0
  %4357 = vmatpush1.msra.mxu0 0.0
  %4358 = vmatprep.subr.mxu0 0.0
  %4359 = vmatpush1.msra.mxu0 0.0
  %4360 = vmatprep.subr.mxu0 0.0
  %4361 = vmatpush1.msra.mxu0 0.0
  %4362 = vmatprep.subr.mxu0 0.0
  %4363 = vmatpush1.msra.mxu0 0.0
  %4364 = vmatprep.subr.mxu0 0.0
  %4365 = vmatpush1.msra.mxu0 0.0
  %4366 = vmatprep.subr.mxu0 0.0
  %4367 = vmatpush1.msra.mxu0 0.0
  %4368 = vmatprep.subr.mxu0 0.0
  %4369 = vmatpush1.msra.mxu0 0.0
  %4370 = vmatprep.subr.mxu0 0.0
  %4371 = vmatpush1.msra.mxu0 0.0
  %4372 = vmatprep.subr.mxu0 0.0
  %4373 = vmatpush1.msra.mxu0 0.0
  %4374 = vmatprep.subr.mxu0 0.0
  %4375 = vmatpush1.msra.mxu0 0.0
  %4376 = vmatprep.subr.mxu0 0.0
  %4377 = vmatpush1.msra.mxu0 0.0
  %4378 = vmatprep.subr.mxu0 0.0
  %4379 = vmatpush1.msra.mxu0 0.0
  %4380 = vmatprep.subr.mxu0 0.0
  %4381 = vmatpush1.msra.mxu0 0.0
  %4382 = vmatprep.subr.mxu0 0.0
  %4383 = vmatpush1.msra.mxu0 0.0
  %4384 = vmatprep.subr.mxu0 0.0
  %4385 = vmatpush1.msra.mxu0 0.0
  %4386 = vmatprep.subr.mxu0 0.0
  %4387 = vmatpush1.msra.mxu0 0.0
  %4388 = vmatprep.subr.mxu0 0.0
  %4389 = vmatpush1.msra.mxu0 0.0
  %4390 = vmatprep.mubr.f32.mxu0 0.0
  %4391 = vmatmul.mubr.f32.gmra.mrb[0].mxu0 %v4315
  %v4392 = vpop.f32.mrb[0].mxu0
  %v4393 = vadd.f32 %v4313, %v4392
  %v4394 = vpop.f32.mrb[0].mxu0
  %4395 = vmatprep.mubr.f32.mxu0 0.0
  %4396 = vmatmul.mubr.f32.gmra.mrb[0].mxu0 %v4318
  %v4397 = vpop.f32.mrb[0].mxu0
  %v4398 = vadd.f32 %v4313, %v4397
  %v4399 = vpop.f32.mrb[0].mxu0
  %4400 = vmatprep.mubr.f32.mxu0 0.0
  %4401 = vmatmul.mubr.f32.gmra.mrb[0].mxu0 %v4321
  %v4402 = vpop.f32.mrb[0].mxu0
  %v4403 = vadd.f32 %v4313, %v4402
  %v4404 = vpop.f32.mrb[0].mxu0
  %4405 = vmatprep.mubr.f32.mxu0 0.0
  %4406 = vmatmul.mubr.f32.gmra.mrb[0].mxu0 %v4324
  %v4407 = vpop.f32.mrb[0].mxu0
  %v4408 = vadd.f32 %v4313, %v4407
  %v4409 = vpop.f32.mrb[0].mxu0
  %4410 = vdwg.mxu0
  %v4411 = vmul.f32 %v4393, 0.5
  %v4412 = vmul.f32 %v4398, 0.5
  %v4413 = vmul.f32 %v4403, 0.5
  %v4414 = vmul.f32 %v4408, 0.5
  %v4415 = vmul.f32 %v4393, 0.044715
  %v4416 = vmul.f32 %v4398, 0.044715
  %v4417 = vmul.f32 %v4403, 0.044715
  %v4418 = vmul.f32 %v4408, 0.044715
  %v4419 = vmul.f32 %v4415, %v4393
  %v4420 = vmul.f32 %v4416, %v4398
  %v4421 = vmul.f32 %v4417, %v4403
  %v4422 = vmul.f32 %v4418, %v4408
  %v4423 = vmul.f32 %v4419, %v4393
  %v4424 = vmul.f32 %v4420, %v4398
  %v4425 = vmul.f32 %v4421, %v4403
  %v4426 = vmul.f32 %v4422, %v4408
  %v4427 = vadd.f32 %v4393, %v4423
  %v4428 = vadd.f32 %v4398, %v4424
  %v4429 = vadd.f32 %v4403, %v4425
  %v4430 = vadd.f32 %v4408, %v4426
  %v4431 = vmul.f32 %v4427, 0.7978846
  %v4432 = vmul.f32 %v4428, 0.7978846
  %v4433 = vmul.f32 %v4429, 0.7978846
  %v4434 = vmul.f32 %v4430, 0.7978846
  %v4435 = vtanh.pop %v4431
  %v4436 = vtanh.pop %v4432
  %v4437 = vtanh.pop %v4433
  %v4438 = vtanh.pop %v4434
  %v4439 = vadd.f32 %v4435, 1.0
  %v4440 = vadd.f32 %v4436, 1.0
  %v4441 = vadd.f32 %v4437, 1.0
  %v4442 = vadd.f32 %v4438, 1.0
  %v4443 = vmul.f32 %v4411, %v4439
  %v4444 = vmul.f32 %v4412, %v4440
  %v4445 = vmul.f32 %v4413, %v4441
  %v4446 = vmul.f32 %v4414, %v4442
  %v4447 = vld [vmem:[%s4 + $0x240] sm:$0xff]
  %v4448 = vld [vmem:[%s4 + $0x248] sm:$0xff]
  %v4449 = vld [vmem:[%s4 + $0x250] sm:$0xff]
  %v4450 = vld [vmem:[%s4 + $0x258] sm:$0xff]
  %v4451 = vld [vmem:[%s4 + $0x260] sm:$0xff]
  %v4452 = vld [vmem:[%s4 + $0x268] sm:$0xff]
  %v4453 = vld [vmem:[%s4 + $0x270] sm:$0xff]
  %v4454 = vld [vmem:[%s4 + $0x278] sm:$0xff]
  %v4455 = vld [vmem:[%s5 + $0x7f] sm:$0x1]
  %v4456 = vlaneseq
  %v4457 = vshrl.u32 %v4456, 7
  %v4458 = vsub.s32 0, %v4457
  %v4459 = vrot.slane %v4455, %v4458
  %v4461 = vsel %vm2346, %v4443, 0
  %v4464 = vsel %vm2346, %v4444, 0
  %v4467 = vsel %vm2346, %v4445, 0
  %v4470 = vsel %vm2346, %v4446, 0
  %4472 = vmatprep.subr.mxu0 0.0
  %4473 = vmatpush1.msra.mxu0 %v4447
  %4474 = vmatprep.subr.mxu0 0.0
  %4475 = vmatpush1.msra.mxu0 %v4448
  %4476 = vmatprep.subr.mxu0 0.0
  %4477 = vmatpush1.msra.mxu0 %v4449
  %4478 = vmatprep.subr.mxu0 0.0
  %4479 = vmatpush1.msra.mxu0 %v4450
  %4480 = vmatprep.subr.mxu0 0.0
  %4481 = vmatpush1.msra.mxu0 %v4451
  %4482 = vmatprep.subr.mxu0 0.0
  %4483 = vmatpush1.msra.mxu0 %v4452
  %4484 = vmatprep.subr.mxu0 0.0
  %4485 = vmatpush1.msra.mxu0 %v4453
  %4486 = vmatprep.subr.mxu0 0.0
  %4487 = vmatpush1.msra.mxu0 %v4454
  %4488 = vmatprep.subr.mxu0 0.0
  %4489 = vmatpush1.msra.mxu0 0.0
  %4490 = vmatprep.subr.mxu0 0.0
  %4491 = vmatpush1.msra.mxu0 0.0
  %4492 = vmatprep.subr.mxu0 0.0
  %4493 = vmatpush1.msra.mxu0 0.0
  %4494 = vmatprep.subr.mxu0 0.0
  %4495 = vmatpush1.msra.mxu0 0.0
  %4496 = vmatprep.subr.mxu0 0.0
  %4497 = vmatpush1.msra.mxu0 0.0
  %4498 = vmatprep.subr.mxu0 0.0
  %4499 = vmatpush1.msra.mxu0 0.0
  %4500 = vmatprep.subr.mxu0 0.0
  %4501 = vmatpush1.msra.mxu0 0.0
  %4502 = vmatprep.subr.mxu0 0.0
  %4503 = vmatpush1.msra.mxu0 0.0
  %4504 = vmatprep.subr.mxu0 0.0
  %4505 = vmatpush1.msra.mxu0 0.0
  %4506 = vmatprep.subr.mxu0 0.0
  %4507 = vmatpush1.msra.mxu0 0.0
  %4508 = vmatprep.subr.mxu0 0.0
  %4509 = vmatpush1.msra.mxu0 0.0
  %4510 = vmatprep.subr.mxu0 0.0
  %4511 = vmatpush1.msra.mxu0 0.0
  %4512 = vmatprep.subr.mxu0 0.0
  %4513 = vmatpush1.msra.mxu0 0.0
  %4514 = vmatprep.subr.mxu0 0.0
  %4515 = vmatpush1.msra.mxu0 0.0
  %4516 = vmatprep.subr.mxu0 0.0
  %4517 = vmatpush1.msra.mxu0 0.0
  %4518 = vmatprep.subr.mxu0 0.0
  %4519 = vmatpush1.msra.mxu0 0.0
  %4520 = vmatprep.subr.mxu0 0.0
  %4521 = vmatpush1.msra.mxu0 0.0
  %4522 = vmatprep.subr.mxu0 0.0
  %4523 = vmatpush1.msra.mxu0 0.0
  %4524 = vmatprep.subr.mxu0 0.0
  %4525 = vmatpush1.msra.mxu0 0.0
  %4526 = vmatprep.subr.mxu0 0.0
  %4527 = vmatpush1.msra.mxu0 0.0
  %4528 = vmatprep.subr.mxu0 0.0
  %4529 = vmatpush1.msra.mxu0 0.0
  %4530 = vmatprep.subr.mxu0 0.0
  %4531 = vmatpush1.msra.mxu0 0.0
  %4532 = vmatprep.subr.mxu0 0.0
  %4533 = vmatpush1.msra.mxu0 0.0
  %4534 = vmatprep.subr.mxu0 0.0
  %4535 = vmatpush1.msra.mxu0 0.0
  %4536 = vmatprep.mubr.f32.mxu0 0.0
  %4537 = vmatmul.mubr.f32.gmra.mrb[0].mxu0 %v4461
  %v4538 = vpop.f32.mrb[0].mxu0
  %v4539 = vadd.f32 %v4459, %v4538
  %v4540 = vpop.f32.mrb[0].mxu0
  %4541 = vmatprep.mubr.f32.mxu0 0.0
  %4542 = vmatmul.mubr.f32.gmra.mrb[0].mxu0 %v4464
  %v4543 = vpop.f32.mrb[0].mxu0
  %v4544 = vadd.f32 %v4459, %v4543
  %v4545 = vpop.f32.mrb[0].mxu0
  %4546 = vmatprep.mubr.f32.mxu0 0.0
  %4547 = vmatmul.mubr.f32.gmra.mrb[0].mxu0 %v4467
  %v4548 = vpop.f32.mrb[0].mxu0
  %v4549 = vadd.f32 %v4459, %v4548
  %v4550 = vpop.f32.mrb[0].mxu0
  %4551 = vmatprep.mubr.f32.mxu0 0.0
  %4552 = vmatmul.mubr.f32.gmra.mrb[0].mxu0 %v4470
  %v4553 = vpop.f32.mrb[0].mxu0
  %v4554 = vadd.f32 %v4459, %v4553
  %v4555 = vpop.f32.mrb[0].mxu0
  %4556 = vdwg.mxu0
  %v4557 = vadd.f32 %v4539, %v4301
  %v4558 = vadd.f32 %v4544, %v4302
  %v4559 = vadd.f32 %v4549, %v4303
  %v4560 = vadd.f32 %v4554, %v4304
  %v4561 = vld [vmem:[%s5 + $0x80] sm:$0x1]
  %v4562 = vld [vmem:[%s5 + $0x81] sm:$0x1]
  %v4563 = vsel %vm330, %v4557, 0.0
  %4564 = vadd.xlane.f32.xlu0 %v4563
  %v4565 = vpop.xlane.xlu0 %4564
  %v4566 = vsel %vm330, %v4558, 0.0
  %4567 = vadd.xlane.f32.xlu0 %v4566
  %v4568 = vpop.xlane.xlu0 %4567
  %v4569 = vsel %vm330, %v4559, 0.0
  %4570 = vadd.xlane.f32.xlu0 %v4569
  %v4571 = vpop.xlane.xlu0 %4570
  %v4572 = vsel %vm330, %v4560, 0.0
  %4573 = vadd.xlane.f32.xlu0 %v4572
  %v4574 = vpop.xlane.xlu0 %4573
  %v4575 = vmul.f32 %v4565, %v343
  %v4576 = vmul.f32 %v4568, %v343
  %v4577 = vmul.f32 %v4571, %v343
  %v4578 = vmul.f32 %v4574, %v343
  %v4579 = vsub.f32 %v4557, %v4575
  %v4580 = vsub.f32 %v4558, %v4576
  %v4581 = vsub.f32 %v4559, %v4577
  %v4582 = vsub.f32 %v4560, %v4578
  %v4583 = vmul.f32 %v4579, %v4579
  %v4584 = vmul.f32 %v4580, %v4580
  %v4585 = vmul.f32 %v4581, %v4581
  %v4586 = vmul.f32 %v4582, %v4582
  %v4587 = vsel %vm330, %v4583, 0.0
  %4588 = vadd.xlane.f32.xlu0 %v4587
  %v4589 = vpop.xlane.xlu0 %4588
  %v4590 = vsel %vm330, %v4584, 0.0
  %4591 = vadd.xlane.f32.xlu0 %v4590
  %v4592 = vpop.xlane.xlu0 %4591
  %v4593 = vsel %vm330, %v4585, 0.0
  %4594 = vadd.xlane.f32.xlu0 %v4593
  %v4595 = vpop.xlane.xlu0 %4594
  %v4596 = vsel %vm330, %v4586, 0.0
  %4597 = vadd.xlane.f32.xlu0 %v4596
  %v4598 = vpop.xlane.xlu0 %4597
  %v4599 = vmul.f32 %v4589, %v343
  %v4600 = vmul.f32 %v4592, %v343
  %v4601 = vmul.f32 %v4595, %v343
  %v4602 = vmul.f32 %v4598, %v343
  %v4603 = vadd.f32 %v4599, 1e-12
  %v4604 = vadd.f32 %v4600, 1e-12
  %v4605 = vadd.f32 %v4601, 1e-12
  %v4606 = vadd.f32 %v4602, 1e-12
  %v4607 = vrsqrt.pop %v4603
  %v4608 = vrsqrt.pop %v4604
  %v4609 = vrsqrt.pop %v4605
  %v4610 = vrsqrt.pop %v4606
  %v4611 = vmul.f32 %v4579, %v4607
  %v4612 = vmul.f32 %v4580, %v4608
  %v4613 = vmul.f32 %v4581, %v4609
  %v4614 = vmul.f32 %v4582, %v4610
  %v4615 = vlaneseq
  %v4616 = vshrl.u32 %v4615, 7
  %v4617 = vsub.s32 0, %v4616
  %v4618 = vrot.slane %v4561, %v4617
  %v4619 = vmul.f32 %v4611, %v4618
  %v4620 = vmul.f32 %v4612, %v4618
  %v4621 = vmul.f32 %v4613, %v4618
  %v4622 = vmul.f32 %v4614, %v4618
  %v4623 = vlaneseq
  %v4624 = vshrl.u32 %v4623, 7
  %v4625 = vsub.s32 0, %v4624
  %v4626 = vrot.slane %v4562, %v4625
  %v4627 = vadd.f32 %v4619, %v4626
  %v4628 = vadd.f32 %v4620, %v4626
  %v4629 = vadd.f32 %v4621, %v4626
  %v4630 = vadd.f32 %v4622, %v4626
  %v4631 = vld [vmem:[%s5 + $0x60] sm:$0xff]
  %v4633 = vsel %vm330, %v4631, 0
  %4635 = vmatprep.subr.mxu0 0.0
  %4636 = vmatpush1.msra.mxu0 %v4627
  %4637 = vmatprep.subr.mxu0 0.0
  %4638 = vmatpush1.msra.mxu0 %v4628
  %4639 = vmatprep.subr.mxu0 0.0
  %4640 = vmatpush1.msra.mxu0 %v4629
  %4641 = vmatprep.subr.mxu0 0.0
  %4642 = vmatpush1.msra.mxu0 %v4630
  %4643 = vmatprep.subr.mxu0 0.0
  %4644 = vmatpush1.msra.mxu0 0.0
  %4645 = vmatprep.subr.mxu0 0.0
  %4646 = vmatpush1.msra.mxu0 0.0
  %4647 = vmatprep.subr.mxu0 0.0
  %4648 = vmatpush1.msra.mxu0 0.0
  %4649 = vmatprep.subr.mxu0 0.0
  %4650 = vmatpush1.msra.mxu0 0.0
  %4651 = vmatprep.subr.mxu0 0.0
  %4652 = vmatpush1.msra.mxu0 0.0
  %4653 = vmatprep.subr.mxu0 0.0
  %4654 = vmatpush1.msra.mxu0 0.0
  %4655 = vmatprep.subr.mxu0 0.0
  %4656 = vmatpush1.msra.mxu0 0.0
  %4657 = vmatprep.subr.mxu0 0.0
  %4658 = vmatpush1.msra.mxu0 0.0
  %4659 = vmatprep.subr.mxu0 0.0
  %4660 = vmatpush1.msra.mxu0 0.0
  %4661 = vmatprep.subr.mxu0 0.0
  %4662 = vmatpush1.msra.mxu0 0.0
  %4663 = vmatprep.subr.mxu0 0.0
  %4664 = vmatpush1.msra.mxu0 0.0
  %4665 = vmatprep.subr.mxu0 0.0
  %4666 = vmatpush1.msra.mxu0 0.0
  %4667 = vmatprep.subr.mxu0 0.0
  %4668 = vmatpush1.msra.mxu0 0.0
  %4669 = vmatprep.subr.mxu0 0.0
  %4670 = vmatpush1.msra.mxu0 0.0
  %4671 = vmatprep.subr.mxu0 0.0
  %4672 = vmatpush1.msra.mxu0 0.0
  %4673 = vmatprep.subr.mxu0 0.0
  %4674 = vmatpush1.msra.mxu0 0.0
  %4675 = vmatprep.subr.mxu0 0.0
  %4676 = vmatpush1.msra.mxu0 0.0
  %4677 = vmatprep.subr.mxu0 0.0
  %4678 = vmatpush1.msra.mxu0 0.0
  %4679 = vmatprep.subr.mxu0 0.0
  %4680 = vmatpush1.msra.mxu0 0.0
  %4681 = vmatprep.subr.mxu0 0.0
  %4682 = vmatpush1.msra.mxu0 0.0
  %4683 = vmatprep.subr.mxu0 0.0
  %4684 = vmatpush1.msra.mxu0 0.0
  %4685 = vmatprep.subr.mxu0 0.0
  %4686 = vmatpush1.msra.mxu0 0.0
  %4687 = vmatprep.subr.mxu0 0.0
  %4688 = vmatpush1.msra.mxu0 0.0
  %4689 = vmatprep.subr.mxu0 0.0
  %4690 = vmatpush1.msra.mxu0 0.0
  %4691 = vmatprep.subr.mxu0 0.0
  %4692 = vmatpush1.msra.mxu0 0.0
  %4693 = vmatprep.subr.mxu0 0.0
  %4694 = vmatpush1.msra.mxu0 0.0
  %4695 = vmatprep.subr.mxu0 0.0
  %4696 = vmatpush1.msra.mxu0 0.0
  %4697 = vmatprep.subr.mxu0 0.0
  %4698 = vmatpush1.msra.mxu0 0.0
  %4699 = vmatprep.mubr.f32.mxu0 0.0
  %4700 = vmatmul.mubr.f32.gmra.mrb[0].mxu0 %v4633
  %v4701 = vpop.f32.mrb[0].mxu0
  %v4702 = vadd.f32 0.0, %v4701
  %v4703 = vpop.f32.mrb[0].mxu0
  %4704 = vdwg.mxu0
  %v4705 = vld [vmem:[%s4 + $0x280] sm:$0xff]
  %v4706 = vld [vmem:[%s4 + $0x288] sm:$0xff]
  %v4707 = vld [vmem:[%s4 + $0x290] sm:$0xff]
  %v4708 = vld [vmem:[%s4 + $0x298] sm:$0xff]
  %v4709 = vld [vmem:[%s5 + $0x6a] sm:$0x1]
  %v4710 = vlaneseq
  %v4711 = vshrl.u32 %v4710, 7
  %v4712 = vsub.s32 0, %v4711
  %v4713 = vrot.slane %v4709, %v4712
  %v4715 = vsel %vm330, %v4702, 0
  %4717 = vmatprep.subr.mxu0 0.0
  %4718 = vmatpush1.msra.mxu0 %v4705
  %4719 = vmatprep.subr.mxu0 0.0
  %4720 = vmatpush1.msra.mxu0 %v4706
  %4721 = vmatprep.subr.mxu0 0.0
  %4722 = vmatpush1.msra.mxu0 %v4707
  %4723 = vmatprep.subr.mxu0 0.0
  %4724 = vmatpush1.msra.mxu0 %v4708
  %4725 = vmatprep.subr.mxu0 0.0
  %4726 = vmatpush1.msra.mxu0 0.0
  %4727 = vmatprep.subr.mxu0 0.0
  %4728 = vmatpush1.msra.mxu0 0.0
  %4729 = vmatprep.subr.mxu0 0.0
  %4730 = vmatpush1.msra.mxu0 0.0
  %4731 = vmatprep.subr.mxu0 0.0
  %4732 = vmatpush1.msra.mxu0 0.0
  %4733 = vmatprep.subr.mxu0 0.0
  %4734 = vmatpush1.msra.mxu0 0.0
  %4735 = vmatprep.subr.mxu0 0.0
  %4736 = vmatpush1.msra.mxu0 0.0
  %4737 = vmatprep.subr.mxu0 0.0
  %4738 = vmatpush1.msra.mxu0 0.0
  %4739 = vmatprep.subr.mxu0 0.0
  %4740 = vmatpush1.msra.mxu0 0.0
  %4741 = vmatprep.subr.mxu0 0.0
  %4742 = vmatpush1.msra.mxu0 0.0
  %4743 = vmatprep.subr.mxu0 0.0
  %4744 = vmatpush1.msra.mxu0 0.0
  %4745 = vmatprep.subr.mxu0 0.0
  %4746 = vmatpush1.msra.mxu0 0.0
  %4747 = vmatprep.subr.mxu0 0.0
  %4748 = vmatpush1.msra.mxu0 0.0
  %4749 = vmatprep.subr.mxu0 0.0
  %4750 = vmatpush1.msra.mxu0 0.0
  %4751 = vmatprep.subr.mxu0 0.0
  %4752 = vmatpush1.msra.mxu0 0.0
  %4753 = vmatprep.subr.mxu0 0.0
  %4754 = vmatpush1.msra.mxu0 0.0
  %4755 = vmatprep.subr.mxu0 0.0
  %4756 = vmatpush1.msra.mxu0 0.0
  %4757 = vmatprep.subr.mxu0 0.0
  %4758 = vmatpush1.msra.mxu0 0.0
  %4759 = vmatprep.subr.mxu0 0.0
  %4760 = vmatpush1.msra.mxu0 0.0
  %4761 = vmatprep.subr.mxu0 0.0
  %4762 = vmatpush1.msra.mxu0 0.0
  %4763 = vmatprep.subr.mxu0 0.0
  %4764 = vmatpush1.msra.mxu0 0.0
  %4765 = vmatprep.subr.mxu0 0.0
  %4766 = vmatpush1.msra.mxu0 0.0
  %4767 = vmatprep.subr.mxu0 0.0
  %4768 = vmatpush1.msra.mxu0 0.0
  %4769 = vmatprep.subr.mxu0 0.0
  %4770 = vmatpush1.msra.mxu0 0.0
  %4771 = vmatprep.subr.mxu0 0.0
  %4772 = vmatpush1.msra.mxu0 0.0
  %4773 = vmatprep.subr.mxu0 0.0
  %4774 = vmatpush1.msra.mxu0 0.0
  %4775 = vmatprep.subr.mxu0 0.0
  %4776 = vmatpush1.msra.mxu0 0.0
  %4777 = vmatprep.subr.mxu0 0.0
  %4778 = vmatpush1.msra.mxu0 0.0
  %4779 = vmatprep.subr.mxu0 0.0
  %4780 = vmatpush1.msra.mxu0 0.0
  %4781 = vmatprep.mubr.f32.mxu0 0.0
  %4782 = vmatmul.mubr.f32.gmra.mrb[0].mxu0 %v4715
  %v4783 = vpop.f32.mrb[0].mxu0
  %v4784 = vadd.f32 %v4713, %v4783
  %v4785 = vpop.f32.mrb[0].mxu0
  %4786 = vdwg.mxu0
  %v4787 = vtanh.pop %v4784
  %v4788 = vld [vmem:[%s5 + $0x40] sm:$0xff]
  %v4789 = vld [vmem:[%s5 + $0x48] sm:$0xff]
  %v4790 = vld [vmem:[%s5 + $0x50] sm:$0xff]
  %v4791 = vld [vmem:[%s5 + $0x58] sm:$0xff]
  %v4792 = vld [vmem:[%s5 + $0x6b] sm:$0x1]
  %v4793 = vlaneseq
  %v4794 = vshrl.u32 %v4793, 7
  %v4795 = vsub.s32 0, %v4794
  %v4796 = vrot.slane %v4792, %v4795
  %v4798 = vsel %vm330, %v4787, 0
  %4800 = vmatprep.subr.mxu0 0.0
  %4801 = vmatpush1.msra.mxu0 %v4788
  %4802 = vmatprep.subr.mxu0 0.0
  %4803 = vmatpush1.msra.mxu0 %v4789
  %4804 = vmatprep.subr.mxu0 0.0
  %4805 = vmatpush1.msra.mxu0 %v4790
  %4806 = vmatprep.subr.mxu0 0.0
  %4807 = vmatpush1.msra.mxu0 %v4791
  %4808 = vmatprep.subr.mxu0 0.0
  %4809 = vmatpush1.msra.mxu0 0.0
  %4810 = vmatprep.subr.mxu0 0.0
  %4811 = vmatpush1.msra.mxu0 0.0
  %4812 = vmatprep.subr.mxu0 0.0
  %4813 = vmatpush1.msra.mxu0 0.0
  %4814 = vmatprep.subr.mxu0 0.0
  %4815 = vmatpush1.msra.mxu0 0.0
  %4816 = vmatprep.subr.mxu0 0.0
  %4817 = vmatpush1.msra.mxu0 0.0
  %4818 = vmatprep.subr.mxu0 0.0
  %4819 = vmatpush1.msra.mxu0 0.0
  %4820 = vmatprep.subr.mxu0 0.0
  %4821 = vmatpush1.msra.mxu0 0.0
  %4822 = vmatprep.subr.mxu0 0.0
  %4823 = vmatpush1.msra.mxu0 0.0
  %4824 = vmatprep.subr.mxu0 0.0
  %4825 = vmatpush1.msra.mxu0 0.0
  %4826 = vmatprep.subr.mxu0 0.0
  %4827 = vmatpush1.msra.mxu0 0.0
  %4828 = vmatprep.subr.mxu0 0.0
  %4829 = vmatpush1.msra.mxu0 0.0
  %4830 = vmatprep.subr.mxu0 0.0
  %4831 = vmatpush1.msra.mxu0 0.0
  %4832 = vmatprep.subr.mxu0 0.0
  %4833 = vmatpush1.msra.mxu0 0.0
  %4834 = vmatprep.subr.mxu0 0.0
  %4835 = vmatpush1.msra.mxu0 0.0
  %4836 = vmatprep.subr.mxu0 0.0
  %4837 = vmatpush1.msra.mxu0 0.0
  %4838 = vmatprep.subr.mxu0 0.0
  %4839 = vmatpush1.msra.mxu0 0.0
  %4840 = vmatprep.subr.mxu0 0.0
  %4841 = vmatpush1.msra.mxu0 0.0
  %4842 = vmatprep.subr.mxu0 0.0
  %4843 = vmatpush1.msra.mxu0 0.0
  %4844 = vmatprep.subr.mxu0 0.0
  %4845 = vmatpush1.msra.mxu0 0.0
  %4846 = vmatprep.subr.mxu0 0.0
  %4847 = vmatpush1.msra.mxu0 0.0
  %4848 = vmatprep.subr.mxu0 0.0
  %4849 = vmatpush1.msra.mxu0 0.0
  %4850 = vmatprep.subr.mxu0 0.0
  %4851 = vmatpush1.msra.mxu0 0.0
  %4852 = vmatprep.subr.mxu0 0.0
  %4853 = vmatpush1.msra.mxu0 0.0
  %4854 = vmatprep.subr.mxu0 0.0
  %4855 = vmatpush1.msra.mxu0 0.0
  %4856 = vmatprep.subr.mxu0 0.0
  %4857 = vmatpush1.msra.mxu0 0.0
  %4858 = vmatprep.subr.mxu0 0.0
  %4859 = vmatpush1.msra.mxu0 0.0
  %4860 = vmatprep.subr.mxu0 0.0
  %4861 = vmatpush1.msra.mxu0 0.0
  %4862 = vmatprep.subr.mxu0 0.0
  %4863 = vmatpush1.msra.mxu0 0.0
  %4864 = vmatprep.mubr.f32.mxu0 0.0
  %4865 = vmatmul.mubr.f32.gmra.mrb[0].mxu0 %v4798
  %v4866 = vpop.f32.mrb[0].mxu0
  %v4867 = vadd.f32 %v4796, %v4866
  %v4868 = vpop.f32.mrb[0].mxu0
  %4869 = vdwg.mxu0
  %4870 = vst [vmem:[%s6] sm:$0xff] %v4867
  // Predicated region
  $region26: #{forward.1} parent=0 // pred_check
    _
  $region27: #{forward.1} parent=0 // pred_check_branch
    %4872 = sbr.rel (0) target = $region29
  $region28: #{forward.1} parent=0 // pred_region
    _
  $region29: #{forward.1} parent=0 // pred_fallthru
    _
  // Predicated region
  $region30: #{forward.1} parent=0 // pred_check
    _
  $region31: #{forward.1} parent=0 // pred_check_branch
    %4874 = sbr.rel (0) target = $region33
  $region32: #{forward.1} parent=0 // pred_region
    _
  $region33: #{forward.1} parent=0 // pred_fallthru
    _

</llo_original>
